<compile_context>
chip_gen: v5e
topology: v5e:2x2
jax: 0.10.0
libtpu: 0.0.40
codegen_flags: <defaults>
</compile_context>

<pallas_src>
import math
import functools

import jax
import jax.numpy as jnp
from jax.experimental import pallas as pl
from jax.experimental.pallas import tpu as pltpu


def bert_layer_kernel(x_tile_ref, xbf_ref,
                      wq_ref, bq_ref, wkv_ref, bkv_ref, wo_ref, bo_ref,
                      g1_ref, be1_ref,
                      w1_ref, b1_ref, w2_ref, b2_ref,
                      g2_ref, be2_ref,
                      o_ref,
                      k_sc, v_sc,
                      *, n_heads, eps, exp_bf16):
    qi = pl.program_id(1)
    S = xbf_ref.shape[1]
    tq = x_tile_ref.shape[1]
    D = x_tile_ref.shape[2]
    dh = D // n_heads
    bf16 = jnp.bfloat16
    f32 = jnp.float32

    # ---- once per batch element: K/V projection, cached head-major in VMEM ----
    # K is stored pre-transposed (H, dh, S) so the per-tile QK^T stays lane-dense.
    @pl.when(qi == 0)
    def _():
        xf = xbf_ref[0]                                                          # (S, D) bf16
        kv = jnp.dot(xf, wkv_ref[...], preferred_element_type=f32) + bkv_ref[0]  # (S, 2D) f32
        k = kv[:, :D].reshape(S, n_heads, dh)
        v = kv[:, D:].reshape(S, n_heads, dh)
        kh = jnp.swapaxes(k, 0, 1)                                               # (H, S, dh)
        k_sc[...] = jnp.swapaxes(kh, 1, 2).astype(bf16)                          # (H, dh, S)
        v_sc[...] = jnp.swapaxes(v, 0, 1).astype(bf16)                           # (H, S, dh)

    # ---- Q projection for this tile (1/sqrt(dh) already folded into wq/bq) ----
    x_t = x_tile_ref[0]                                                          # (tq, D) f32
    q = jnp.dot(x_t.astype(bf16), wq_ref[...], preferred_element_type=f32) + bq_ref[0]
    q3 = jnp.swapaxes(q.reshape(tq, n_heads, dh), 0, 1).astype(bf16)             # (H, tq, dh)

    # ---- multi-head attention, all heads batched ----
    # TODO(synk): attention_mask=None path only (the reference call passes no mask).
    dots = jnp.einsum('hqd,hdk->hqk', q3, k_sc[...],
                      preferred_element_type=f32)                                # (H, tq, S) f32
    m = jnp.max(dots, axis=-1, keepdims=True)
    shifted = dots - m
    if exp_bf16:                                # v6e/v7x: bf16 EUP exp, f32 row-sum accumulate
        e_bf = jnp.exp(shifted.astype(bf16))
        denom = jnp.sum(e_bf, axis=-1, keepdims=True, dtype=f32)
    else:                                       # v5e: no bf16 EUP -> stay in f32
        e = jnp.exp(shifted)
        denom = jnp.sum(e, axis=-1, keepdims=True)
        e_bf = e.astype(bf16)
    ctx = jnp.einsum('hqk,hkd->hqd', e_bf, v_sc[...],
                     preferred_element_type=f32)                                 # (H, tq, dh) f32
    # Normalize after PV: dh-wide multiply instead of S-wide (approx recip -> EUP slot).
    ctx = ctx * pl.reciprocal(denom, approx=True)
    attn = jnp.swapaxes(ctx, 0, 1).reshape(tq, D)                                # (tq, D) f32

    attn_out = jnp.dot(attn.astype(bf16), wo_ref[...],
                       preferred_element_type=f32) + bo_ref[0]
    # TODO(synk): F.dropout is identity here (dropout_prob=0.0 / eval mode).

    # ---- residual + LayerNorm 1 (f32) ----
    r1 = attn_out + x_t
    mu1 = jnp.mean(r1, axis=-1, keepdims=True)
    var1 = jnp.mean(jnp.square(r1 - mu1), axis=-1, keepdims=True)
    y = (r1 - mu1) * jax.lax.rsqrt(var1 + eps) * g1_ref[0] + be1_ref[0]

    # ---- feed-forward: dense1 -> relu -> dense2 (bf16 matmuls, f32 accumulate) ----
    h = jnp.dot(y.astype(bf16), w1_ref[...], preferred_element_type=f32) + b1_ref[0]
    h = jnp.maximum(h, 0.0)
    z = jnp.dot(h.astype(bf16), w2_ref[...], preferred_element_type=f32) + b2_ref[0]

    # ---- residual + LayerNorm 2 (f32) ----
    r2 = z + y
    mu2 = jnp.mean(r2, axis=-1, keepdims=True)
    var2 = jnp.mean(jnp.square(r2 - mu2), axis=-1, keepdims=True)
    out = (r2 - mu2) * jax.lax.rsqrt(var2 + eps) * g2_ref[0] + be2_ref[0]

    o_ref[0] = out.astype(o_ref.dtype)


def _tpu_generation_info():
    """(physical VMEM bytes per core, lowered device_kind string), with safe fallbacks."""
    kind = ""
    try:
        kind = jax.devices()[0].device_kind.lower()
    except Exception:
        pass
    vmem = None
    try:
        vmem = int(pltpu.get_tpu_info().vmem_capacity_bytes)
    except Exception:
        vmem = None
    if vmem is None or vmem <= 0:
        vmem = 64 * 2**20 if ("v7" in kind or "7x" in kind) else 128 * 2**20
    return vmem, kind


def _pick_q_tile(S, q_tile):
    """Largest divisor of S that is <= q_tile and a multiple of 8; else the full sequence."""
    for t in range(min(q_tile, S), 7, -1):
        if S % t == 0 and t % 8 == 0:
            return t
    # TODO(synk): pad S to a tile multiple (with key masking) instead of falling back to tq=S.
    return S


def bert_layer(x, params, *, n_heads, eps=1e-5, q_tile=None):
    B, S, D = x.shape
    F = params["w1"].shape[1]
    dh = D // n_heads
    bf16 = jnp.bfloat16

    phys_vmem, kind = _tpu_generation_info()
    if q_tile is None:
        # v7x (64 MiB VMEM/TC): smaller query tile; v5e/v6e (128 MiB): larger tile.
        q_tile = 128 if phys_vmem <= 64 * 2**20 else 256
    exp_bf16 = ("v6" in kind) or ("v7" in kind) or ("7x" in kind)

    tq = _pick_q_tile(S, q_tile)
    nq = S // tq

    scale = 1.0 / math.sqrt(dh)
    # Fold 1/sqrt(dh) into the Q projection; fuse K/V weights; bf16 matmul weights.
    wq = (params["wq"] * scale).astype(bf16)
    bq = params["bq"] * scale                                              # f32
    wkv = jnp.concatenate([params["wk"], params["wv"]], axis=1).astype(bf16)
    bkv = jnp.concatenate([params["bk"], params["bv"]], axis=1)            # f32
    wo = params["wo"].astype(bf16)
    w1 = params["w1"].astype(bf16)
    w2 = params["w2"].astype(bf16)
    x_bf = x.astype(bf16)                                                  # K/V projection input

    kernel = functools.partial(bert_layer_kernel, n_heads=n_heads, eps=eps, exp_bf16=exp_bf16)

    # Cost estimate (helps XLA schedule neighbouring work around the kernel).
    flops = (2 * B * S * D * D            # Q projection
             + 4 * B * S * D * D          # fused K/V projection
             + 4 * B * S * S * D          # QK^T and PV
             + 2 * B * S * D * D          # output projection
             + 4 * B * S * D * F)         # FFN dense1 + dense2
    transcendentals = B * n_heads * S * S + B * n_heads * S + 4 * B * S
    weight_bytes = 2 * int(wq.size + wkv.size + wo.size + w1.size + w2.size)
    bias_bytes = 4 * int(bq.size + bkv.size + 6 * D + F)
    bytes_accessed = int(2 * B * S * D * 4 + B * S * D * 2 + weight_bytes + bias_bytes)

    # VMEM budget: weights (worst case double-buffered) + activation blocks + K/V cache +
    # in-kernel intermediates, clamped below this generation's physical per-core VMEM.
    block_bytes = 2 * (4 * tq * D + 2 * S * D + 4 * tq * D)        # x tile + bf16 full x + out, 2 bufs
    scratch_bytes = 2 * 2 * S * D                                  # K + V bf16 caches
    interm_bytes = 4 * (3 * n_heads * tq * S + tq * F + 6 * tq * D)
    need = 2 * weight_bytes + 2 * bias_bytes + block_bytes + scratch_bytes + interm_bytes
    cap = phys_vmem - 16 * 2**20                                   # headroom below physical VMEM
    vmem_limit = int(max(32 * 2**20, min(cap, 2 * need)))

    def run(weight_buffered):
        if weight_buffered:
            # Constant-index blocks: single-buffer to halve their resident VMEM footprint.
            def full(shape):
                return pl.BlockSpec(shape, lambda b, qi: (0,) * len(shape),
                                    pipeline_mode=pl.Buffered(1))
        else:
            def full(shape):
                return pl.BlockSpec(shape, lambda b, qi: (0,) * len(shape))

        in_specs = [
            pl.BlockSpec((1, tq, D), lambda b, qi: (b, qi, 0)),    # x: f32 query tile (residuals, Q)
            pl.BlockSpec((1, S, D), lambda b, qi: (b, 0, 0)),      # x: bf16 full sequence (K/V proj)
            full((D, D)), full((1, D)),                            # wq (scaled), bq (scaled)
            full((D, 2 * D)), full((1, 2 * D)),                    # wkv, bkv
            full((D, D)), full((1, D)),                            # wo, bo
            full((1, D)), full((1, D)),                            # ln1 gamma, beta
            full((D, F)), full((1, F)),                            # w1, b1
            full((F, D)), full((1, D)),                            # w2, b2
            full((1, D)), full((1, D)),                            # ln2 gamma, beta
        ]

        return pl.pallas_call(
            kernel,
            out_shape=jax.ShapeDtypeStruct((B, S, D), x.dtype),
            grid_spec=pltpu.PrefetchScalarGridSpec(
                num_scalar_prefetch=0,
                grid=(B, nq),
                in_specs=in_specs,
                out_specs=pl.BlockSpec((1, tq, D), lambda b, qi: (b, qi, 0)),
                scratch_shapes=[pltpu.VMEM((n_heads, dh, S), bf16),    # K cache (pre-transposed)
                                pltpu.VMEM((n_heads, S, dh), bf16)],   # V cache
            ),
            compiler_params=pltpu.CompilerParams(
                dimension_semantics=("parallel", "arbitrary"),
                vmem_limit_bytes=vmem_limit,
            ),
            cost_estimate=pl.CostEstimate(flops=flops,
                                          transcendentals=transcendentals,
                                          bytes_accessed=bytes_accessed),
        )(
            x, x_bf,
            wq, bq, wkv, bkv, wo, params["bo"],
            params["g1"], params["be1"],
            w1, params["b1"], w2, params["b2"],
            params["g2"], params["be2"],
        )

    try:
        return run(weight_buffered=True)
    except Exception:
        # TODO(synk): pl.Buffered(1) unsupported on this JAX build -> default double-buffering.
        return run(weight_buffered=False)


def bert_layer_reference(x, params, *, n_heads, eps=1e-5):
    """Pure-JAX f32 reference mirroring the PyTorch forward (dropout off, no mask)."""
    B, S, D = x.shape
    dh = D // n_heads

    def lin(t, w, b):
        return jnp.einsum("bsd,df->bsf", t, w) + b[0]

    q = lin(x, params["wq"], params["bq"]).reshape(B, S, n_heads, dh).transpose(0, 2, 1, 3)
    k = lin(x, params["wk"], params["bk"]).reshape(B, S, n_heads, dh).transpose(0, 2, 1, 3)
    v = lin(x, params["wv"], params["bv"]).reshape(B, S, n_heads, dh).transpose(0, 2, 1, 3)
    dots = jnp.einsum("bhqd,bhkd->bhqk", q, k) / math.sqrt(dh)
    lse = jax.scipy.special.logsumexp(dots, axis=-1, keepdims=True)
    p = jnp.exp(dots - lse)
    attn = jnp.einsum("bhqk,bhkd->bhqd", p, v).transpose(0, 2, 1, 3).reshape(B, S, D)
    attn_out = lin(attn, params["wo"], params["bo"])

    def ln(t, g, b):
        mu = jnp.mean(t, axis=-1, keepdims=True)
        var = jnp.mean((t - mu) ** 2, axis=-1, keepdims=True)
        return (t - mu) * jax.lax.rsqrt(var + eps) * g[0] + b[0]

    y = ln(attn_out + x, params["g1"], params["be1"])
    h = jnp.maximum(lin(y, params["w1"], params["b1"]), 0.0)
    z = lin(h, params["w2"], params["b2"])
    return ln(z + y, params["g2"], params["be2"])


def make_params(key, d_feature, d_ff):
    ks = jax.random.split(key, 12)
    n = lambda k, shape: jax.random.normal(k, shape, jnp.float32) * 0.02
    return {
        "wq": n(ks[0], (d_feature, d_feature)), "bq": n(ks[1], (1, d_feature)),
        "wk": n(ks[2], (d_feature, d_feature)), "bk": n(ks[3], (1, d_feature)),
        "wv": n(ks[4], (d_feature, d_feature)), "bv": n(ks[5], (1, d_feature)),
        "wo": n(ks[6], (d_feature, d_feature)), "bo": n(ks[7], (1, d_feature)),
        "g1": jnp.ones((1, d_feature), jnp.float32),
        "be1": jnp.zeros((1, d_feature), jnp.float32),
        "w1": n(ks[8], (d_feature, d_ff)), "b1": n(ks[9], (1, d_ff)),
        "w2": n(ks[10], (d_ff, d_feature)), "b2": n(ks[11], (1, d_feature)),
        "g2": jnp.ones((1, d_feature), jnp.float32),
        "be2": jnp.zeros((1, d_feature), jnp.float32),
    }


if __name__ == "__main__":
    batch, seq, d_feature, n_heads, d_ff = 2, 8, 32, 4, 64
    # dropout_prob = 0.0 -> dropout is identity (matches the kernel).

    key = jax.random.PRNGKey(0)
    k_x, k_p = jax.random.split(key)
    x = jax.random.normal(k_x, (batch, seq, d_feature), jnp.float32)
    params = make_params(k_p, d_feature, d_ff)

    out = bert_layer(x, params, n_heads=n_heads)
    out = jax.block_until_ready(out)

    ref = bert_layer_reference(x, params, n_heads=n_heads)
    assert out.shape == (batch, seq, d_feature)
    assert jnp.allclose(out, ref, atol=5e-2, rtol=5e-2), "mismatch vs JAX reference"

    print("KERNEL_OK")
</pallas_src>

<mosaic_0001>
module attributes {stable_mosaic.version = 11 : i64} {
  func.func @bert_layer_kernel(%arg0: i32, %arg1: i32, %arg2: memref<1x8x32xf32, #tpu.memory_space<vmem>>, %arg3: memref<1x8x32xbf16, #tpu.memory_space<vmem>>, %arg4: memref<32x32xbf16, #tpu.memory_space<vmem>>, %arg5: memref<1x32xf32, #tpu.memory_space<vmem>>, %arg6: memref<32x64xbf16, #tpu.memory_space<vmem>>, %arg7: memref<1x64xf32, #tpu.memory_space<vmem>>, %arg8: memref<32x32xbf16, #tpu.memory_space<vmem>>, %arg9: memref<1x32xf32, #tpu.memory_space<vmem>>, %arg10: memref<1x32xf32, #tpu.memory_space<vmem>>, %arg11: memref<1x32xf32, #tpu.memory_space<vmem>>, %arg12: memref<32x64xbf16, #tpu.memory_space<vmem>>, %arg13: memref<1x64xf32, #tpu.memory_space<vmem>>, %arg14: memref<64x32xbf16, #tpu.memory_space<vmem>>, %arg15: memref<1x32xf32, #tpu.memory_space<vmem>>, %arg16: memref<1x32xf32, #tpu.memory_space<vmem>>, %arg17: memref<1x32xf32, #tpu.memory_space<vmem>>, %arg18: memref<1x8x32xf32, #tpu.memory_space<vmem>>, %arg19: memref<4x8x8xbf16, #tpu.memory_space<vmem>>, %arg20: memref<4x8x8xbf16, #tpu.memory_space<vmem>>) attributes {dimension_semantics = [#tpu.dimension_semantics<parallel>, #tpu.dimension_semantics<arbitrary>], iteration_bounds = array<i64: 2, 1>, scalar_prefetch = 0 : i64, scratch_operands = 2 : i64, tpu.core_type = #tpu.core_type<tc>, window_params = [{transform_indices = @transform_0, window_bounds = array<i64: 1, 8, 32>}, {transform_indices = @transform_1, window_bounds = array<i64: 1, 8, 32>}, {pipeline_mode = #tpu.pipeline_mode<synchronous>, transform_indices = @transform_2, window_bounds = array<i64: 32, 32>}, {pipeline_mode = #tpu.pipeline_mode<synchronous>, transform_indices = @transform_3, window_bounds = array<i64: 1, 32>}, {pipeline_mode = #tpu.pipeline_mode<synchronous>, transform_indices = @transform_4, window_bounds = array<i64: 32, 64>}, {pipeline_mode = #tpu.pipeline_mode<synchronous>, transform_indices = @transform_5, window_bounds = array<i64: 1, 64>}, {pipeline_mode = #tpu.pipeline_mode<synchronous>, transform_indices = @transform_6, window_bounds = array<i64: 32, 32>}, {pipeline_mode = #tpu.pipeline_mode<synchronous>, transform_indices = @transform_7, window_bounds = array<i64: 1, 32>}, {pipeline_mode = #tpu.pipeline_mode<synchronous>, transform_indices = @transform_8, window_bounds = array<i64: 1, 32>}, {pipeline_mode = #tpu.pipeline_mode<synchronous>, transform_indices = @transform_9, window_bounds = array<i64: 1, 32>}, {pipeline_mode = #tpu.pipeline_mode<synchronous>, transform_indices = @transform_10, window_bounds = array<i64: 32, 64>}, {pipeline_mode = #tpu.pipeline_mode<synchronous>, transform_indices = @transform_11, window_bounds = array<i64: 1, 64>}, {pipeline_mode = #tpu.pipeline_mode<synchronous>, transform_indices = @transform_12, window_bounds = array<i64: 64, 32>}, {pipeline_mode = #tpu.pipeline_mode<synchronous>, transform_indices = @transform_13, window_bounds = array<i64: 1, 32>}, {pipeline_mode = #tpu.pipeline_mode<synchronous>, transform_indices = @transform_14, window_bounds = array<i64: 1, 32>}, {pipeline_mode = #tpu.pipeline_mode<synchronous>, transform_indices = @transform_15, window_bounds = array<i64: 1, 32>}, {transform_indices = @transform_16, window_bounds = array<i64: 1, 8, 32>}]} {
    %c0_i32 = arith.constant 0 : i32
    %0 = arith.cmpi eq, %arg1, %c0_i32 : i32
    %1 = arith.extui %0 : i1 to i32
    %c0_i32_0 = arith.constant 0 : i32
    %2 = arith.cmpi ne, %1, %c0_i32_0 : i32
    scf.if %2 {
      %c0_54 = arith.constant 0 : index
      %c0_55 = arith.constant 0 : index
      %c0_56 = arith.constant 0 : index
      %120 = vector.load %arg3[%c0_54, %c0_55, %c0_56] : memref<1x8x32xbf16, #tpu.memory_space<vmem>>, vector<1x8x32xbf16>
      %121 = vector.shape_cast %120 : vector<1x8x32xbf16> to vector<8x32xbf16>
      %c0_57 = arith.constant 0 : index
      %c0_58 = arith.constant 0 : index
      %122 = vector.load %arg6[%c0_57, %c0_58] : memref<32x64xbf16, #tpu.memory_space<vmem>>, vector<32x64xbf16>
      %cst_59 = arith.constant dense<0.000000e+00> : vector<8x64xf32>
      %123 = tpu.matmul %121, %122, %cst_59 {dimension_numbers = #tpu.dot_dimension_numbers<[1], [0], [0], [1], [0, 0, 1, 1], [], []>} : vector<8x32xbf16>, vector<32x64xbf16>, vector<8x64xf32> -> vector<8x64xf32>
      %c0_60 = arith.constant 0 : index
      %c0_61 = arith.constant 0 : index
      %124 = vector.load %arg7[%c0_60, %c0_61] : memref<1x64xf32, #tpu.memory_space<vmem>>, vector<1x64xf32>
      %125 = vector.shape_cast %124 : vector<1x64xf32> to vector<64xf32>
      %126 = vector.shape_cast %125 : vector<64xf32> to vector<1x64xf32>
      %127 = vector.broadcast %126 : vector<1x64xf32> to vector<8x64xf32>
      %128 = arith.addf %123, %127 : vector<8x64xf32>
      %129 = vector.extract_strided_slice %128 {offsets = [0, 0], sizes = [8, 32], strides = [1, 1]} : vector<8x64xf32> to vector<8x32xf32>
      %130 = vector.shape_cast %129 : vector<8x32xf32> to vector<8x4x8xf32>
      %131 = vector.extract_strided_slice %128 {offsets = [0, 32], sizes = [8, 32], strides = [1, 1]} : vector<8x64xf32> to vector<8x32xf32>
      %132 = vector.shape_cast %131 : vector<8x32xf32> to vector<8x4x8xf32>
      %133 = tpu.transpose %130, [1, 0, 2] : vector<8x4x8xf32> -> vector<4x8x8xf32>
      %134 = tpu.transpose %133, [0, 2, 1] : vector<4x8x8xf32> -> vector<4x8x8xf32>
      %135 = arith.truncf %134 : vector<4x8x8xf32> to vector<4x8x8xbf16>
      %c0_62 = arith.constant 0 : index
      %c0_63 = arith.constant 0 : index
      %c0_64 = arith.constant 0 : index
      %136 = vector.load %arg19[%c0_62, %c0_63, %c0_64] : memref<4x8x8xbf16, #tpu.memory_space<vmem>>, vector<4x8x8xbf16>
      tpu.vector_store %arg19[%c0_62, %c0_63, %c0_64], %135 {strides = array<i32>} : memref<4x8x8xbf16, #tpu.memory_space<vmem>>, vector<4x8x8xbf16>,
      %137 = tpu.transpose %132, [1, 0, 2] : vector<8x4x8xf32> -> vector<4x8x8xf32>
      %138 = arith.truncf %137 : vector<4x8x8xf32> to vector<4x8x8xbf16>
      %c0_65 = arith.constant 0 : index
      %c0_66 = arith.constant 0 : index
      %c0_67 = arith.constant 0 : index
      %139 = vector.load %arg20[%c0_65, %c0_66, %c0_67] : memref<4x8x8xbf16, #tpu.memory_space<vmem>>, vector<4x8x8xbf16>
      tpu.vector_store %arg20[%c0_65, %c0_66, %c0_67], %138 {strides = array<i32>} : memref<4x8x8xbf16, #tpu.memory_space<vmem>>, vector<4x8x8xbf16>,
    } else {
    }
    %c0 = arith.constant 0 : index
    %c0_1 = arith.constant 0 : index
    %c0_2 = arith.constant 0 : index
    %3 = vector.load %arg2[%c0, %c0_1, %c0_2] : memref<1x8x32xf32, #tpu.memory_space<vmem>>, vector<1x8x32xf32>
    %4 = vector.shape_cast %3 : vector<1x8x32xf32> to vector<8x32xf32>
    %5 = arith.truncf %4 : vector<8x32xf32> to vector<8x32xbf16>
    %c0_3 = arith.constant 0 : index
    %c0_4 = arith.constant 0 : index
    %6 = vector.load %arg4[%c0_3, %c0_4] : memref<32x32xbf16, #tpu.memory_space<vmem>>, vector<32x32xbf16>
    %cst = arith.constant dense<0.000000e+00> : vector<8x32xf32>
    %7 = tpu.matmul %5, %6, %cst {dimension_numbers = #tpu.dot_dimension_numbers<[1], [0], [0], [1], [0, 0, 1, 1], [], []>} : vector<8x32xbf16>, vector<32x32xbf16>, vector<8x32xf32> -> vector<8x32xf32>
    %c0_5 = arith.constant 0 : index
    %c0_6 = arith.constant 0 : index
    %8 = vector.load %arg5[%c0_5, %c0_6] : memref<1x32xf32, #tpu.memory_space<vmem>>, vector<1x32xf32>
    %9 = vector.shape_cast %8 : vector<1x32xf32> to vector<32xf32>
    %10 = vector.shape_cast %9 : vector<32xf32> to vector<1x32xf32>
    %11 = vector.broadcast %10 : vector<1x32xf32> to vector<8x32xf32>
    %12 = arith.addf %7, %11 : vector<8x32xf32>
    %13 = vector.shape_cast %12 : vector<8x32xf32> to vector<8x4x8xf32>
    %14 = tpu.transpose %13, [1, 0, 2] : vector<8x4x8xf32> -> vector<4x8x8xf32>
    %15 = arith.truncf %14 : vector<4x8x8xf32> to vector<4x8x8xbf16>
    %c0_7 = arith.constant 0 : index
    %c0_8 = arith.constant 0 : index
    %c0_9 = arith.constant 0 : index
    %16 = vector.load %arg19[%c0_7, %c0_8, %c0_9] : memref<4x8x8xbf16, #tpu.memory_space<vmem>>, vector<4x8x8xbf16>
    "tpu.trace_start"() <{level = 10 : i32, message = "hqd,hdk->hqk"}> : () -> ()
    %cst_10 = arith.constant dense<0.000000e+00> : vector<4x8x8xf32>
    %17 = tpu.matmul %15, %16, %cst_10 {dimension_numbers = #tpu.dot_dimension_numbers<[2], [1], [1], [2], [0, 0, 0, 1, 1, 2], [0], [0]>} : vector<4x8x8xbf16>, vector<4x8x8xbf16>, vector<4x8x8xf32> -> vector<4x8x8xf32>
    "tpu.trace_stop"() : () -> ()
    %cst_11 = arith.constant dense<0xFF800000> : vector<4x8xf32>
    %18 = vector.multi_reduction <maximumf>, %17, %cst_11 [2] : vector<4x8x8xf32> to vector<4x8xf32>
    %19 = vector.shape_cast %18 : vector<4x8xf32> to vector<4x8x1xf32>
    %20 = vector.broadcast %19 : vector<4x8x1xf32> to vector<4x8x8xf32>
    %21 = arith.subf %17, %20 : vector<4x8x8xf32>
    %22 = math.exp %21 : vector<4x8x8xf32>
    %cst_12 = arith.constant dense<0.000000e+00> : vector<4x8xf32>
    %23 = vector.multi_reduction <add>, %22, %cst_12 [2] : vector<4x8x8xf32> to vector<4x8xf32>
    %24 = vector.shape_cast %23 : vector<4x8xf32> to vector<4x8x1xf32>
    %25 = arith.truncf %22 : vector<4x8x8xf32> to vector<4x8x8xbf16>
    %c0_13 = arith.constant 0 : index
    %c0_14 = arith.constant 0 : index
    %c0_15 = arith.constant 0 : index
    %26 = vector.load %arg20[%c0_13, %c0_14, %c0_15] : memref<4x8x8xbf16, #tpu.memory_space<vmem>>, vector<4x8x8xbf16>
    "tpu.trace_start"() <{level = 10 : i32, message = "hqk,hkd->hqd"}> : () -> ()
    %cst_16 = arith.constant dense<0.000000e+00> : vector<4x8x8xf32>
    %27 = tpu.matmul %25, %26, %cst_16 {dimension_numbers = #tpu.dot_dimension_numbers<[2], [1], [1], [2], [0, 0, 0, 1, 1, 2], [0], [0]>} : vector<4x8x8xbf16>, vector<4x8x8xbf16>, vector<4x8x8xf32> -> vector<4x8x8xf32>
    "tpu.trace_stop"() : () -> ()
    %28 = tpu.reciprocal %24 {approx = true} : vector<4x8x1xf32> -> vector<4x8x1xf32>
    %29 = vector.broadcast %28 : vector<4x8x1xf32> to vector<4x8x8xf32>
    %30 = arith.mulf %27, %29 : vector<4x8x8xf32>
    %31 = tpu.transpose %30, [1, 0, 2] : vector<4x8x8xf32> -> vector<8x4x8xf32>
    %32 = vector.shape_cast %31 : vector<8x4x8xf32> to vector<8x32xf32>
    %33 = arith.truncf %32 : vector<8x32xf32> to vector<8x32xbf16>
    %c0_17 = arith.constant 0 : index
    %c0_18 = arith.constant 0 : index
    %34 = vector.load %arg8[%c0_17, %c0_18] : memref<32x32xbf16, #tpu.memory_space<vmem>>, vector<32x32xbf16>
    %cst_19 = arith.constant dense<0.000000e+00> : vector<8x32xf32>
    %35 = tpu.matmul %33, %34, %cst_19 {dimension_numbers = #tpu.dot_dimension_numbers<[1], [0], [0], [1], [0, 0, 1, 1], [], []>} : vector<8x32xbf16>, vector<32x32xbf16>, vector<8x32xf32> -> vector<8x32xf32>
    %c0_20 = arith.constant 0 : index
    %c0_21 = arith.constant 0 : index
    %36 = vector.load %arg9[%c0_20, %c0_21] : memref<1x32xf32, #tpu.memory_space<vmem>>, vector<1x32xf32>
    %37 = vector.shape_cast %36 : vector<1x32xf32> to vector<32xf32>
    %38 = vector.shape_cast %37 : vector<32xf32> to vector<1x32xf32>
    %39 = vector.broadcast %38 : vector<1x32xf32> to vector<8x32xf32>
    %40 = arith.addf %35, %39 : vector<8x32xf32>
    %41 = arith.addf %40, %4 : vector<8x32xf32>
    %cst_22 = arith.constant dense<0.000000e+00> : vector<8xf32>
    %42 = vector.multi_reduction <add>, %41, %cst_22 [1] : vector<8x32xf32> to vector<8xf32>
    %43 = vector.shape_cast %42 : vector<8xf32> to vector<8x1xf32>
    %cst_23 = arith.constant 3.200000e+01 : f32
    %44 = vector.broadcast %cst_23 : f32 to vector<8x1xf32>
    %45 = arith.divf %43, %44 : vector<8x1xf32>
    %46 = vector.broadcast %45 : vector<8x1xf32> to vector<8x32xf32>
    %47 = arith.subf %41, %46 : vector<8x32xf32>
    %48 = arith.mulf %47, %47 : vector<8x32xf32>
    %cst_24 = arith.constant dense<0.000000e+00> : vector<8xf32>
    %49 = vector.multi_reduction <add>, %48, %cst_24 [1] : vector<8x32xf32> to vector<8xf32>
    %50 = vector.shape_cast %49 : vector<8xf32> to vector<8x1xf32>
    %cst_25 = arith.constant 3.200000e+01 : f32
    %51 = vector.broadcast %cst_25 : f32 to vector<8x1xf32>
    %52 = arith.divf %50, %51 : vector<8x1xf32>
    %53 = vector.broadcast %45 : vector<8x1xf32> to vector<8x32xf32>
    %54 = arith.subf %41, %53 : vector<8x32xf32>
    %cst_26 = arith.constant 9.99999974E-6 : f32
    %55 = vector.broadcast %cst_26 : f32 to vector<8x1xf32>
    %56 = arith.addf %52, %55 : vector<8x1xf32>
    %57 = math.rsqrt %56 : vector<8x1xf32>
    %58 = vector.broadcast %57 : vector<8x1xf32> to vector<8x32xf32>
    %59 = arith.mulf %54, %58 : vector<8x32xf32>
    %c0_27 = arith.constant 0 : index
    %c0_28 = arith.constant 0 : index
    %60 = vector.load %arg10[%c0_27, %c0_28] : memref<1x32xf32, #tpu.memory_space<vmem>>, vector<1x32xf32>
    %61 = vector.shape_cast %60 : vector<1x32xf32> to vector<32xf32>
    %62 = vector.shape_cast %61 : vector<32xf32> to vector<1x32xf32>
    %63 = vector.broadcast %62 : vector<1x32xf32> to vector<8x32xf32>
    %64 = arith.mulf %59, %63 : vector<8x32xf32>
    %c0_29 = arith.constant 0 : index
    %c0_30 = arith.constant 0 : index
    %65 = vector.load %arg11[%c0_29, %c0_30] : memref<1x32xf32, #tpu.memory_space<vmem>>, vector<1x32xf32>
    %66 = vector.shape_cast %65 : vector<1x32xf32> to vector<32xf32>
    %67 = vector.shape_cast %66 : vector<32xf32> to vector<1x32xf32>
    %68 = vector.broadcast %67 : vector<1x32xf32> to vector<8x32xf32>
    %69 = arith.addf %64, %68 : vector<8x32xf32>
    %70 = arith.truncf %69 : vector<8x32xf32> to vector<8x32xbf16>
    %c0_31 = arith.constant 0 : index
    %c0_32 = arith.constant 0 : index
    %71 = vector.load %arg12[%c0_31, %c0_32] : memref<32x64xbf16, #tpu.memory_space<vmem>>, vector<32x64xbf16>
    %cst_33 = arith.constant dense<0.000000e+00> : vector<8x64xf32>
    %72 = tpu.matmul %70, %71, %cst_33 {dimension_numbers = #tpu.dot_dimension_numbers<[1], [0], [0], [1], [0, 0, 1, 1], [], []>} : vector<8x32xbf16>, vector<32x64xbf16>, vector<8x64xf32> -> vector<8x64xf32>
    %c0_34 = arith.constant 0 : index
    %c0_35 = arith.constant 0 : index
    %73 = vector.load %arg13[%c0_34, %c0_35] : memref<1x64xf32, #tpu.memory_space<vmem>>, vector<1x64xf32>
    %74 = vector.shape_cast %73 : vector<1x64xf32> to vector<64xf32>
    %75 = vector.shape_cast %74 : vector<64xf32> to vector<1x64xf32>
    %76 = vector.broadcast %75 : vector<1x64xf32> to vector<8x64xf32>
    %77 = arith.addf %72, %76 : vector<8x64xf32>
    %cst_36 = arith.constant 0.000000e+00 : f32
    %78 = vector.broadcast %cst_36 : f32 to vector<8x64xf32>
    %79 = arith.maximumf %77, %78 : vector<8x64xf32>
    %80 = arith.truncf %79 : vector<8x64xf32> to vector<8x64xbf16>
    %c0_37 = arith.constant 0 : index
    %c0_38 = arith.constant 0 : index
    %81 = vector.load %arg14[%c0_37, %c0_38] : memref<64x32xbf16, #tpu.memory_space<vmem>>, vector<64x32xbf16>
    %cst_39 = arith.constant dense<0.000000e+00> : vector<8x32xf32>
    %82 = tpu.matmul %80, %81, %cst_39 {dimension_numbers = #tpu.dot_dimension_numbers<[1], [0], [0], [1], [0, 0, 1, 1], [], []>} : vector<8x64xbf16>, vector<64x32xbf16>, vector<8x32xf32> -> vector<8x32xf32>
    %c0_40 = arith.constant 0 : index
    %c0_41 = arith.constant 0 : index
    %83 = vector.load %arg15[%c0_40, %c0_41] : memref<1x32xf32, #tpu.memory_space<vmem>>, vector<1x32xf32>
    %84 = vector.shape_cast %83 : vector<1x32xf32> to vector<32xf32>
    %85 = vector.shape_cast %84 : vector<32xf32> to vector<1x32xf32>
    %86 = vector.broadcast %85 : vector<1x32xf32> to vector<8x32xf32>
    %87 = arith.addf %82, %86 : vector<8x32xf32>
    %88 = arith.addf %87, %69 : vector<8x32xf32>
    %cst_42 = arith.constant dense<0.000000e+00> : vector<8xf32>
    %89 = vector.multi_reduction <add>, %88, %cst_42 [1] : vector<8x32xf32> to vector<8xf32>
    %90 = vector.shape_cast %89 : vector<8xf32> to vector<8x1xf32>
    %cst_43 = arith.constant 3.200000e+01 : f32
    %91 = vector.broadcast %cst_43 : f32 to vector<8x1xf32>
    %92 = arith.divf %90, %91 : vector<8x1xf32>
    %93 = vector.broadcast %92 : vector<8x1xf32> to vector<8x32xf32>
    %94 = arith.subf %88, %93 : vector<8x32xf32>
    %95 = arith.mulf %94, %94 : vector<8x32xf32>
    %cst_44 = arith.constant dense<0.000000e+00> : vector<8xf32>
    %96 = vector.multi_reduction <add>, %95, %cst_44 [1] : vector<8x32xf32> to vector<8xf32>
    %97 = vector.shape_cast %96 : vector<8xf32> to vector<8x1xf32>
    %cst_45 = arith.constant 3.200000e+01 : f32
    %98 = vector.broadcast %cst_45 : f32 to vector<8x1xf32>
    %99 = arith.divf %97, %98 : vector<8x1xf32>
    %100 = vector.broadcast %92 : vector<8x1xf32> to vector<8x32xf32>
    %101 = arith.subf %88, %100 : vector<8x32xf32>
    %cst_46 = arith.constant 9.99999974E-6 : f32
    %102 = vector.broadcast %cst_46 : f32 to vector<8x1xf32>
    %103 = arith.addf %99, %102 : vector<8x1xf32>
    %104 = math.rsqrt %103 : vector<8x1xf32>
    %105 = vector.broadcast %104 : vector<8x1xf32> to vector<8x32xf32>
    %106 = arith.mulf %101, %105 : vector<8x32xf32>
    %c0_47 = arith.constant 0 : index
    %c0_48 = arith.constant 0 : index
    %107 = vector.load %arg16[%c0_47, %c0_48] : memref<1x32xf32, #tpu.memory_space<vmem>>, vector<1x32xf32>
    %108 = vector.shape_cast %107 : vector<1x32xf32> to vector<32xf32>
    %109 = vector.shape_cast %108 : vector<32xf32> to vector<1x32xf32>
    %110 = vector.broadcast %109 : vector<1x32xf32> to vector<8x32xf32>
    %111 = arith.mulf %106, %110 : vector<8x32xf32>
    %c0_49 = arith.constant 0 : index
    %c0_50 = arith.constant 0 : index
    %112 = vector.load %arg17[%c0_49, %c0_50] : memref<1x32xf32, #tpu.memory_space<vmem>>, vector<1x32xf32>
    %113 = vector.shape_cast %112 : vector<1x32xf32> to vector<32xf32>
    %114 = vector.shape_cast %113 : vector<32xf32> to vector<1x32xf32>
    %115 = vector.broadcast %114 : vector<1x32xf32> to vector<8x32xf32>
    %116 = arith.addf %111, %115 : vector<8x32xf32>
    %c0_51 = arith.constant 0 : index
    %c0_52 = arith.constant 0 : index
    %c0_53 = arith.constant 0 : index
    %117 = vector.load %arg18[%c0_51, %c0_52, %c0_53] : memref<1x8x32xf32, #tpu.memory_space<vmem>>, vector<1x8x32xf32>
    %118 = vector.shape_cast %117 : vector<1x8x32xf32> to vector<8x32xf32>
    %119 = vector.shape_cast %116 : vector<8x32xf32> to vector<1x8x32xf32>
    tpu.vector_store %arg18[%c0_51, %c0_52, %c0_53], %119 {strides = array<i32>} : memref<1x8x32xf32, #tpu.memory_space<vmem>>, vector<1x8x32xf32>,
    return
  }
  func.func @transform_0(%arg0: i32, %arg1: i32) -> (i32, i32, i32) {
    %c0_i32 = arith.constant 0 : i32
    %c0_i32_0 = arith.constant 0 : i32
    return %arg0, %arg1, %c0_i32 : i32, i32, i32
  }
  func.func @transform_1(%arg0: i32, %arg1: i32) -> (i32, i32, i32) {
    %c0_i32 = arith.constant 0 : i32
    %c0_i32_0 = arith.constant 0 : i32
    %c0_i32_1 = arith.constant 0 : i32
    return %arg0, %c0_i32, %c0_i32_0 : i32, i32, i32
  }
  func.func @transform_2(%arg0: i32, %arg1: i32) -> (i32, i32) {
    %c0_i32 = arith.constant 0 : i32
    %c0_i32_0 = arith.constant 0 : i32
    %c0_i32_1 = arith.constant 0 : i32
    return %c0_i32, %c0_i32_0 : i32, i32
  }
  func.func @transform_3(%arg0: i32, %arg1: i32) -> (i32, i32) {
    %c0_i32 = arith.constant 0 : i32
    %c0_i32_0 = arith.constant 0 : i32
    %c0_i32_1 = arith.constant 0 : i32
    return %c0_i32, %c0_i32_0 : i32, i32
  }
  func.func @transform_4(%arg0: i32, %arg1: i32) -> (i32, i32) {
    %c0_i32 = arith.constant 0 : i32
    %c0_i32_0 = arith.constant 0 : i32
    %c0_i32_1 = arith.constant 0 : i32
    return %c0_i32, %c0_i32_0 : i32, i32
  }
  func.func @transform_5(%arg0: i32, %arg1: i32) -> (i32, i32) {
    %c0_i32 = arith.constant 0 : i32
    %c0_i32_0 = arith.constant 0 : i32
    %c0_i32_1 = arith.constant 0 : i32
    return %c0_i32, %c0_i32_0 : i32, i32
  }
  func.func @transform_6(%arg0: i32, %arg1: i32) -> (i32, i32) {
    %c0_i32 = arith.constant 0 : i32
    %c0_i32_0 = arith.constant 0 : i32
    %c0_i32_1 = arith.constant 0 : i32
    return %c0_i32, %c0_i32_0 : i32, i32
  }
  func.func @transform_7(%arg0: i32, %arg1: i32) -> (i32, i32) {
    %c0_i32 = arith.constant 0 : i32
    %c0_i32_0 = arith.constant 0 : i32
    %c0_i32_1 = arith.constant 0 : i32
    return %c0_i32, %c0_i32_0 : i32, i32
  }
  func.func @transform_8(%arg0: i32, %arg1: i32) -> (i32, i32) {
    %c0_i32 = arith.constant 0 : i32
    %c0_i32_0 = arith.constant 0 : i32
    %c0_i32_1 = arith.constant 0 : i32
    return %c0_i32, %c0_i32_0 : i32, i32
  }
  func.func @transform_9(%arg0: i32, %arg1: i32) -> (i32, i32) {
    %c0_i32 = arith.constant 0 : i32
    %c0_i32_0 = arith.constant 0 : i32
    %c0_i32_1 = arith.constant 0 : i32
    return %c0_i32, %c0_i32_0 : i32, i32
  }
  func.func @transform_10(%arg0: i32, %arg1: i32) -> (i32, i32) {
    %c0_i32 = arith.constant 0 : i32
    %c0_i32_0 = arith.constant 0 : i32
    %c0_i32_1 = arith.constant 0 : i32
    return %c0_i32, %c0_i32_0 : i32, i32
  }
  func.func @transform_11(%arg0: i32, %arg1: i32) -> (i32, i32) {
    %c0_i32 = arith.constant 0 : i32
    %c0_i32_0 = arith.constant 0 : i32
    %c0_i32_1 = arith.constant 0 : i32
    return %c0_i32, %c0_i32_0 : i32, i32
  }
  func.func @transform_12(%arg0: i32, %arg1: i32) -> (i32, i32) {
    %c0_i32 = arith.constant 0 : i32
    %c0_i32_0 = arith.constant 0 : i32
    %c0_i32_1 = arith.constant 0 : i32
    return %c0_i32, %c0_i32_0 : i32, i32
  }
  func.func @transform_13(%arg0: i32, %arg1: i32) -> (i32, i32) {
    %c0_i32 = arith.constant 0 : i32
    %c0_i32_0 = arith.constant 0 : i32
    %c0_i32_1 = arith.constant 0 : i32
    return %c0_i32, %c0_i32_0 : i32, i32
  }
  func.func @transform_14(%arg0: i32, %arg1: i32) -> (i32, i32) {
    %c0_i32 = arith.constant 0 : i32
    %c0_i32_0 = arith.constant 0 : i32
    %c0_i32_1 = arith.constant 0 : i32
    return %c0_i32, %c0_i32_0 : i32, i32
  }
  func.func @transform_15(%arg0: i32, %arg1: i32) -> (i32, i32) {
    %c0_i32 = arith.constant 0 : i32
    %c0_i32_0 = arith.constant 0 : i32
    %c0_i32_1 = arith.constant 0 : i32
    return %c0_i32, %c0_i32_0 : i32, i32
  }
  func.func @transform_16(%arg0: i32, %arg1: i32) -> (i32, i32, i32) {
    %c0_i32 = arith.constant 0 : i32
    %c0_i32_0 = arith.constant 0 : i32
    return %arg0, %arg1, %c0_i32 : i32, i32, i32
  }
}

module attributes {stable_mosaic.version = 11 : i64} {
  func.func @bert_layer_kernel(%arg0: i32, %arg1: i32, %arg2: memref<1x8x32xf32, #tpu.memory_space<vmem>>, %arg3: memref<1x8x32xbf16, #tpu.memory_space<vmem>>, %arg4: memref<32x32xbf16, #tpu.memory_space<vmem>>, %arg5: memref<1x32xf32, #tpu.memory_space<vmem>>, %arg6: memref<32x64xbf16, #tpu.memory_space<vmem>>, %arg7: memref<1x64xf32, #tpu.memory_space<vmem>>, %arg8: memref<32x32xbf16, #tpu.memory_space<vmem>>, %arg9: memref<1x32xf32, #tpu.memory_space<vmem>>, %arg10: memref<1x32xf32, #tpu.memory_space<vmem>>, %arg11: memref<1x32xf32, #tpu.memory_space<vmem>>, %arg12: memref<32x64xbf16, #tpu.memory_space<vmem>>, %arg13: memref<1x64xf32, #tpu.memory_space<vmem>>, %arg14: memref<64x32xbf16, #tpu.memory_space<vmem>>, %arg15: memref<1x32xf32, #tpu.memory_space<vmem>>, %arg16: memref<1x32xf32, #tpu.memory_space<vmem>>, %arg17: memref<1x32xf32, #tpu.memory_space<vmem>>, %arg18: memref<1x8x32xf32, #tpu.memory_space<vmem>>, %arg19: memref<4x8x8xbf16, #tpu.memory_space<vmem>>, %arg20: memref<4x8x8xbf16, #tpu.memory_space<vmem>>) attributes {dimension_semantics = [#tpu.dimension_semantics<parallel>, #tpu.dimension_semantics<arbitrary>], iteration_bounds = array<i64: 2, 1>, scalar_prefetch = 0 : i64, scratch_operands = 2 : i64, tpu.core_type = #tpu.core_type<tc>, window_params = [{transform_indices = @transform_0, window_bounds = array<i64: 1, 8, 32>}, {transform_indices = @transform_1, window_bounds = array<i64: 1, 8, 32>}, {pipeline_mode = #tpu.pipeline_mode<synchronous>, transform_indices = @transform_2, window_bounds = array<i64: 32, 32>}, {pipeline_mode = #tpu.pipeline_mode<synchronous>, transform_indices = @transform_3, window_bounds = array<i64: 1, 32>}, {pipeline_mode = #tpu.pipeline_mode<synchronous>, transform_indices = @transform_4, window_bounds = array<i64: 32, 64>}, {pipeline_mode = #tpu.pipeline_mode<synchronous>, transform_indices = @transform_5, window_bounds = array<i64: 1, 64>}, {pipeline_mode = #tpu.pipeline_mode<synchronous>, transform_indices = @transform_6, window_bounds = array<i64: 32, 32>}, {pipeline_mode = #tpu.pipeline_mode<synchronous>, transform_indices = @transform_7, window_bounds = array<i64: 1, 32>}, {pipeline_mode = #tpu.pipeline_mode<synchronous>, transform_indices = @transform_8, window_bounds = array<i64: 1, 32>}, {pipeline_mode = #tpu.pipeline_mode<synchronous>, transform_indices = @transform_9, window_bounds = array<i64: 1, 32>}, {pipeline_mode = #tpu.pipeline_mode<synchronous>, transform_indices = @transform_10, window_bounds = array<i64: 32, 64>}, {pipeline_mode = #tpu.pipeline_mode<synchronous>, transform_indices = @transform_11, window_bounds = array<i64: 1, 64>}, {pipeline_mode = #tpu.pipeline_mode<synchronous>, transform_indices = @transform_12, window_bounds = array<i64: 64, 32>}, {pipeline_mode = #tpu.pipeline_mode<synchronous>, transform_indices = @transform_13, window_bounds = array<i64: 1, 32>}, {pipeline_mode = #tpu.pipeline_mode<synchronous>, transform_indices = @transform_14, window_bounds = array<i64: 1, 32>}, {pipeline_mode = #tpu.pipeline_mode<synchronous>, transform_indices = @transform_15, window_bounds = array<i64: 1, 32>}, {transform_indices = @transform_16, window_bounds = array<i64: 1, 8, 32>}]} {
    %c0_i32 = arith.constant 0 : i32
    %0 = arith.cmpi eq, %arg1, %c0_i32 : i32
    %1 = arith.extui %0 : i1 to i32
    %c0_i32_0 = arith.constant 0 : i32
    %2 = arith.cmpi ne, %1, %c0_i32_0 : i32
    scf.if %2 {
      %c0_54 = arith.constant 0 : index
      %c0_55 = arith.constant 0 : index
      %c0_56 = arith.constant 0 : index
      %120 = vector.load %arg3[%c0_54, %c0_55, %c0_56] : memref<1x8x32xbf16, #tpu.memory_space<vmem>>, vector<1x8x32xbf16>
      %121 = vector.shape_cast %120 : vector<1x8x32xbf16> to vector<8x32xbf16>
      %c0_57 = arith.constant 0 : index
      %c0_58 = arith.constant 0 : index
      %122 = vector.load %arg6[%c0_57, %c0_58] : memref<32x64xbf16, #tpu.memory_space<vmem>>, vector<32x64xbf16>
      %cst_59 = arith.constant dense<0.000000e+00> : vector<8x64xf32>
      %123 = tpu.matmul %121, %122, %cst_59 {dimension_numbers = #tpu.dot_dimension_numbers<[1], [0], [0], [1], [0, 0, 1, 1], [], []>} : vector<8x32xbf16>, vector<32x64xbf16>, vector<8x64xf32> -> vector<8x64xf32>
      %c0_60 = arith.constant 0 : index
      %c0_61 = arith.constant 0 : index
      %124 = vector.load %arg7[%c0_60, %c0_61] : memref<1x64xf32, #tpu.memory_space<vmem>>, vector<1x64xf32>
      %125 = vector.shape_cast %124 : vector<1x64xf32> to vector<64xf32>
      %126 = vector.shape_cast %125 : vector<64xf32> to vector<1x64xf32>
      %127 = vector.broadcast %126 : vector<1x64xf32> to vector<8x64xf32>
      %128 = arith.addf %123, %127 : vector<8x64xf32>
      %129 = vector.extract_strided_slice %128 {offsets = [0, 0], sizes = [8, 32], strides = [1, 1]} : vector<8x64xf32> to vector<8x32xf32>
      %130 = vector.shape_cast %129 : vector<8x32xf32> to vector<8x4x8xf32>
      %131 = vector.extract_strided_slice %128 {offsets = [0, 32], sizes = [8, 32], strides = [1, 1]} : vector<8x64xf32> to vector<8x32xf32>
      %132 = vector.shape_cast %131 : vector<8x32xf32> to vector<8x4x8xf32>
      %133 = tpu.transpose %130, [1, 0, 2] : vector<8x4x8xf32> -> vector<4x8x8xf32>
      %134 = tpu.transpose %133, [0, 2, 1] : vector<4x8x8xf32> -> vector<4x8x8xf32>
      %135 = arith.truncf %134 : vector<4x8x8xf32> to vector<4x8x8xbf16>
      %c0_62 = arith.constant 0 : index
      %c0_63 = arith.constant 0 : index
      %c0_64 = arith.constant 0 : index
      %136 = vector.load %arg19[%c0_62, %c0_63, %c0_64] : memref<4x8x8xbf16, #tpu.memory_space<vmem>>, vector<4x8x8xbf16>
      tpu.vector_store %arg19[%c0_62, %c0_63, %c0_64], %135 {strides = array<i32>} : memref<4x8x8xbf16, #tpu.memory_space<vmem>>, vector<4x8x8xbf16>,
      %137 = tpu.transpose %132, [1, 0, 2] : vector<8x4x8xf32> -> vector<4x8x8xf32>
      %138 = arith.truncf %137 : vector<4x8x8xf32> to vector<4x8x8xbf16>
      %c0_65 = arith.constant 0 : index
      %c0_66 = arith.constant 0 : index
      %c0_67 = arith.constant 0 : index
      %139 = vector.load %arg20[%c0_65, %c0_66, %c0_67] : memref<4x8x8xbf16, #tpu.memory_space<vmem>>, vector<4x8x8xbf16>
      tpu.vector_store %arg20[%c0_65, %c0_66, %c0_67], %138 {strides = array<i32>} : memref<4x8x8xbf16, #tpu.memory_space<vmem>>, vector<4x8x8xbf16>,
    } else {
    }
    %c0 = arith.constant 0 : index
    %c0_1 = arith.constant 0 : index
    %c0_2 = arith.constant 0 : index
    %3 = vector.load %arg2[%c0, %c0_1, %c0_2] : memref<1x8x32xf32, #tpu.memory_space<vmem>>, vector<1x8x32xf32>
    %4 = vector.shape_cast %3 : vector<1x8x32xf32> to vector<8x32xf32>
    %5 = arith.truncf %4 : vector<8x32xf32> to vector<8x32xbf16>
    %c0_3 = arith.constant 0 : index
    %c0_4 = arith.constant 0 : index
    %6 = vector.load %arg4[%c0_3, %c0_4] : memref<32x32xbf16, #tpu.memory_space<vmem>>, vector<32x32xbf16>
    %cst = arith.constant dense<0.000000e+00> : vector<8x32xf32>
    %7 = tpu.matmul %5, %6, %cst {dimension_numbers = #tpu.dot_dimension_numbers<[1], [0], [0], [1], [0, 0, 1, 1], [], []>} : vector<8x32xbf16>, vector<32x32xbf16>, vector<8x32xf32> -> vector<8x32xf32>
    %c0_5 = arith.constant 0 : index
    %c0_6 = arith.constant 0 : index
    %8 = vector.load %arg5[%c0_5, %c0_6] : memref<1x32xf32, #tpu.memory_space<vmem>>, vector<1x32xf32>
    %9 = vector.shape_cast %8 : vector<1x32xf32> to vector<32xf32>
    %10 = vector.shape_cast %9 : vector<32xf32> to vector<1x32xf32>
    %11 = vector.broadcast %10 : vector<1x32xf32> to vector<8x32xf32>
    %12 = arith.addf %7, %11 : vector<8x32xf32>
    %13 = vector.shape_cast %12 : vector<8x32xf32> to vector<8x4x8xf32>
    %14 = tpu.transpose %13, [1, 0, 2] : vector<8x4x8xf32> -> vector<4x8x8xf32>
    %15 = arith.truncf %14 : vector<4x8x8xf32> to vector<4x8x8xbf16>
    %c0_7 = arith.constant 0 : index
    %c0_8 = arith.constant 0 : index
    %c0_9 = arith.constant 0 : index
    %16 = vector.load %arg19[%c0_7, %c0_8, %c0_9] : memref<4x8x8xbf16, #tpu.memory_space<vmem>>, vector<4x8x8xbf16>
    "tpu.trace_start"() <{level = 10 : i32, message = "hqd,hdk->hqk"}> : () -> ()
    %cst_10 = arith.constant dense<0.000000e+00> : vector<4x8x8xf32>
    %17 = tpu.matmul %15, %16, %cst_10 {dimension_numbers = #tpu.dot_dimension_numbers<[2], [1], [1], [2], [0, 0, 0, 1, 1, 2], [0], [0]>} : vector<4x8x8xbf16>, vector<4x8x8xbf16>, vector<4x8x8xf32> -> vector<4x8x8xf32>
    "tpu.trace_stop"() : () -> ()
    %cst_11 = arith.constant dense<0xFF800000> : vector<4x8xf32>
    %18 = vector.multi_reduction <maximumf>, %17, %cst_11 [2] : vector<4x8x8xf32> to vector<4x8xf32>
    %19 = vector.shape_cast %18 : vector<4x8xf32> to vector<4x8x1xf32>
    %20 = vector.broadcast %19 : vector<4x8x1xf32> to vector<4x8x8xf32>
    %21 = arith.subf %17, %20 : vector<4x8x8xf32>
    %22 = math.exp %21 : vector<4x8x8xf32>
    %cst_12 = arith.constant dense<0.000000e+00> : vector<4x8xf32>
    %23 = vector.multi_reduction <add>, %22, %cst_12 [2] : vector<4x8x8xf32> to vector<4x8xf32>
    %24 = vector.shape_cast %23 : vector<4x8xf32> to vector<4x8x1xf32>
    %25 = arith.truncf %22 : vector<4x8x8xf32> to vector<4x8x8xbf16>
    %c0_13 = arith.constant 0 : index
    %c0_14 = arith.constant 0 : index
    %c0_15 = arith.constant 0 : index
    %26 = vector.load %arg20[%c0_13, %c0_14, %c0_15] : memref<4x8x8xbf16, #tpu.memory_space<vmem>>, vector<4x8x8xbf16>
    "tpu.trace_start"() <{level = 10 : i32, message = "hqk,hkd->hqd"}> : () -> ()
    %cst_16 = arith.constant dense<0.000000e+00> : vector<4x8x8xf32>
    %27 = tpu.matmul %25, %26, %cst_16 {dimension_numbers = #tpu.dot_dimension_numbers<[2], [1], [1], [2], [0, 0, 0, 1, 1, 2], [0], [0]>} : vector<4x8x8xbf16>, vector<4x8x8xbf16>, vector<4x8x8xf32> -> vector<4x8x8xf32>
    "tpu.trace_stop"() : () -> ()
    %28 = tpu.reciprocal %24 {approx = true} : vector<4x8x1xf32> -> vector<4x8x1xf32>
    %29 = vector.broadcast %28 : vector<4x8x1xf32> to vector<4x8x8xf32>
    %30 = arith.mulf %27, %29 : vector<4x8x8xf32>
    %31 = tpu.transpose %30, [1, 0, 2] : vector<4x8x8xf32> -> vector<8x4x8xf32>
    %32 = vector.shape_cast %31 : vector<8x4x8xf32> to vector<8x32xf32>
    %33 = arith.truncf %32 : vector<8x32xf32> to vector<8x32xbf16>
    %c0_17 = arith.constant 0 : index
    %c0_18 = arith.constant 0 : index
    %34 = vector.load %arg8[%c0_17, %c0_18] : memref<32x32xbf16, #tpu.memory_space<vmem>>, vector<32x32xbf16>
    %cst_19 = arith.constant dense<0.000000e+00> : vector<8x32xf32>
    %35 = tpu.matmul %33, %34, %cst_19 {dimension_numbers = #tpu.dot_dimension_numbers<[1], [0], [0], [1], [0, 0, 1, 1], [], []>} : vector<8x32xbf16>, vector<32x32xbf16>, vector<8x32xf32> -> vector<8x32xf32>
    %c0_20 = arith.constant 0 : index
    %c0_21 = arith.constant 0 : index
    %36 = vector.load %arg9[%c0_20, %c0_21] : memref<1x32xf32, #tpu.memory_space<vmem>>, vector<1x32xf32>
    %37 = vector.shape_cast %36 : vector<1x32xf32> to vector<32xf32>
    %38 = vector.shape_cast %37 : vector<32xf32> to vector<1x32xf32>
    %39 = vector.broadcast %38 : vector<1x32xf32> to vector<8x32xf32>
    %40 = arith.addf %35, %39 : vector<8x32xf32>
    %41 = arith.addf %40, %4 : vector<8x32xf32>
    %cst_22 = arith.constant dense<0.000000e+00> : vector<8xf32>
    %42 = vector.multi_reduction <add>, %41, %cst_22 [1] : vector<8x32xf32> to vector<8xf32>
    %43 = vector.shape_cast %42 : vector<8xf32> to vector<8x1xf32>
    %cst_23 = arith.constant 3.200000e+01 : f32
    %44 = vector.broadcast %cst_23 : f32 to vector<8x1xf32>
    %45 = arith.divf %43, %44 : vector<8x1xf32>
    %46 = vector.broadcast %45 : vector<8x1xf32> to vector<8x32xf32>
    %47 = arith.subf %41, %46 : vector<8x32xf32>
    %48 = arith.mulf %47, %47 : vector<8x32xf32>
    %cst_24 = arith.constant dense<0.000000e+00> : vector<8xf32>
    %49 = vector.multi_reduction <add>, %48, %cst_24 [1] : vector<8x32xf32> to vector<8xf32>
    %50 = vector.shape_cast %49 : vector<8xf32> to vector<8x1xf32>
    %cst_25 = arith.constant 3.200000e+01 : f32
    %51 = vector.broadcast %cst_25 : f32 to vector<8x1xf32>
    %52 = arith.divf %50, %51 : vector<8x1xf32>
    %53 = vector.broadcast %45 : vector<8x1xf32> to vector<8x32xf32>
    %54 = arith.subf %41, %53 : vector<8x32xf32>
    %cst_26 = arith.constant 9.99999974E-6 : f32
    %55 = vector.broadcast %cst_26 : f32 to vector<8x1xf32>
    %56 = arith.addf %52, %55 : vector<8x1xf32>
    %57 = math.rsqrt %56 : vector<8x1xf32>
    %58 = vector.broadcast %57 : vector<8x1xf32> to vector<8x32xf32>
    %59 = arith.mulf %54, %58 : vector<8x32xf32>
    %c0_27 = arith.constant 0 : index
    %c0_28 = arith.constant 0 : index
    %60 = vector.load %arg10[%c0_27, %c0_28] : memref<1x32xf32, #tpu.memory_space<vmem>>, vector<1x32xf32>
    %61 = vector.shape_cast %60 : vector<1x32xf32> to vector<32xf32>
    %62 = vector.shape_cast %61 : vector<32xf32> to vector<1x32xf32>
    %63 = vector.broadcast %62 : vector<1x32xf32> to vector<8x32xf32>
    %64 = arith.mulf %59, %63 : vector<8x32xf32>
    %c0_29 = arith.constant 0 : index
    %c0_30 = arith.constant 0 : index
    %65 = vector.load %arg11[%c0_29, %c0_30] : memref<1x32xf32, #tpu.memory_space<vmem>>, vector<1x32xf32>
    %66 = vector.shape_cast %65 : vector<1x32xf32> to vector<32xf32>
    %67 = vector.shape_cast %66 : vector<32xf32> to vector<1x32xf32>
    %68 = vector.broadcast %67 : vector<1x32xf32> to vector<8x32xf32>
    %69 = arith.addf %64, %68 : vector<8x32xf32>
    %70 = arith.truncf %69 : vector<8x32xf32> to vector<8x32xbf16>
    %c0_31 = arith.constant 0 : index
    %c0_32 = arith.constant 0 : index
    %71 = vector.load %arg12[%c0_31, %c0_32] : memref<32x64xbf16, #tpu.memory_space<vmem>>, vector<32x64xbf16>
    %cst_33 = arith.constant dense<0.000000e+00> : vector<8x64xf32>
    %72 = tpu.matmul %70, %71, %cst_33 {dimension_numbers = #tpu.dot_dimension_numbers<[1], [0], [0], [1], [0, 0, 1, 1], [], []>} : vector<8x32xbf16>, vector<32x64xbf16>, vector<8x64xf32> -> vector<8x64xf32>
    %c0_34 = arith.constant 0 : index
    %c0_35 = arith.constant 0 : index
    %73 = vector.load %arg13[%c0_34, %c0_35] : memref<1x64xf32, #tpu.memory_space<vmem>>, vector<1x64xf32>
    %74 = vector.shape_cast %73 : vector<1x64xf32> to vector<64xf32>
    %75 = vector.shape_cast %74 : vector<64xf32> to vector<1x64xf32>
    %76 = vector.broadcast %75 : vector<1x64xf32> to vector<8x64xf32>
    %77 = arith.addf %72, %76 : vector<8x64xf32>
    %cst_36 = arith.constant 0.000000e+00 : f32
    %78 = vector.broadcast %cst_36 : f32 to vector<8x64xf32>
    %79 = arith.maximumf %77, %78 : vector<8x64xf32>
    %80 = arith.truncf %79 : vector<8x64xf32> to vector<8x64xbf16>
    %c0_37 = arith.constant 0 : index
    %c0_38 = arith.constant 0 : index
    %81 = vector.load %arg14[%c0_37, %c0_38] : memref<64x32xbf16, #tpu.memory_space<vmem>>, vector<64x32xbf16>
    %cst_39 = arith.constant dense<0.000000e+00> : vector<8x32xf32>
    %82 = tpu.matmul %80, %81, %cst_39 {dimension_numbers = #tpu.dot_dimension_numbers<[1], [0], [0], [1], [0, 0, 1, 1], [], []>} : vector<8x64xbf16>, vector<64x32xbf16>, vector<8x32xf32> -> vector<8x32xf32>
    %c0_40 = arith.constant 0 : index
    %c0_41 = arith.constant 0 : index
    %83 = vector.load %arg15[%c0_40, %c0_41] : memref<1x32xf32, #tpu.memory_space<vmem>>, vector<1x32xf32>
    %84 = vector.shape_cast %83 : vector<1x32xf32> to vector<32xf32>
    %85 = vector.shape_cast %84 : vector<32xf32> to vector<1x32xf32>
    %86 = vector.broadcast %85 : vector<1x32xf32> to vector<8x32xf32>
    %87 = arith.addf %82, %86 : vector<8x32xf32>
    %88 = arith.addf %87, %69 : vector<8x32xf32>
    %cst_42 = arith.constant dense<0.000000e+00> : vector<8xf32>
    %89 = vector.multi_reduction <add>, %88, %cst_42 [1] : vector<8x32xf32> to vector<8xf32>
    %90 = vector.shape_cast %89 : vector<8xf32> to vector<8x1xf32>
    %cst_43 = arith.constant 3.200000e+01 : f32
    %91 = vector.broadcast %cst_43 : f32 to vector<8x1xf32>
    %92 = arith.divf %90, %91 : vector<8x1xf32>
    %93 = vector.broadcast %92 : vector<8x1xf32> to vector<8x32xf32>
    %94 = arith.subf %88, %93 : vector<8x32xf32>
    %95 = arith.mulf %94, %94 : vector<8x32xf32>
    %cst_44 = arith.constant dense<0.000000e+00> : vector<8xf32>
    %96 = vector.multi_reduction <add>, %95, %cst_44 [1] : vector<8x32xf32> to vector<8xf32>
    %97 = vector.shape_cast %96 : vector<8xf32> to vector<8x1xf32>
    %cst_45 = arith.constant 3.200000e+01 : f32
    %98 = vector.broadcast %cst_45 : f32 to vector<8x1xf32>
    %99 = arith.divf %97, %98 : vector<8x1xf32>
    %100 = vector.broadcast %92 : vector<8x1xf32> to vector<8x32xf32>
    %101 = arith.subf %88, %100 : vector<8x32xf32>
    %cst_46 = arith.constant 9.99999974E-6 : f32
    %102 = vector.broadcast %cst_46 : f32 to vector<8x1xf32>
    %103 = arith.addf %99, %102 : vector<8x1xf32>
    %104 = math.rsqrt %103 : vector<8x1xf32>
    %105 = vector.broadcast %104 : vector<8x1xf32> to vector<8x32xf32>
    %106 = arith.mulf %101, %105 : vector<8x32xf32>
    %c0_47 = arith.constant 0 : index
    %c0_48 = arith.constant 0 : index
    %107 = vector.load %arg16[%c0_47, %c0_48] : memref<1x32xf32, #tpu.memory_space<vmem>>, vector<1x32xf32>
    %108 = vector.shape_cast %107 : vector<1x32xf32> to vector<32xf32>
    %109 = vector.shape_cast %108 : vector<32xf32> to vector<1x32xf32>
    %110 = vector.broadcast %109 : vector<1x32xf32> to vector<8x32xf32>
    %111 = arith.mulf %106, %110 : vector<8x32xf32>
    %c0_49 = arith.constant 0 : index
    %c0_50 = arith.constant 0 : index
    %112 = vector.load %arg17[%c0_49, %c0_50] : memref<1x32xf32, #tpu.memory_space<vmem>>, vector<1x32xf32>
    %113 = vector.shape_cast %112 : vector<1x32xf32> to vector<32xf32>
    %114 = vector.shape_cast %113 : vector<32xf32> to vector<1x32xf32>
    %115 = vector.broadcast %114 : vector<1x32xf32> to vector<8x32xf32>
    %116 = arith.addf %111, %115 : vector<8x32xf32>
    %c0_51 = arith.constant 0 : index
    %c0_52 = arith.constant 0 : index
    %c0_53 = arith.constant 0 : index
    %117 = vector.load %arg18[%c0_51, %c0_52, %c0_53] : memref<1x8x32xf32, #tpu.memory_space<vmem>>, vector<1x8x32xf32>
    %118 = vector.shape_cast %117 : vector<1x8x32xf32> to vector<8x32xf32>
    %119 = vector.shape_cast %116 : vector<8x32xf32> to vector<1x8x32xf32>
    tpu.vector_store %arg18[%c0_51, %c0_52, %c0_53], %119 {strides = array<i32>} : memref<1x8x32xf32, #tpu.memory_space<vmem>>, vector<1x8x32xf32>,
    return
  }
  func.func @transform_0(%arg0: i32, %arg1: i32) -> (i32, i32, i32) {
    %c0_i32 = arith.constant 0 : i32
    %c0_i32_0 = arith.constant 0 : i32
    return %arg0, %arg1, %c0_i32 : i32, i32, i32
  }
  func.func @transform_1(%arg0: i32, %arg1: i32) -> (i32, i32, i32) {
    %c0_i32 = arith.constant 0 : i32
    %c0_i32_0 = arith.constant 0 : i32
    %c0_i32_1 = arith.constant 0 : i32
    return %arg0, %c0_i32, %c0_i32_0 : i32, i32, i32
  }
  func.func @transform_2(%arg0: i32, %arg1: i32) -> (i32, i32) {
    %c0_i32 = arith.constant 0 : i32
    %c0_i32_0 = arith.constant 0 : i32
    %c0_i32_1 = arith.constant 0 : i32
    return %c0_i32, %c0_i32_0 : i32, i32
  }
  func.func @transform_3(%arg0: i32, %arg1: i32) -> (i32, i32) {
    %c0_i32 = arith.constant 0 : i32
    %c0_i32_0 = arith.constant 0 : i32
    %c0_i32_1 = arith.constant 0 : i32
    return %c0_i32, %c0_i32_0 : i32, i32
  }
  func.func @transform_4(%arg0: i32, %arg1: i32) -> (i32, i32) {
    %c0_i32 = arith.constant 0 : i32
    %c0_i32_0 = arith.constant 0 : i32
    %c0_i32_1 = arith.constant 0 : i32
    return %c0_i32, %c0_i32_0 : i32, i32
  }
  func.func @transform_5(%arg0: i32, %arg1: i32) -> (i32, i32) {
    %c0_i32 = arith.constant 0 : i32
    %c0_i32_0 = arith.constant 0 : i32
    %c0_i32_1 = arith.constant 0 : i32
    return %c0_i32, %c0_i32_0 : i32, i32
  }
  func.func @transform_6(%arg0: i32, %arg1: i32) -> (i32, i32) {
    %c0_i32 = arith.constant 0 : i32
    %c0_i32_0 = arith.constant 0 : i32
    %c0_i32_1 = arith.constant 0 : i32
    return %c0_i32, %c0_i32_0 : i32, i32
  }
  func.func @transform_7(%arg0: i32, %arg1: i32) -> (i32, i32) {
    %c0_i32 = arith.constant 0 : i32
    %c0_i32_0 = arith.constant 0 : i32
    %c0_i32_1 = arith.constant 0 : i32
    return %c0_i32, %c0_i32_0 : i32, i32
  }
  func.func @transform_8(%arg0: i32, %arg1: i32) -> (i32, i32) {
    %c0_i32 = arith.constant 0 : i32
    %c0_i32_0 = arith.constant 0 : i32
    %c0_i32_1 = arith.constant 0 : i32
    return %c0_i32, %c0_i32_0 : i32, i32
  }
  func.func @transform_9(%arg0: i32, %arg1: i32) -> (i32, i32) {
    %c0_i32 = arith.constant 0 : i32
    %c0_i32_0 = arith.constant 0 : i32
    %c0_i32_1 = arith.constant 0 : i32
    return %c0_i32, %c0_i32_0 : i32, i32
  }
  func.func @transform_10(%arg0: i32, %arg1: i32) -> (i32, i32) {
    %c0_i32 = arith.constant 0 : i32
    %c0_i32_0 = arith.constant 0 : i32
    %c0_i32_1 = arith.constant 0 : i32
    return %c0_i32, %c0_i32_0 : i32, i32
  }
  func.func @transform_11(%arg0: i32, %arg1: i32) -> (i32, i32) {
    %c0_i32 = arith.constant 0 : i32
    %c0_i32_0 = arith.constant 0 : i32
    %c0_i32_1 = arith.constant 0 : i32
    return %c0_i32, %c0_i32_0 : i32, i32
  }
  func.func @transform_12(%arg0: i32, %arg1: i32) -> (i32, i32) {
    %c0_i32 = arith.constant 0 : i32
    %c0_i32_0 = arith.constant 0 : i32
    %c0_i32_1 = arith.constant 0 : i32
    return %c0_i32, %c0_i32_0 : i32, i32
  }
  func.func @transform_13(%arg0: i32, %arg1: i32) -> (i32, i32) {
    %c0_i32 = arith.constant 0 : i32
    %c0_i32_0 = arith.constant 0 : i32
    %c0_i32_1 = arith.constant 0 : i32
    return %c0_i32, %c0_i32_0 : i32, i32
  }
  func.func @transform_14(%arg0: i32, %arg1: i32) -> (i32, i32) {
    %c0_i32 = arith.constant 0 : i32
    %c0_i32_0 = arith.constant 0 : i32
    %c0_i32_1 = arith.constant 0 : i32
    return %c0_i32, %c0_i32_0 : i32, i32
  }
  func.func @transform_15(%arg0: i32, %arg1: i32) -> (i32, i32) {
    %c0_i32 = arith.constant 0 : i32
    %c0_i32_0 = arith.constant 0 : i32
    %c0_i32_1 = arith.constant 0 : i32
    return %c0_i32, %c0_i32_0 : i32, i32
  }
  func.func @transform_16(%arg0: i32, %arg1: i32) -> (i32, i32, i32) {
    %c0_i32 = arith.constant 0 : i32
    %c0_i32_0 = arith.constant 0 : i32
    return %arg0, %arg1, %c0_i32 : i32, i32, i32
  }
}

</mosaic_0001>

<llo_original>
// kernel: tpu_custom_call.1
$region0: #{tpu_custom_call.1}
  #allocation0 [shape = 'u32[]', space=smem, size = 0x4, offset = 0x4, fixed_abs, tag = 'smem constant byte address 0x4 - core index']
  #allocation1 [shape = 'u32[72,128]{1,0:T(1,128)}', space=vmem, size = 0x9000, scoped, tag = 'internal scratch']
  #allocation2 [shape = 'bf16[4,8,8]{2,1,0:T(8,128)(2,1)}', space=vmem, size = 0x2000, scoped, tag = 'scratch operand']
  #allocation3 [shape = 'bf16[4,8,8]{2,1,0:T(8,128)(2,1)}', space=vmem, size = 0x2000, scoped, tag = 'scratch operand']
  %s0 = inlined_call_operand.vmem [shape: f32[2,8,32], index: 0, kind: input, shape index: {}]
  %s1 = inlined_call_operand.hbm [shape: bf16[2,8,32], index: 1, kind: input, shape index: {}]
  %s2 = inlined_call_operand.vmem [shape: bf16[32,32], index: 2, kind: input, shape index: {}]
  %s3 = inlined_call_operand.vmem [shape: f32[1,32], index: 3, kind: input, shape index: {}]
  %s4 = inlined_call_operand.vmem [shape: bf16[32,64], index: 4, kind: input, shape index: {}]
  %s5 = inlined_call_operand.vmem [shape: f32[1,64], index: 5, kind: input, shape index: {}]
  %s6 = inlined_call_operand.hbm [shape: bf16[32,32], index: 6, kind: input, shape index: {}]
  %s7 = inlined_call_operand.vmem [shape: f32[1,32], index: 7, kind: input, shape index: {}]
  %s8 = inlined_call_operand.vmem [shape: f32[1,32], index: 8, kind: input, shape index: {}]
  %s9 = inlined_call_operand.vmem [shape: f32[1,32], index: 9, kind: input, shape index: {}]
  %s10 = inlined_call_operand.hbm [shape: bf16[32,64], index: 10, kind: input, shape index: {}]
  %s11 = inlined_call_operand.vmem [shape: f32[1,64], index: 11, kind: input, shape index: {}]
  %s12 = inlined_call_operand.vmem [shape: bf16[64,32], index: 12, kind: input, shape index: {}]
  %s13 = inlined_call_operand.vmem [shape: f32[1,32], index: 13, kind: input, shape index: {}]
  %s14 = inlined_call_operand.vmem [shape: f32[1,32], index: 14, kind: input, shape index: {}]
  %s15 = inlined_call_operand.vmem [shape: f32[1,32], index: 15, kind: input, shape index: {}]
  %s16 = inlined_call_operand.hbm [shape: f32[2,8,32], index: 16, kind: output, shape index: {}]
  %s17 = sld [smem:[#allocation0]]
  $region113: #{tpu_custom_call.1} parent=0
    _
  %s19 = ssub.s32 1, %s17
  %s20 = scalar_select 0, %s19, %s17
  $region1: #{tpu_custom_call.1} parent=0
    #allocation4 [shape = 'u8[4096]{0}', space=vmem, size = 0x1000, scoped, tag = 'input window, operand 1']
    #allocation5 [shape = 's32[2]{0}', space=sflag, size = 0x8, scoped, tag = 'scoped memory for tpu_custom_call.1']
    #allocation6 [shape = 's32[2]{0}', space=sflag, size = 0x8, scoped, tag = 'scoped memory for tpu_custom_call.1']
    #allocation7 [shape = 'u8[8192]{0}', space=vmem, size = 0x2000, scoped, tag = 'input window, operand 6, single buffered']
    #allocation8 [shape = 's32[1]{0}', space=sflag, size = 0x4, scoped, tag = 'scoped memory for tpu_custom_call.1']
    #allocation9 [shape = 'u8[8192]{0}', space=vmem, size = 0x2000, scoped, tag = 'input window, operand 10, single buffered']
    #allocation10 [shape = 'u8[8192]{0}', space=vmem, size = 0x2000, scoped, tag = 'output window, operand 0']
    %21 = vsyncpa [#allocation5], 0
    %s22 = scalar_lea.sflag [#allocation5], 1
    %23 = vsyncpa %s22, 0
    %24 = vsyncpa [#allocation8], 0
    %25 = vsyncpa [#allocation6], 0
    %s26 = scalar_lea.sflag [#allocation6], 1
    %27 = vsyncpa %s26, 0
    loop: start=0, step=1, limit=4
    $region2: #{tpu_custom_call.1} parent=1 // loop_pre_header
      _
    $region3: #{tpu_custom_call.1} parent=1 // loop_header
      %s29 = sphi 0, %s33
      %p30 = scmp.ge.s32.totalorder %s29, 4
      %s36 = sphi 0, %s48
      %s37 = sphi 0, %s44
      %s38 = sphi 0, %s36
      %s39 = sphi 0, %s37
      %s40 = sphi 0, %s38
      %s41 = sphi 0, %s39
      %s53 = sphi 0, %s55
      %s56 = sphi 0, %s53
      %s57 = sphi 0, %s56
      %s73 = sphi 0, %s57
      %s79 = sphi 0, %s81
      %s82 = sphi 0, %s79
      %s83 = sphi 0, %s82
      %s99 = sphi 0, %s83
      %s103 = sphi 0, %s103
      %s105 = sphi 0, %s103
      %s106 = sphi 0, %s105
      %s120 = sphi 0, %s106
      %s124 = sphi 0, %s124
      %s126 = sphi 0, %s124
      %s127 = sphi 0, %s126
      %s141 = sphi 0, %s127
      %s145 = sphi 0, %s145
      %s147 = sphi 0, %s145
      %s148 = sphi 0, %s147
      %s162 = sphi 0, %s148
      %s166 = sphi 0, %s166
      %s168 = sphi 0, %s166
      %s169 = sphi 0, %s168
      %s183 = sphi 0, %s169
      %s187 = sphi 0, %s187
      %s189 = sphi 0, %s187
      %s190 = sphi 0, %s189
      %s204 = sphi 0, %s190
      %s208 = sphi 0, %s208
      %s210 = sphi 0, %s208
      %s211 = sphi 0, %s210
      %s225 = sphi 0, %s211
      %s229 = sphi 0, %s229
      %s231 = sphi 0, %s229
      %s232 = sphi 0, %s231
      %s246 = sphi 0, %s232
      %s250 = sphi 0, %s250
      %s252 = sphi 0, %s250
      %s253 = sphi 0, %s252
      %s267 = sphi 0, %s253
      %s271 = sphi 0, %s271
      %s273 = sphi 0, %s271
      %s274 = sphi 0, %s273
      %s288 = sphi 0, %s274
      %s292 = sphi 0, %s292
      %s294 = sphi 0, %s292
      %s295 = sphi 0, %s294
      %s309 = sphi 0, %s295
      %s313 = sphi 0, %s313
      %s315 = sphi 0, %s313
      %s316 = sphi 0, %s315
      %s330 = sphi 0, %s316
      %s334 = sphi 0, %s334
      %s336 = sphi 0, %s334
      %s337 = sphi 0, %s336
      %s351 = sphi 0, %s337
      %s355 = sphi 0, %s355
      %s357 = sphi 0, %s355
      %s358 = sphi 0, %s357
      %s372 = sphi 0, %s358
      %s376 = sphi 0, %s376
      %s378 = sphi 0, %s376
      %s379 = sphi 0, %s378
      %s393 = sphi 0, %s379
      %s401 = sphi 0, %s403
      %s404 = sphi 0, %s401
      %s405 = sphi 0, %s404
      %s421 = sphi 0, %s405
    $region4: #{tpu_custom_call.1} parent=1 // loop_header_branch
      %32 = sbr.rel (%p30) target = $region8
    $region5: #{tpu_custom_call.1} parent=1 // loop_body
      %s34 = ssub.s32 %s29, 1
      %s35 = ssub.s32 %s29, 2
      %s42 = sadd.s32 1, %s37
      %p43 = scmp.ge.s32.totalorder %s42, 1
      %s44 = scalar_select %p43, 0, %s42
      %s45 = sadd.s32 1, %s36
      %s46 = scalar_select %p43, %s45, %s36
      %p47 = scmp.ge.s32.totalorder %s46, 2
      %s48 = scalar_select %p47, 0, %s46
      %s49 = ssub.s32 %s36, %s48
      %s50 = ssub.s32 %s37, %s44
      %s51 = sor.u32 %s49, %s50
      %p52 = scmp.eq.s32.totalorder %s51, 0
      %s54 = sadd.s32 %s53, 1
      %s55 = scalar_select %p52, %s53, %s54
      %p58 = pneg %p52
      %p59 = scmp.eq.s32.totalorder %s29, 1
      %p60 = por %p58, %p59
      %p61 = scmp.ne.s32.totalorder %s53, %s56
      %p62 = scmp.eq.s32.totalorder %s29, 0
      %p63 = por %p61, %p62
      %p64 = scmp.ne.s32.totalorder %s53, %s56
      %p65 = scmp.eq.s32.totalorder %s34, 1
      %p66 = por %p64, %p65
      %p67 = scmp.ne.s32.totalorder %s56, %s57
      %p68 = scmp.eq.s32.totalorder %s34, 0
      %p69 = por %p67, %p68
      %p70 = scmp.ne.s32.totalorder %s56, %s57
      %p71 = scmp.eq.s32.totalorder %s35, 1
      %p72 = por %p70, %p71
      %p74 = scmp.ne.s32.totalorder %s57, %s73
      %p75 = scmp.eq.s32.totalorder %s35, 0
      %p76 = por %p74, %p75
      %s77 = ssub.s32 %s36, %s48
      %p78 = scmp.eq.s32.totalorder %s77, 0
      %s80 = sadd.s32 %s79, 1
      %s81 = scalar_select %p78, %s79, %s80
      %p84 = pneg %p78
      %p85 = scmp.eq.s32.totalorder %s29, 1
      %p86 = por %p84, %p85
      %p87 = scmp.ne.s32.totalorder %s79, %s82
      %p88 = scmp.eq.s32.totalorder %s29, 0
      %p89 = por %p87, %p88
      %p90 = scmp.ne.s32.totalorder %s79, %s82
      %p91 = scmp.eq.s32.totalorder %s34, 1
      %p92 = por %p90, %p91
      %p93 = scmp.ne.s32.totalorder %s82, %s83
      %p94 = scmp.eq.s32.totalorder %s34, 0
      %p95 = por %p93, %p94
      %p96 = scmp.ne.s32.totalorder %s82, %s83
      %p97 = scmp.eq.s32.totalorder %s35, 1
      %p98 = por %p96, %p97
      %p100 = scmp.ne.s32.totalorder %s83, %s99
      %p101 = scmp.eq.s32.totalorder %s35, 0
      %p102 = por %p100, %p101
      %s104 = sadd.s32 %s103, 1
      %p107 = scmp.eq.s32.totalorder %s29, 1
      %p108 = scmp.ne.s32.totalorder %s103, %s105
      %p109 = scmp.eq.s32.totalorder %s29, 0
      %p110 = por %p108, %p109
      %p111 = scmp.ne.s32.totalorder %s103, %s105
      %p112 = scmp.eq.s32.totalorder %s34, 1
      %p113 = por %p111, %p112
      %p114 = scmp.ne.s32.totalorder %s105, %s106
      %p115 = scmp.eq.s32.totalorder %s34, 0
      %p116 = por %p114, %p115
      %p117 = scmp.ne.s32.totalorder %s105, %s106
      %p118 = scmp.eq.s32.totalorder %s35, 1
      %p119 = por %p117, %p118
      %p121 = scmp.ne.s32.totalorder %s106, %s120
      %p122 = scmp.eq.s32.totalorder %s35, 0
      %p123 = por %p121, %p122
      %s125 = sadd.s32 %s124, 1
      %p128 = scmp.eq.s32.totalorder %s29, 1
      %p129 = scmp.ne.s32.totalorder %s124, %s126
      %p130 = scmp.eq.s32.totalorder %s29, 0
      %p131 = por %p129, %p130
      %p132 = scmp.ne.s32.totalorder %s124, %s126
      %p133 = scmp.eq.s32.totalorder %s34, 1
      %p134 = por %p132, %p133
      %p135 = scmp.ne.s32.totalorder %s126, %s127
      %p136 = scmp.eq.s32.totalorder %s34, 0
      %p137 = por %p135, %p136
      %p138 = scmp.ne.s32.totalorder %s126, %s127
      %p139 = scmp.eq.s32.totalorder %s35, 1
      %p140 = por %p138, %p139
      %p142 = scmp.ne.s32.totalorder %s127, %s141
      %p143 = scmp.eq.s32.totalorder %s35, 0
      %p144 = por %p142, %p143
      %s146 = sadd.s32 %s145, 1
      %p149 = scmp.eq.s32.totalorder %s29, 1
      %p150 = scmp.ne.s32.totalorder %s145, %s147
      %p151 = scmp.eq.s32.totalorder %s29, 0
      %p152 = por %p150, %p151
      %p153 = scmp.ne.s32.totalorder %s145, %s147
      %p154 = scmp.eq.s32.totalorder %s34, 1
      %p155 = por %p153, %p154
      %p156 = scmp.ne.s32.totalorder %s147, %s148
      %p157 = scmp.eq.s32.totalorder %s34, 0
      %p158 = por %p156, %p157
      %p159 = scmp.ne.s32.totalorder %s147, %s148
      %p160 = scmp.eq.s32.totalorder %s35, 1
      %p161 = por %p159, %p160
      %p163 = scmp.ne.s32.totalorder %s148, %s162
      %p164 = scmp.eq.s32.totalorder %s35, 0
      %p165 = por %p163, %p164
      %s167 = sadd.s32 %s166, 1
      %p170 = scmp.eq.s32.totalorder %s29, 1
      %p171 = scmp.ne.s32.totalorder %s166, %s168
      %p172 = scmp.eq.s32.totalorder %s29, 0
      %p173 = por %p171, %p172
      %p174 = scmp.ne.s32.totalorder %s166, %s168
      %p175 = scmp.eq.s32.totalorder %s34, 1
      %p176 = por %p174, %p175
      %p177 = scmp.ne.s32.totalorder %s168, %s169
      %p178 = scmp.eq.s32.totalorder %s34, 0
      %p179 = por %p177, %p178
      %p180 = scmp.ne.s32.totalorder %s168, %s169
      %p181 = scmp.eq.s32.totalorder %s35, 1
      %p182 = por %p180, %p181
      %p184 = scmp.ne.s32.totalorder %s169, %s183
      %p185 = scmp.eq.s32.totalorder %s35, 0
      %p186 = por %p184, %p185
      %s188 = sadd.s32 %s187, 1
      %p191 = scmp.eq.s32.totalorder %s29, 1
      %p192 = scmp.ne.s32.totalorder %s187, %s189
      %p193 = scmp.eq.s32.totalorder %s29, 0
      %p194 = por %p192, %p193
      %p195 = scmp.ne.s32.totalorder %s187, %s189
      %p196 = scmp.eq.s32.totalorder %s34, 1
      %p197 = por %p195, %p196
      %p198 = scmp.ne.s32.totalorder %s189, %s190
      %p199 = scmp.eq.s32.totalorder %s34, 0
      %p200 = por %p198, %p199
      %p201 = scmp.ne.s32.totalorder %s189, %s190
      %p202 = scmp.eq.s32.totalorder %s35, 1
      %p203 = por %p201, %p202
      %p205 = scmp.ne.s32.totalorder %s190, %s204
      %p206 = scmp.eq.s32.totalorder %s35, 0
      %p207 = por %p205, %p206
      %s209 = sadd.s32 %s208, 1
      %p212 = scmp.eq.s32.totalorder %s29, 1
      %p213 = scmp.ne.s32.totalorder %s208, %s210
      %p214 = scmp.eq.s32.totalorder %s29, 0
      %p215 = por %p213, %p214
      %p216 = scmp.ne.s32.totalorder %s208, %s210
      %p217 = scmp.eq.s32.totalorder %s34, 1
      %p218 = por %p216, %p217
      %p219 = scmp.ne.s32.totalorder %s210, %s211
      %p220 = scmp.eq.s32.totalorder %s34, 0
      %p221 = por %p219, %p220
      %p222 = scmp.ne.s32.totalorder %s210, %s211
      %p223 = scmp.eq.s32.totalorder %s35, 1
      %p224 = por %p222, %p223
      %p226 = scmp.ne.s32.totalorder %s211, %s225
      %p227 = scmp.eq.s32.totalorder %s35, 0
      %p228 = por %p226, %p227
      %s230 = sadd.s32 %s229, 1
      %p233 = scmp.eq.s32.totalorder %s29, 1
      %p234 = scmp.ne.s32.totalorder %s229, %s231
      %p235 = scmp.eq.s32.totalorder %s29, 0
      %p236 = por %p234, %p235
      %p237 = scmp.ne.s32.totalorder %s229, %s231
      %p238 = scmp.eq.s32.totalorder %s34, 1
      %p239 = por %p237, %p238
      %p240 = scmp.ne.s32.totalorder %s231, %s232
      %p241 = scmp.eq.s32.totalorder %s34, 0
      %p242 = por %p240, %p241
      %p243 = scmp.ne.s32.totalorder %s231, %s232
      %p244 = scmp.eq.s32.totalorder %s35, 1
      %p245 = por %p243, %p244
      %p247 = scmp.ne.s32.totalorder %s232, %s246
      %p248 = scmp.eq.s32.totalorder %s35, 0
      %p249 = por %p247, %p248
      %s251 = sadd.s32 %s250, 1
      %p254 = scmp.eq.s32.totalorder %s29, 1
      %p255 = scmp.ne.s32.totalorder %s250, %s252
      %p256 = scmp.eq.s32.totalorder %s29, 0
      %p257 = por %p255, %p256
      %p258 = scmp.ne.s32.totalorder %s250, %s252
      %p259 = scmp.eq.s32.totalorder %s34, 1
      %p260 = por %p258, %p259
      %p261 = scmp.ne.s32.totalorder %s252, %s253
      %p262 = scmp.eq.s32.totalorder %s34, 0
      %p263 = por %p261, %p262
      %p264 = scmp.ne.s32.totalorder %s252, %s253
      %p265 = scmp.eq.s32.totalorder %s35, 1
      %p266 = por %p264, %p265
      %p268 = scmp.ne.s32.totalorder %s253, %s267
      %p269 = scmp.eq.s32.totalorder %s35, 0
      %p270 = por %p268, %p269
      %s272 = sadd.s32 %s271, 1
      %p275 = scmp.eq.s32.totalorder %s29, 1
      %p276 = scmp.ne.s32.totalorder %s271, %s273
      %p277 = scmp.eq.s32.totalorder %s29, 0
      %p278 = por %p276, %p277
      %p279 = scmp.ne.s32.totalorder %s271, %s273
      %p280 = scmp.eq.s32.totalorder %s34, 1
      %p281 = por %p279, %p280
      %p282 = scmp.ne.s32.totalorder %s273, %s274
      %p283 = scmp.eq.s32.totalorder %s34, 0
      %p284 = por %p282, %p283
      %p285 = scmp.ne.s32.totalorder %s273, %s274
      %p286 = scmp.eq.s32.totalorder %s35, 1
      %p287 = por %p285, %p286
      %p289 = scmp.ne.s32.totalorder %s274, %s288
      %p290 = scmp.eq.s32.totalorder %s35, 0
      %p291 = por %p289, %p290
      %s293 = sadd.s32 %s292, 1
      %p296 = scmp.eq.s32.totalorder %s29, 1
      %p297 = scmp.ne.s32.totalorder %s292, %s294
      %p298 = scmp.eq.s32.totalorder %s29, 0
      %p299 = por %p297, %p298
      %p300 = scmp.ne.s32.totalorder %s292, %s294
      %p301 = scmp.eq.s32.totalorder %s34, 1
      %p302 = por %p300, %p301
      %p303 = scmp.ne.s32.totalorder %s294, %s295
      %p304 = scmp.eq.s32.totalorder %s34, 0
      %p305 = por %p303, %p304
      %p306 = scmp.ne.s32.totalorder %s294, %s295
      %p307 = scmp.eq.s32.totalorder %s35, 1
      %p308 = por %p306, %p307
      %p310 = scmp.ne.s32.totalorder %s295, %s309
      %p311 = scmp.eq.s32.totalorder %s35, 0
      %p312 = por %p310, %p311
      %s314 = sadd.s32 %s313, 1
      %p317 = scmp.eq.s32.totalorder %s29, 1
      %p318 = scmp.ne.s32.totalorder %s313, %s315
      %p319 = scmp.eq.s32.totalorder %s29, 0
      %p320 = por %p318, %p319
      %p321 = scmp.ne.s32.totalorder %s313, %s315
      %p322 = scmp.eq.s32.totalorder %s34, 1
      %p323 = por %p321, %p322
      %p324 = scmp.ne.s32.totalorder %s315, %s316
      %p325 = scmp.eq.s32.totalorder %s34, 0
      %p326 = por %p324, %p325
      %p327 = scmp.ne.s32.totalorder %s315, %s316
      %p328 = scmp.eq.s32.totalorder %s35, 1
      %p329 = por %p327, %p328
      %p331 = scmp.ne.s32.totalorder %s316, %s330
      %p332 = scmp.eq.s32.totalorder %s35, 0
      %p333 = por %p331, %p332
      %s335 = sadd.s32 %s334, 1
      %p338 = scmp.eq.s32.totalorder %s29, 1
      %p339 = scmp.ne.s32.totalorder %s334, %s336
      %p340 = scmp.eq.s32.totalorder %s29, 0
      %p341 = por %p339, %p340
      %p342 = scmp.ne.s32.totalorder %s334, %s336
      %p343 = scmp.eq.s32.totalorder %s34, 1
      %p344 = por %p342, %p343
      %p345 = scmp.ne.s32.totalorder %s336, %s337
      %p346 = scmp.eq.s32.totalorder %s34, 0
      %p347 = por %p345, %p346
      %p348 = scmp.ne.s32.totalorder %s336, %s337
      %p349 = scmp.eq.s32.totalorder %s35, 1
      %p350 = por %p348, %p349
      %p352 = scmp.ne.s32.totalorder %s337, %s351
      %p353 = scmp.eq.s32.totalorder %s35, 0
      %p354 = por %p352, %p353
      %s356 = sadd.s32 %s355, 1
      %p359 = scmp.eq.s32.totalorder %s29, 1
      %p360 = scmp.ne.s32.totalorder %s355, %s357
      %p361 = scmp.eq.s32.totalorder %s29, 0
      %p362 = por %p360, %p361
      %p363 = scmp.ne.s32.totalorder %s355, %s357
      %p364 = scmp.eq.s32.totalorder %s34, 1
      %p365 = por %p363, %p364
      %p366 = scmp.ne.s32.totalorder %s357, %s358
      %p367 = scmp.eq.s32.totalorder %s34, 0
      %p368 = por %p366, %p367
      %p369 = scmp.ne.s32.totalorder %s357, %s358
      %p370 = scmp.eq.s32.totalorder %s35, 1
      %p371 = por %p369, %p370
      %p373 = scmp.ne.s32.totalorder %s358, %s372
      %p374 = scmp.eq.s32.totalorder %s35, 0
      %p375 = por %p373, %p374
      %s377 = sadd.s32 %s376, 1
      %p380 = scmp.eq.s32.totalorder %s29, 1
      %p381 = scmp.ne.s32.totalorder %s376, %s378
      %p382 = scmp.eq.s32.totalorder %s29, 0
      %p383 = por %p381, %p382
      %p384 = scmp.ne.s32.totalorder %s376, %s378
      %p385 = scmp.eq.s32.totalorder %s34, 1
      %p386 = por %p384, %p385
      %p387 = scmp.ne.s32.totalorder %s378, %s379
      %p388 = scmp.eq.s32.totalorder %s34, 0
      %p389 = por %p387, %p388
      %p390 = scmp.ne.s32.totalorder %s378, %s379
      %p391 = scmp.eq.s32.totalorder %s35, 1
      %p392 = por %p390, %p391
      %p394 = scmp.ne.s32.totalorder %s379, %s393
      %p395 = scmp.eq.s32.totalorder %s35, 0
      %p396 = por %p394, %p395
      %s397 = ssub.s32 %s36, %s48
      %s398 = ssub.s32 %s37, %s44
      %s399 = sor.u32 %s397, %s398
      %p400 = scmp.eq.s32.totalorder %s399, 0
      %s402 = sadd.s32 %s401, 1
      %s403 = scalar_select %p400, %s401, %s402
      %p406 = pneg %p400
      %p407 = scmp.eq.s32.totalorder %s29, 1
      %p408 = por %p406, %p407
      %p409 = scmp.ne.s32.totalorder %s401, %s404
      %p410 = scmp.eq.s32.totalorder %s29, 0
      %p411 = por %p409, %p410
      %p412 = scmp.ne.s32.totalorder %s401, %s404
      %p413 = scmp.eq.s32.totalorder %s34, 1
      %p414 = por %p412, %p413
      %p415 = scmp.ne.s32.totalorder %s404, %s405
      %p416 = scmp.eq.s32.totalorder %s34, 0
      %p417 = por %p415, %p416
      %p418 = scmp.ne.s32.totalorder %s404, %s405
      %p419 = scmp.eq.s32.totalorder %s35, 1
      %p420 = por %p418, %p419
      %p422 = scmp.ne.s32.totalorder %s405, %s421
      %p423 = scmp.eq.s32.totalorder %s35, 0
      %p424 = por %p422, %p423
      %p425 = scmp.le.s32.totalorder 1, %s29
      %p426 = scmp.lt.s32.totalorder %s29, 3
      %p427 = pnand %p425, %p426
      %p428 = pneg %p427
      // Predicated region
      $region9: #{tpu_custom_call.1} parent=5 // pred_check
        _
      $region10: #{tpu_custom_call.1} parent=5 // pred_check_branch
        %430 = sbr.rel (%p427) target = $region12
      $region11: #{tpu_custom_call.1} parent=5 // pred_region
        %s431 = ssub.s32 %s29, 1
        // Predicated region
        $region13: #{tpu_custom_call.1} parent=11 // pred_check
          %p432 = pneg %p116
        $region14: #{tpu_custom_call.1} parent=11 // pred_check_branch
          %434 = sbr.rel (%p432) target = $region16
        $region15: #{tpu_custom_call.1} parent=11 // pred_region
          _
        $region16: #{tpu_custom_call.1} parent=11 // pred_fallthru
          _
        // Predicated region
        $region17: #{tpu_custom_call.1} parent=11 // pred_check
          %p435 = pneg %p137
        $region18: #{tpu_custom_call.1} parent=11 // pred_check_branch
          %437 = sbr.rel (%p435) target = $region20
        $region19: #{tpu_custom_call.1} parent=11 // pred_region
          _
        $region20: #{tpu_custom_call.1} parent=11 // pred_fallthru
          _
        // Predicated region
        $region21: #{tpu_custom_call.1} parent=11 // pred_check
          %p438 = pneg %p158
        $region22: #{tpu_custom_call.1} parent=11 // pred_check_branch
          %440 = sbr.rel (%p438) target = $region24
        $region23: #{tpu_custom_call.1} parent=11 // pred_region
          _
        $region24: #{tpu_custom_call.1} parent=11 // pred_fallthru
          _
        // Predicated region
        $region25: #{tpu_custom_call.1} parent=11 // pred_check
          %p441 = pneg %p179
        $region26: #{tpu_custom_call.1} parent=11 // pred_check_branch
          %443 = sbr.rel (%p441) target = $region28
        $region27: #{tpu_custom_call.1} parent=11 // pred_region
          _
        $region28: #{tpu_custom_call.1} parent=11 // pred_fallthru
          _
        // Predicated region
        $region29: #{tpu_custom_call.1} parent=11 // pred_check
          %p444 = pneg %p200
        $region30: #{tpu_custom_call.1} parent=11 // pred_check_branch
          %446 = sbr.rel (%p444) target = $region32
        $region31: #{tpu_custom_call.1} parent=11 // pred_region
          %448 = vsyncadd [#allocation8], 0
          %s449 = sshll.u32 %s6, 4
          %s450 = int_to_ptr.hbm [resolvable:$true] %s449
          %s451 = sshll.u32 [#allocation7], 4
          %s452 = int_to_ptr.vmem [resolvable:$true] %s451
          %457 = dma.hbm_to_vmem [thread:$0]  %s450, 256, %s452, [#allocation8], 64, 64, 4
        $region32: #{tpu_custom_call.1} parent=11 // pred_fallthru
          _
        // Predicated region
        $region33: #{tpu_custom_call.1} parent=11 // pred_check
          %p458 = pneg %p221
        $region34: #{tpu_custom_call.1} parent=11 // pred_check_branch
          %460 = sbr.rel (%p458) target = $region36
        $region35: #{tpu_custom_call.1} parent=11 // pred_region
          _
        $region36: #{tpu_custom_call.1} parent=11 // pred_fallthru
          _
        // Predicated region
        $region37: #{tpu_custom_call.1} parent=11 // pred_check
          %p461 = pneg %p242
        $region38: #{tpu_custom_call.1} parent=11 // pred_check_branch
          %463 = sbr.rel (%p461) target = $region40
        $region39: #{tpu_custom_call.1} parent=11 // pred_region
          _
        $region40: #{tpu_custom_call.1} parent=11 // pred_fallthru
          _
        // Predicated region
        $region41: #{tpu_custom_call.1} parent=11 // pred_check
          %p464 = pneg %p263
        $region42: #{tpu_custom_call.1} parent=11 // pred_check_branch
          %466 = sbr.rel (%p464) target = $region44
        $region43: #{tpu_custom_call.1} parent=11 // pred_region
          _
        $region44: #{tpu_custom_call.1} parent=11 // pred_fallthru
          _
        // Predicated region
        $region45: #{tpu_custom_call.1} parent=11 // pred_check
          %p467 = pneg %p284
        $region46: #{tpu_custom_call.1} parent=11 // pred_check_branch
          %469 = sbr.rel (%p467) target = $region48
        $region47: #{tpu_custom_call.1} parent=11 // pred_region
          %471 = vsyncadd [#allocation8], 0
          %s472 = sshll.u32 %s10, 4
          %s473 = int_to_ptr.hbm [resolvable:$true] %s472
          %s474 = sshll.u32 [#allocation9], 4
          %s475 = int_to_ptr.vmem [resolvable:$true] %s474
          %480 = dma.hbm_to_vmem [thread:$0]  %s473, 256, %s475, [#allocation8], 64, 64, 4
        $region48: #{tpu_custom_call.1} parent=11 // pred_fallthru
          _
        // Predicated region
        $region49: #{tpu_custom_call.1} parent=11 // pred_check
          %p481 = pneg %p305
        $region50: #{tpu_custom_call.1} parent=11 // pred_check_branch
          %483 = sbr.rel (%p481) target = $region52
        $region51: #{tpu_custom_call.1} parent=11 // pred_region
          _
        $region52: #{tpu_custom_call.1} parent=11 // pred_fallthru
          _
        // Predicated region
        $region53: #{tpu_custom_call.1} parent=11 // pred_check
          %p484 = pneg %p326
        $region54: #{tpu_custom_call.1} parent=11 // pred_check_branch
          %486 = sbr.rel (%p484) target = $region56
        $region55: #{tpu_custom_call.1} parent=11 // pred_region
          _
        $region56: #{tpu_custom_call.1} parent=11 // pred_fallthru
          _
        // Predicated region
        $region57: #{tpu_custom_call.1} parent=11 // pred_check
          %p487 = pneg %p347
        $region58: #{tpu_custom_call.1} parent=11 // pred_check_branch
          %489 = sbr.rel (%p487) target = $region60
        $region59: #{tpu_custom_call.1} parent=11 // pred_region
          _
        $region60: #{tpu_custom_call.1} parent=11 // pred_fallthru
          _
        // Predicated region
        $region61: #{tpu_custom_call.1} parent=11 // pred_check
          %p490 = pneg %p368
        $region62: #{tpu_custom_call.1} parent=11 // pred_check_branch
          %492 = sbr.rel (%p490) target = $region64
        $region63: #{tpu_custom_call.1} parent=11 // pred_region
          _
        $region64: #{tpu_custom_call.1} parent=11 // pred_fallthru
          _
        // Predicated region
        $region65: #{tpu_custom_call.1} parent=11 // pred_check
          %p493 = pneg %p389
        $region66: #{tpu_custom_call.1} parent=11 // pred_check_branch
          %495 = sbr.rel (%p493) target = $region68
        $region67: #{tpu_custom_call.1} parent=11 // pred_region
          _
        $region68: #{tpu_custom_call.1} parent=11 // pred_fallthru
          _
      $region12: #{tpu_custom_call.1} parent=5 // pred_fallthru
        _
      %p496 = scmp.lt.s32.totalorder %s29, 2
      // Predicated region
      $region69: #{tpu_custom_call.1} parent=5 // pred_check
        %p497 = pneg %p496
      $region70: #{tpu_custom_call.1} parent=5 // pred_check_branch
        %499 = sbr.rel (%p497) target = $region72
      $region71: #{tpu_custom_call.1} parent=5 // pred_region
        // Predicated region
        $region73: #{tpu_custom_call.1} parent=71 // pred_check
          %p500 = pneg %p63
        $region74: #{tpu_custom_call.1} parent=71 // pred_check_branch
          %502 = sbr.rel (%p500) target = $region76
        $region75: #{tpu_custom_call.1} parent=71 // pred_region
          %p503 = scmp.lt.s32.totalorder %s36, 1
          %s504 = scalar_select %p503, %s36, 1
          %p505 = scmp.lt.s32.totalorder %s37, 0
          %s506 = scalar_select %p505, %s37, 0
          %s507 = sadd.s32 %s506, %s504
          %s508 = smul.addr %s507, 8
          %s509 = scalar_lea.vmem %s0, %s508
        $region76: #{tpu_custom_call.1} parent=71 // pred_fallthru
          _
        // Predicated region
        $region77: #{tpu_custom_call.1} parent=71 // pred_check
          %p510 = pneg %p89
        $region78: #{tpu_custom_call.1} parent=71 // pred_check_branch
          %512 = sbr.rel (%p510) target = $region80
        $region79: #{tpu_custom_call.1} parent=71 // pred_region
          %s513 = sand.u32 %s79, 1
          %s514 = scalar_lea.sflag [#allocation5], %s513
          %s515 = sand.u32 %s79, 1
          %s516 = smul.addr %s515, 4
          %s517 = scalar_lea.vmem [#allocation4], %s516
          %519 = vsyncadd %s514, 0
          %s520 = smul.addr %s36, 4
          %s521 = scalar_lea.hbm %s1, %s520
          %s523 = sshll.u32 %s521, 4
          %s524 = int_to_ptr.hbm [resolvable:$true] %s523
          %s525 = sshll.u32 %s517, 4
          %s526 = int_to_ptr.vmem [resolvable:$true] %s525
          %528 = dma.hbm_to_vmem [thread:$0]  %s524, 64, %s526, %s514
        $region80: #{tpu_custom_call.1} parent=71 // pred_fallthru
          _
      $region72: #{tpu_custom_call.1} parent=5 // pred_fallthru
        _
      %p529 = scmp.le.s32.totalorder 1, %s29
      %p530 = scmp.lt.s32.totalorder %s29, 3
      %p531 = pnand %p529, %p530
      %p532 = pneg %p531
      // Predicated region
      $region81: #{tpu_custom_call.1} parent=5 // pred_check
        _
      $region82: #{tpu_custom_call.1} parent=5 // pred_check_branch
        %534 = sbr.rel (%p531) target = $region84
      $region83: #{tpu_custom_call.1} parent=5 // pred_region
        %s535 = ssub.s32 %s29, 1
        %s536 = sand.u32 %s82, 1
        %s537 = scalar_lea.sflag [#allocation5], %s536
        %s538 = sand.u32 %s82, 1
        %s539 = smul.addr %s538, 4
        %s540 = scalar_lea.vmem [#allocation4], %s539
        // Predicated region
        $region85: #{tpu_custom_call.1} parent=83 // pred_check
          %p541 = pneg %p95
        $region86: #{tpu_custom_call.1} parent=83 // pred_check_branch
          %543 = sbr.rel (%p541) target = $region88
        $region87: #{tpu_custom_call.1} parent=83 // pred_region
          %545 = dma.done %s537, 64
        $region88: #{tpu_custom_call.1} parent=83 // pred_fallthru
          _
        // Predicated region
        $region89: #{tpu_custom_call.1} parent=83 // pred_check
          %p546 = pneg %p200
        $region90: #{tpu_custom_call.1} parent=83 // pred_check_branch
          %548 = sbr.rel (%p546) target = $region92
        $region91: #{tpu_custom_call.1} parent=83 // pred_region
          %550 = dma.done [#allocation8], 256
        $region92: #{tpu_custom_call.1} parent=83 // pred_fallthru
          _
        // Predicated region
        $region93: #{tpu_custom_call.1} parent=83 // pred_check
          %p551 = pneg %p284
        $region94: #{tpu_custom_call.1} parent=83 // pred_check_branch
          %553 = sbr.rel (%p551) target = $region96
        $region95: #{tpu_custom_call.1} parent=83 // pred_region
          %555 = dma.done [#allocation8], 256
        $region96: #{tpu_custom_call.1} parent=83 // pred_fallthru
          _
        %p556 = scmp.lt.s32.totalorder %s38, 1
        %s557 = scalar_select %p556, %s38, 1
        %p558 = scmp.lt.s32.totalorder %s39, 0
        %s559 = scalar_select %p558, %s39, 0
        %s560 = sadd.s32 %s559, %s557
        %s561 = smul.addr %s560, 8
        %s562 = scalar_lea.vmem %s0, %s561
        %p563 = pneg %p69
        %p564 = pneg %p66
        %s565 = sand.u32 %s82, 1
        %s566 = scalar_lea.sflag [#allocation5], %s565
        %s567 = sand.u32 %s82, 1
        %s568 = smul.addr %s567, 4
        %s569 = scalar_lea.vmem [#allocation4], %s568
        %p570 = pneg %p95
        %p571 = pneg %p92
        %p572 = pneg %p116
        %p573 = pneg %p113
        %p574 = pneg %p137
        %p575 = pneg %p134
        %p576 = pneg %p158
        %p577 = pneg %p155
        %p578 = pneg %p179
        %p579 = pneg %p176
        %p580 = pneg %p200
        %p581 = pneg %p197
        %p582 = pneg %p221
        %p583 = pneg %p218
        %p584 = pneg %p242
        %p585 = pneg %p239
        %p586 = pneg %p263
        %p587 = pneg %p260
        %p588 = pneg %p284
        %p589 = pneg %p281
        %p590 = pneg %p305
        %p591 = pneg %p302
        %p592 = pneg %p326
        %p593 = pneg %p323
        %p594 = pneg %p347
        %p595 = pneg %p344
        %p596 = pneg %p368
        %p597 = pneg %p365
        %p598 = pneg %p389
        %p599 = pneg %p386
        %p600 = pneg %p417
        %p601 = pneg %p414
        %s602 = sand.u32 %s404, 1
        %s603 = scalar_lea.sflag [#allocation6], %s602
        %s604 = sand.u32 %s404, 1
        %s605 = smul.addr %s604, 8
        %s606 = scalar_lea.vmem [#allocation10], %s605
        %p607 = scmp.lt.s32.totalorder %s38, 1
        %s608 = scalar_select %p607, %s38, 1
        %p609 = scmp.lt.s32.totalorder %s39, 0
        %s610 = scalar_select %p609, %s39, 0
        %s611 = sadd.s32 %s610, %s608
        %s612 = smul.addr %s611, 8
        %s613 = scalar_lea.vmem %s0, %s612
        %p615 = scmp.eq.s32.totalorder %s39, 0
        // Predicated region
        $region97: #{tpu_custom_call.1} parent=83 // pred_check
          %p616 = pneg %p615
        $region98: #{tpu_custom_call.1} parent=83 // pred_check_branch
          %618 = sbr.rel (%p616) target = $region100
        $region99: #{tpu_custom_call.1} parent=83 // pred_region
          %v619 = vld [vmem:[%s540] sm:$0xf]
          %v620 = vld [vmem:[%s4] sm:$0xf]
          %v621 = vld [vmem:[%s4 + $0x4] sm:$0xf]
          %v622 = vld [vmem:[%s4 + $0x8] sm:$0xf]
          %v623 = vld [vmem:[%s4 + $0xc] sm:$0xf]
          %v624 = vld [vmem:[%s5] sm:$0x1]
          %v626 = vperm.slane %v624, 0
          %v632 = vunpack.c.l.b16 %v620
          %v633 = vunpack.c.l.b16 %v621
          %v634 = vunpack.c.l.b16 %v622
          %v635 = vunpack.c.l.b16 %v623
          %v636 = vpack.c.b16 %v633, %v632
          %v637 = vpack.c.b16 %v635, %v634
          %vm640 = vcmask 261120
          %v642 = vsel %vm640, %v619, 0
          %644 = vmatpush.bf16.msra.mxu0 0
          %645 = vmatpush.bf16.msra.mxu0 0
          %646 = vmatpush.bf16.msra.mxu0 0
          %647 = vmatpush.bf16.msra.mxu0 0
          %648 = vmatpush.bf16.msra.mxu0 0
          %649 = vmatpush.bf16.msra.mxu0 0
          %650 = vmatpush.bf16.msra.mxu0 %v637
          %651 = vmatpush.bf16.msra.mxu0 %v636
          %652 = vmatmul.bf16.gmra.mxu0 %v642
          %v653 = vpop.f32.mrf.mxu0
          %v654 = vadd.f32 %v626, %v653
          %v655 = vpop.f32.mrf.mxu0
          %656 = vdwg.mxu0
          %658 = vrot.lane.b32.xlu0 %v654, 120
          %v659 = vpop.permute.xlu0 %658
          %661 = vrot.lane.b32.xlu0 %v654, 112
          %v662 = vpop.permute.xlu0 %661
          %664 = vrot.lane.b32.xlu0 %v654, 104
          %v665 = vpop.permute.xlu0 %664
          %v667 = vrot.slane %v662, 4
          %vm668 = vcmask 1047556
          %v669 = vsel %vm668, %v667, %v654
          %v670 = vrot.slane %v654, 4
          %v671 = vsel %vm668, %v662, %v670
          %v673 = vunpack.c.l.s4 1983009808
          %v674 = vunpack.c.0.s8 %v673
          %v675 = vperm.slane %v669, %v674
          %v677 = vunpack.c.l.s4 1983009808
          %v678 = vunpack.c.0.s8 %v677
          %v679 = vperm.slane %v671, %v678
          %v680 = vrot.slane %v665, 4
          %v681 = vsel %vm668, %v680, %v659
          %v682 = vrot.slane %v659, 4
          %v683 = vsel %vm668, %v665, %v682
          %v685 = vunpack.c.l.s4 1983009808
          %v686 = vunpack.c.0.s8 %v685
          %v687 = vperm.slane %v681, %v686
          %v689 = vunpack.c.l.s4 1983009808
          %v690 = vunpack.c.0.s8 %v689
          %v691 = vperm.slane %v683, %v690
          %v692 = vrot.slane %v687, 4
          %v693 = vsel %vm668, %v692, %v675
          %v694 = vrot.slane %v675, 4
          %v695 = vsel %vm668, %v687, %v694
          %v697 = vunpack.c.l.s4 1934713408
          %v698 = vunpack.c.0.s8 %v697
          %v699 = vperm.slane %v693, %v698
          %v701 = vunpack.c.l.s4 1934713408
          %v702 = vunpack.c.0.s8 %v701
          %v703 = vperm.slane %v695, %v702
          %v704 = vrot.slane %v691, 4
          %v705 = vsel %vm668, %v704, %v679
          %v706 = vrot.slane %v679, 4
          %v707 = vsel %vm668, %v691, %v706
          %v709 = vunpack.c.l.s4 1934713408
          %v710 = vunpack.c.0.s8 %v709
          %v711 = vperm.slane %v705, %v710
          %v713 = vunpack.c.l.s4 1934713408
          %v714 = vunpack.c.0.s8 %v713
          %v715 = vperm.slane %v707, %v714
          %v716 = vrot.slane %v699, 4
          %v717 = vsel %vm668, 0.0, %v716
          %v718 = vrot.slane %v703, 4
          %v719 = vsel %vm668, 0.0, %v718
          %v720 = vrot.slane %v711, 4
          %v721 = vsel %vm668, 0.0, %v720
          %v722 = vrot.slane %v715, 4
          %v723 = vsel %vm668, 0.0, %v722
          %724 = vrot.lane.b32.xlu0 %v654, 96
          %v725 = vpop.permute.xlu0 %724
          %726 = vrot.lane.b32.xlu0 %v659, 96
          %v727 = vpop.permute.xlu0 %726
          %728 = vrot.lane.b32.xlu0 %v662, 96
          %v729 = vpop.permute.xlu0 %728
          %730 = vrot.lane.b32.xlu0 %v665, 96
          %v731 = vpop.permute.xlu0 %730
          %v736 = vrot.slane %v729, 4
          %v737 = vsel %vm668, %v736, %v725
          %v738 = vrot.slane %v725, 4
          %v739 = vsel %vm668, %v729, %v738
          %v741 = vunpack.c.l.s4 1983009808
          %v742 = vunpack.c.0.s8 %v741
          %v743 = vperm.slane %v737, %v742
          %v745 = vunpack.c.l.s4 1983009808
          %v746 = vunpack.c.0.s8 %v745
          %v747 = vperm.slane %v739, %v746
          %v748 = vrot.slane %v731, 4
          %v749 = vsel %vm668, %v748, %v727
          %v750 = vrot.slane %v727, 4
          %v751 = vsel %vm668, %v731, %v750
          %v753 = vunpack.c.l.s4 1983009808
          %v754 = vunpack.c.0.s8 %v753
          %v755 = vperm.slane %v749, %v754
          %v757 = vunpack.c.l.s4 1983009808
          %v758 = vunpack.c.0.s8 %v757
          %v759 = vperm.slane %v751, %v758
          %v760 = vrot.slane %v755, 4
          %v761 = vsel %vm668, %v760, %v743
          %v762 = vrot.slane %v743, 4
          %v763 = vsel %vm668, %v755, %v762
          %v765 = vunpack.c.l.s4 1934713408
          %v766 = vunpack.c.0.s8 %v765
          %v767 = vperm.slane %v761, %v766
          %v769 = vunpack.c.l.s4 1934713408
          %v770 = vunpack.c.0.s8 %v769
          %v771 = vperm.slane %v763, %v770
          %v772 = vrot.slane %v759, 4
          %v773 = vsel %vm668, %v772, %v747
          %v774 = vrot.slane %v747, 4
          %v775 = vsel %vm668, %v759, %v774
          %v777 = vunpack.c.l.s4 1934713408
          %v778 = vunpack.c.0.s8 %v777
          %v779 = vperm.slane %v773, %v778
          %v781 = vunpack.c.l.s4 1934713408
          %v782 = vunpack.c.0.s8 %v781
          %v783 = vperm.slane %v775, %v782
          %v784 = vrot.slane %v767, 4
          %v785 = vsel %vm668, 0.0, %v784
          %v786 = vrot.slane %v771, 4
          %v787 = vsel %vm668, 0.0, %v786
          %v788 = vrot.slane %v779, 4
          %v789 = vsel %vm668, 0.0, %v788
          %v790 = vrot.slane %v783, 4
          %v791 = vsel %vm668, 0.0, %v790
          %v792 = vsel %vm668, %v718, %v699
          %v794 = vunpack.c.l.s4 1983009808
          %v795 = vunpack.c.0.s8 %v794
          %v796 = vperm.slane %v792, %v795
          %v797 = vrot.slane %v719, 4
          %v798 = vsel %vm668, %v797, %v717
          %v800 = vunpack.c.l.s4 1983009808
          %v801 = vunpack.c.0.s8 %v800
          %v802 = vperm.slane %v798, %v801
          %v803 = vsel %vm668, %v722, %v711
          %v805 = vunpack.c.l.s4 1983009808
          %v806 = vunpack.c.0.s8 %v805
          %v807 = vperm.slane %v803, %v806
          %v808 = vrot.slane %v723, 4
          %v809 = vsel %vm668, %v808, %v721
          %v811 = vunpack.c.l.s4 1983009808
          %v812 = vunpack.c.0.s8 %v811
          %v813 = vperm.slane %v809, %v812
          %v814 = vrot.slane %v802, 4
          %v815 = vsel %vm668, %v814, %v796
          %v816 = vrot.slane %v796, 4
          %v817 = vsel %vm668, %v802, %v816
          %v819 = vunpack.c.l.s4 1934713408
          %v820 = vunpack.c.0.s8 %v819
          %v821 = vperm.slane %v815, %v820
          %v823 = vunpack.c.l.s4 1934713408
          %v824 = vunpack.c.0.s8 %v823
          %v825 = vperm.slane %v817, %v824
          %v826 = vrot.slane %v813, 4
          %v827 = vsel %vm668, %v826, %v807
          %v828 = vrot.slane %v807, 4
          %v829 = vsel %vm668, %v813, %v828
          %v831 = vunpack.c.l.s4 1934713408
          %v832 = vunpack.c.0.s8 %v831
          %v833 = vperm.slane %v827, %v832
          %v835 = vunpack.c.l.s4 1934713408
          %v836 = vunpack.c.0.s8 %v835
          %v837 = vperm.slane %v829, %v836
          %v838 = vrot.slane %v833, 4
          %v839 = vsel %vm668, %v838, %v821
          %v840 = vrot.slane %v821, 4
          %v841 = vsel %vm668, %v833, %v840
          %v842 = vrot.slane %v837, 4
          %v843 = vsel %vm668, %v842, %v825
          %v844 = vrot.slane %v825, 4
          %v845 = vsel %vm668, %v837, %v844
          %846 = vxpose.xlu0.b32.start [1/16] %v839, 128
          %847 = vxpose.xlu0.b32.cont [2/16] 0.0, 128
          %848 = vxpose.xlu0.b32.cont [3/16] 0.0, 128
          %849 = vxpose.xlu0.b32.cont [4/16] 0.0, 128
          %850 = vxpose.xlu0.b32.cont [5/16] 0.0, 128
          %851 = vxpose.xlu0.b32.cont [6/16] 0.0, 128
          %852 = vxpose.xlu0.b32.cont [7/16] 0.0, 128
          %853 = vxpose.xlu0.b32.cont [8/16] 0.0, 128
          %854 = vxpose.xlu0.b32.cont [9/16] 0.0, 128
          %855 = vxpose.xlu0.b32.cont [10/16] 0.0, 128
          %856 = vxpose.xlu0.b32.cont [11/16] 0.0, 128
          %857 = vxpose.xlu0.b32.cont [12/16] 0.0, 128
          %858 = vxpose.xlu0.b32.cont [13/16] 0.0, 128
          %859 = vxpose.xlu0.b32.cont [14/16] 0.0, 128
          %860 = vxpose.xlu0.b32.cont [15/16] 0.0, 128
          %861 = vxpose.xlu0.b32.end [16/16] 0.0, 128
          %v862 = vpop.trf.xlu0
          %v863 = vpop.trf.xlu0
          %v864 = vpop.trf.xlu0
          %v865 = vpop.trf.xlu0
          %v866 = vpop.trf.xlu0
          %v867 = vpop.trf.xlu0
          %v868 = vpop.trf.xlu0
          %v869 = vpop.trf.xlu0
          %v870 = vpop.trf.xlu0
          %v871 = vpop.trf.xlu0
          %v872 = vpop.trf.xlu0
          %v873 = vpop.trf.xlu0
          %v874 = vpop.trf.xlu0
          %v875 = vpop.trf.xlu0
          %v876 = vpop.trf.xlu0
          %v877 = vpop.trf.xlu0
          %878 = vxpose.xlu0.b32.start [1/16] %v841, 128
          %879 = vxpose.xlu0.b32.cont [2/16] 0.0, 128
          %880 = vxpose.xlu0.b32.cont [3/16] 0.0, 128
          %881 = vxpose.xlu0.b32.cont [4/16] 0.0, 128
          %882 = vxpose.xlu0.b32.cont [5/16] 0.0, 128
          %883 = vxpose.xlu0.b32.cont [6/16] 0.0, 128
          %884 = vxpose.xlu0.b32.cont [7/16] 0.0, 128
          %885 = vxpose.xlu0.b32.cont [8/16] 0.0, 128
          %886 = vxpose.xlu0.b32.cont [9/16] 0.0, 128
          %887 = vxpose.xlu0.b32.cont [10/16] 0.0, 128
          %888 = vxpose.xlu0.b32.cont [11/16] 0.0, 128
          %889 = vxpose.xlu0.b32.cont [12/16] 0.0, 128
          %890 = vxpose.xlu0.b32.cont [13/16] 0.0, 128
          %891 = vxpose.xlu0.b32.cont [14/16] 0.0, 128
          %892 = vxpose.xlu0.b32.cont [15/16] 0.0, 128
          %893 = vxpose.xlu0.b32.end [16/16] 0.0, 128
          %v894 = vpop.trf.xlu0
          %v895 = vpop.trf.xlu0
          %v896 = vpop.trf.xlu0
          %v897 = vpop.trf.xlu0
          %v898 = vpop.trf.xlu0
          %v899 = vpop.trf.xlu0
          %v900 = vpop.trf.xlu0
          %v901 = vpop.trf.xlu0
          %v902 = vpop.trf.xlu0
          %v903 = vpop.trf.xlu0
          %v904 = vpop.trf.xlu0
          %v905 = vpop.trf.xlu0
          %v906 = vpop.trf.xlu0
          %v907 = vpop.trf.xlu0
          %v908 = vpop.trf.xlu0
          %v909 = vpop.trf.xlu0
          %910 = vxpose.xlu0.b32.start [1/16] %v843, 128
          %911 = vxpose.xlu0.b32.cont [2/16] 0.0, 128
          %912 = vxpose.xlu0.b32.cont [3/16] 0.0, 128
          %913 = vxpose.xlu0.b32.cont [4/16] 0.0, 128
          %914 = vxpose.xlu0.b32.cont [5/16] 0.0, 128
          %915 = vxpose.xlu0.b32.cont [6/16] 0.0, 128
          %916 = vxpose.xlu0.b32.cont [7/16] 0.0, 128
          %917 = vxpose.xlu0.b32.cont [8/16] 0.0, 128
          %918 = vxpose.xlu0.b32.cont [9/16] 0.0, 128
          %919 = vxpose.xlu0.b32.cont [10/16] 0.0, 128
          %920 = vxpose.xlu0.b32.cont [11/16] 0.0, 128
          %921 = vxpose.xlu0.b32.cont [12/16] 0.0, 128
          %922 = vxpose.xlu0.b32.cont [13/16] 0.0, 128
          %923 = vxpose.xlu0.b32.cont [14/16] 0.0, 128
          %924 = vxpose.xlu0.b32.cont [15/16] 0.0, 128
          %925 = vxpose.xlu0.b32.end [16/16] 0.0, 128
          %v926 = vpop.trf.xlu0
          %v927 = vpop.trf.xlu0
          %v928 = vpop.trf.xlu0
          %v929 = vpop.trf.xlu0
          %v930 = vpop.trf.xlu0
          %v931 = vpop.trf.xlu0
          %v932 = vpop.trf.xlu0
          %v933 = vpop.trf.xlu0
          %v934 = vpop.trf.xlu0
          %v935 = vpop.trf.xlu0
          %v936 = vpop.trf.xlu0
          %v937 = vpop.trf.xlu0
          %v938 = vpop.trf.xlu0
          %v939 = vpop.trf.xlu0
          %v940 = vpop.trf.xlu0
          %v941 = vpop.trf.xlu0
          %942 = vxpose.xlu0.b32.start [1/16] %v845, 128
          %943 = vxpose.xlu0.b32.cont [2/16] 0.0, 128
          %944 = vxpose.xlu0.b32.cont [3/16] 0.0, 128
          %945 = vxpose.xlu0.b32.cont [4/16] 0.0, 128
          %946 = vxpose.xlu0.b32.cont [5/16] 0.0, 128
          %947 = vxpose.xlu0.b32.cont [6/16] 0.0, 128
          %948 = vxpose.xlu0.b32.cont [7/16] 0.0, 128
          %949 = vxpose.xlu0.b32.cont [8/16] 0.0, 128
          %950 = vxpose.xlu0.b32.cont [9/16] 0.0, 128
          %951 = vxpose.xlu0.b32.cont [10/16] 0.0, 128
          %952 = vxpose.xlu0.b32.cont [11/16] 0.0, 128
          %953 = vxpose.xlu0.b32.cont [12/16] 0.0, 128
          %954 = vxpose.xlu0.b32.cont [13/16] 0.0, 128
          %955 = vxpose.xlu0.b32.cont [14/16] 0.0, 128
          %956 = vxpose.xlu0.b32.cont [15/16] 0.0, 128
          %957 = vxpose.xlu0.b32.end [16/16] 0.0, 128
          %v958 = vpop.trf.xlu0
          %v959 = vpop.trf.xlu0
          %v960 = vpop.trf.xlu0
          %v961 = vpop.trf.xlu0
          %v962 = vpop.trf.xlu0
          %v963 = vpop.trf.xlu0
          %v964 = vpop.trf.xlu0
          %v965 = vpop.trf.xlu0
          %v966 = vpop.trf.xlu0
          %v967 = vpop.trf.xlu0
          %v968 = vpop.trf.xlu0
          %v969 = vpop.trf.xlu0
          %v970 = vpop.trf.xlu0
          %v971 = vpop.trf.xlu0
          %v972 = vpop.trf.xlu0
          %v973 = vpop.trf.xlu0
          %v974 = vpack.c.bf16 %v862, %v862
          %v975 = vpack.c.bf16 %v894, %v894
          %v976 = vpack.c.bf16 %v926, %v926
          %v977 = vpack.c.bf16 %v958, %v958
          %vm978 = vcmask 60416
          %979 = vst.msk [vmem:[#allocation2] sm:$0xf] %vm978, %v974
          %980 = vst.msk [vmem:[#allocation2 + $0x4] sm:$0xf] %vm978, %v975
          %981 = vst.msk [vmem:[#allocation2 + $0x8] sm:$0xf] %vm978, %v976
          %982 = vst.msk [vmem:[#allocation2 + $0xc] sm:$0xf] %vm978, %v977
          %v983 = vsel %vm668, %v786, %v767
          %v985 = vunpack.c.l.s4 1983009808
          %v986 = vunpack.c.0.s8 %v985
          %v987 = vperm.slane %v983, %v986
          %v988 = vrot.slane %v787, 4
          %v989 = vsel %vm668, %v988, %v785
          %v991 = vunpack.c.l.s4 1983009808
          %v992 = vunpack.c.0.s8 %v991
          %v993 = vperm.slane %v989, %v992
          %v994 = vsel %vm668, %v790, %v779
          %v996 = vunpack.c.l.s4 1983009808
          %v997 = vunpack.c.0.s8 %v996
          %v998 = vperm.slane %v994, %v997
          %v999 = vrot.slane %v791, 4
          %v1000 = vsel %vm668, %v999, %v789
          %v1002 = vunpack.c.l.s4 1983009808
          %v1003 = vunpack.c.0.s8 %v1002
          %v1004 = vperm.slane %v1000, %v1003
          %v1005 = vrot.slane %v993, 4
          %v1006 = vsel %vm668, %v1005, %v987
          %v1007 = vrot.slane %v987, 4
          %v1008 = vsel %vm668, %v993, %v1007
          %v1010 = vunpack.c.l.s4 1934713408
          %v1011 = vunpack.c.0.s8 %v1010
          %v1012 = vperm.slane %v1006, %v1011
          %v1014 = vunpack.c.l.s4 1934713408
          %v1015 = vunpack.c.0.s8 %v1014
          %v1016 = vperm.slane %v1008, %v1015
          %v1017 = vrot.slane %v1004, 4
          %v1018 = vsel %vm668, %v1017, %v998
          %v1019 = vrot.slane %v998, 4
          %v1020 = vsel %vm668, %v1004, %v1019
          %v1022 = vunpack.c.l.s4 1934713408
          %v1023 = vunpack.c.0.s8 %v1022
          %v1024 = vperm.slane %v1018, %v1023
          %v1026 = vunpack.c.l.s4 1934713408
          %v1027 = vunpack.c.0.s8 %v1026
          %v1028 = vperm.slane %v1020, %v1027
          %v1029 = vrot.slane %v1024, 4
          %v1030 = vsel %vm668, %v1029, %v1012
          %v1031 = vrot.slane %v1012, 4
          %v1032 = vsel %vm668, %v1024, %v1031
          %v1033 = vrot.slane %v1028, 4
          %v1034 = vsel %vm668, %v1033, %v1016
          %v1035 = vrot.slane %v1016, 4
          %v1036 = vsel %vm668, %v1028, %v1035
          %v1037 = vpack.c.bf16 %v1030, %v1030
          %v1038 = vpack.c.bf16 %v1032, %v1032
          %v1039 = vpack.c.bf16 %v1034, %v1034
          %v1040 = vpack.c.bf16 %v1036, %v1036
          %1041 = vst.msk [vmem:[#allocation3] sm:$0xf] %vm978, %v1037
          %1042 = vst.msk [vmem:[#allocation3 + $0x4] sm:$0xf] %vm978, %v1038
          %1043 = vst.msk [vmem:[#allocation3 + $0x8] sm:$0xf] %vm978, %v1039
          %1044 = vst.msk [vmem:[#allocation3 + $0xc] sm:$0xf] %vm978, %v1040
        $region100: #{tpu_custom_call.1} parent=83 // pred_fallthru
          _
        %v1045 = vld [vmem:[%s613] sm:$0xff]
        %v1046 = vpack.c.bf16 %v1045, %v1045
        %v1047 = vld [vmem:[%s2] sm:$0xf]
        %v1048 = vld [vmem:[%s2 + $0x4] sm:$0xf]
        %v1049 = vld [vmem:[%s2 + $0x8] sm:$0xf]
        %v1050 = vld [vmem:[%s2 + $0xc] sm:$0xf]
        %v1051 = vld [vmem:[%s3] sm:$0x1]
        %v1053 = vperm.slane %v1051, 0
        %v1059 = vunpack.c.l.b16 %v1047
        %v1060 = vunpack.c.l.b16 %v1048
        %v1061 = vunpack.c.l.b16 %v1049
        %v1062 = vunpack.c.l.b16 %v1050
        %v1063 = vpack.c.b16 %v1060, %v1059
        %v1064 = vpack.c.b16 %v1062, %v1061
        %vm1067 = vcmask 261120
        %v1069 = vsel %vm1067, %v1046, 0
        %1071 = vmatpush.bf16.msra.mxu0 0
        %1072 = vmatpush.bf16.msra.mxu0 0
        %1073 = vmatpush.bf16.msra.mxu0 0
        %1074 = vmatpush.bf16.msra.mxu0 0
        %1075 = vmatpush.bf16.msra.mxu0 0
        %1076 = vmatpush.bf16.msra.mxu0 0
        %1077 = vmatpush.bf16.msra.mxu0 %v1064
        %1078 = vmatpush.bf16.msra.mxu0 %v1063
        %1079 = vmatmul.bf16.gmra.mxu0 %v1069
        %v1080 = vpop.f32.mrf.mxu0
        %v1081 = vadd.f32 %v1053, %v1080
        %v1082 = vpop.f32.mrf.mxu0
        %1083 = vdwg.mxu0
        %1085 = vrot.lane.b32.xlu0 %v1081, 120
        %v1086 = vpop.permute.xlu0 %1085
        %1088 = vrot.lane.b32.xlu0 %v1081, 112
        %v1089 = vpop.permute.xlu0 %1088
        %1091 = vrot.lane.b32.xlu0 %v1081, 104
        %v1092 = vpop.permute.xlu0 %1091
        %v1094 = vrot.slane %v1089, 4
        %vm1095 = vcmask 1047556
        %v1096 = vsel %vm1095, %v1094, %v1081
        %v1097 = vrot.slane %v1081, 4
        %v1098 = vsel %vm1095, %v1089, %v1097
        %v1100 = vunpack.c.l.s4 1983009808
        %v1101 = vunpack.c.0.s8 %v1100
        %v1102 = vperm.slane %v1096, %v1101
        %v1104 = vunpack.c.l.s4 1983009808
        %v1105 = vunpack.c.0.s8 %v1104
        %v1106 = vperm.slane %v1098, %v1105
        %v1107 = vrot.slane %v1092, 4
        %v1108 = vsel %vm1095, %v1107, %v1086
        %v1109 = vrot.slane %v1086, 4
        %v1110 = vsel %vm1095, %v1092, %v1109
        %v1112 = vunpack.c.l.s4 1983009808
        %v1113 = vunpack.c.0.s8 %v1112
        %v1114 = vperm.slane %v1108, %v1113
        %v1116 = vunpack.c.l.s4 1983009808
        %v1117 = vunpack.c.0.s8 %v1116
        %v1118 = vperm.slane %v1110, %v1117
        %v1119 = vrot.slane %v1114, 4
        %v1120 = vsel %vm1095, %v1119, %v1102
        %v1121 = vrot.slane %v1102, 4
        %v1122 = vsel %vm1095, %v1114, %v1121
        %v1124 = vunpack.c.l.s4 1934713408
        %v1125 = vunpack.c.0.s8 %v1124
        %v1126 = vperm.slane %v1120, %v1125
        %v1128 = vunpack.c.l.s4 1934713408
        %v1129 = vunpack.c.0.s8 %v1128
        %v1130 = vperm.slane %v1122, %v1129
        %v1131 = vrot.slane %v1118, 4
        %v1132 = vsel %vm1095, %v1131, %v1106
        %v1133 = vrot.slane %v1106, 4
        %v1134 = vsel %vm1095, %v1118, %v1133
        %v1136 = vunpack.c.l.s4 1934713408
        %v1137 = vunpack.c.0.s8 %v1136
        %v1138 = vperm.slane %v1132, %v1137
        %v1140 = vunpack.c.l.s4 1934713408
        %v1141 = vunpack.c.0.s8 %v1140
        %v1142 = vperm.slane %v1134, %v1141
        %v1143 = vrot.slane %v1126, 4
        %v1144 = vsel %vm1095, 0.0, %v1143
        %v1145 = vrot.slane %v1130, 4
        %v1146 = vsel %vm1095, 0.0, %v1145
        %v1147 = vrot.slane %v1138, 4
        %v1148 = vsel %vm1095, 0.0, %v1147
        %v1149 = vrot.slane %v1142, 4
        %v1150 = vsel %vm1095, 0.0, %v1149
        %v1151 = vsel %vm1095, %v1145, %v1126
        %v1153 = vunpack.c.l.s4 1983009808
        %v1154 = vunpack.c.0.s8 %v1153
        %v1155 = vperm.slane %v1151, %v1154
        %v1156 = vrot.slane %v1146, 4
        %v1157 = vsel %vm1095, %v1156, %v1144
        %v1159 = vunpack.c.l.s4 1983009808
        %v1160 = vunpack.c.0.s8 %v1159
        %v1161 = vperm.slane %v1157, %v1160
        %v1162 = vsel %vm1095, %v1149, %v1138
        %v1164 = vunpack.c.l.s4 1983009808
        %v1165 = vunpack.c.0.s8 %v1164
        %v1166 = vperm.slane %v1162, %v1165
        %v1167 = vrot.slane %v1150, 4
        %v1168 = vsel %vm1095, %v1167, %v1148
        %v1170 = vunpack.c.l.s4 1983009808
        %v1171 = vunpack.c.0.s8 %v1170
        %v1172 = vperm.slane %v1168, %v1171
        %v1173 = vrot.slane %v1161, 4
        %v1174 = vsel %vm1095, %v1173, %v1155
        %v1175 = vrot.slane %v1155, 4
        %v1176 = vsel %vm1095, %v1161, %v1175
        %v1178 = vunpack.c.l.s4 1934713408
        %v1179 = vunpack.c.0.s8 %v1178
        %v1180 = vperm.slane %v1174, %v1179
        %v1182 = vunpack.c.l.s4 1934713408
        %v1183 = vunpack.c.0.s8 %v1182
        %v1184 = vperm.slane %v1176, %v1183
        %v1185 = vrot.slane %v1172, 4
        %v1186 = vsel %vm1095, %v1185, %v1166
        %v1187 = vrot.slane %v1166, 4
        %v1188 = vsel %vm1095, %v1172, %v1187
        %v1190 = vunpack.c.l.s4 1934713408
        %v1191 = vunpack.c.0.s8 %v1190
        %v1192 = vperm.slane %v1186, %v1191
        %v1194 = vunpack.c.l.s4 1934713408
        %v1195 = vunpack.c.0.s8 %v1194
        %v1196 = vperm.slane %v1188, %v1195
        %v1197 = vrot.slane %v1192, 4
        %v1198 = vsel %vm1095, %v1197, %v1180
        %v1199 = vrot.slane %v1180, 4
        %v1200 = vsel %vm1095, %v1192, %v1199
        %v1201 = vrot.slane %v1196, 4
        %v1202 = vsel %vm1095, %v1201, %v1184
        %v1203 = vrot.slane %v1184, 4
        %v1204 = vsel %vm1095, %v1196, %v1203
        %v1205 = vpack.c.bf16 %v1198, %v1198
        %v1206 = vpack.c.bf16 %v1200, %v1200
        %v1207 = vpack.c.bf16 %v1202, %v1202
        %v1208 = vpack.c.bf16 %v1204, %v1204
        %v1209 = vld [vmem:[#allocation2] sm:$0xf]
        %v1210 = vld [vmem:[#allocation2 + $0x4] sm:$0xf]
        %v1211 = vld [vmem:[#allocation2 + $0x8] sm:$0xf]
        %v1212 = vld [vmem:[#allocation2 + $0xc] sm:$0xf]
        %vm1213 = vcmask 64512
        %v1215 = vsel %vm1213, %v1205, 0
        %vm1217 = vcmask 1043456
        %v1219 = vsel %vm1217, %v1209, 0
        %1221 = vmatpush.bf16.msra.mxu0 0
        %1222 = vmatpush.bf16.msra.mxu0 0
        %1223 = vmatpush.bf16.msra.mxu0 0
        %1224 = vmatpush.bf16.msra.mxu0 0
        %1225 = vmatpush.bf16.msra.mxu0 0
        %1226 = vmatpush.bf16.msra.mxu0 0
        %1227 = vmatpush.bf16.msra.mxu0 0
        %1228 = vmatpush.bf16.msra.mxu0 %v1219
        %1229 = vmatmul.bf16.gmra.mxu0 %v1215
        %v1230 = vpop.f32.mrf.mxu0
        %v1231 = vadd.f32 0.0, %v1230
        %v1232 = vpop.f32.mrf.mxu0
        %1233 = vdwg.mxu0
        %v1235 = vsel %vm1213, %v1206, 0
        %v1238 = vsel %vm1217, %v1210, 0
        %1240 = vmatpush.bf16.msra.mxu0 0
        %1241 = vmatpush.bf16.msra.mxu0 0
        %1242 = vmatpush.bf16.msra.mxu0 0
        %1243 = vmatpush.bf16.msra.mxu0 0
        %1244 = vmatpush.bf16.msra.mxu0 0
        %1245 = vmatpush.bf16.msra.mxu0 0
        %1246 = vmatpush.bf16.msra.mxu0 0
        %1247 = vmatpush.bf16.msra.mxu0 %v1238
        %1248 = vmatmul.bf16.gmra.mxu0 %v1235
        %v1249 = vpop.f32.mrf.mxu0
        %v1250 = vadd.f32 0.0, %v1249
        %v1251 = vpop.f32.mrf.mxu0
        %1252 = vdwg.mxu0
        %v1254 = vsel %vm1213, %v1207, 0
        %v1257 = vsel %vm1217, %v1211, 0
        %1259 = vmatpush.bf16.msra.mxu0 0
        %1260 = vmatpush.bf16.msra.mxu0 0
        %1261 = vmatpush.bf16.msra.mxu0 0
        %1262 = vmatpush.bf16.msra.mxu0 0
        %1263 = vmatpush.bf16.msra.mxu0 0
        %1264 = vmatpush.bf16.msra.mxu0 0
        %1265 = vmatpush.bf16.msra.mxu0 0
        %1266 = vmatpush.bf16.msra.mxu0 %v1257
        %1267 = vmatmul.bf16.gmra.mxu0 %v1254
        %v1268 = vpop.f32.mrf.mxu0
        %v1269 = vadd.f32 0.0, %v1268
        %v1270 = vpop.f32.mrf.mxu0
        %1271 = vdwg.mxu0
        %v1273 = vsel %vm1213, %v1208, 0
        %v1276 = vsel %vm1217, %v1212, 0
        %1278 = vmatpush.bf16.msra.mxu0 0
        %1279 = vmatpush.bf16.msra.mxu0 0
        %1280 = vmatpush.bf16.msra.mxu0 0
        %1281 = vmatpush.bf16.msra.mxu0 0
        %1282 = vmatpush.bf16.msra.mxu0 0
        %1283 = vmatpush.bf16.msra.mxu0 0
        %1284 = vmatpush.bf16.msra.mxu0 0
        %1285 = vmatpush.bf16.msra.mxu0 %v1276
        %1286 = vmatmul.bf16.gmra.mxu0 %v1273
        %v1287 = vpop.f32.mrf.mxu0
        %v1288 = vadd.f32 0.0, %v1287
        %v1289 = vpop.f32.mrf.mxu0
        %1290 = vdwg.mxu0
        %v1291 = vsel %vm1213, %v1231, -inf
        %1292 = vmax.xlane.f32.xlu0 %v1291
        %v1293 = vpop.xlane.xlu0 %1292
        %v1294 = vsel %vm1213, %v1250, -inf
        %1295 = vmax.xlane.f32.xlu0 %v1294
        %v1296 = vpop.xlane.xlu0 %1295
        %v1297 = vsel %vm1213, %v1269, -inf
        %1298 = vmax.xlane.f32.xlu0 %v1297
        %v1299 = vpop.xlane.xlu0 %1298
        %v1300 = vsel %vm1213, %v1288, -inf
        %1301 = vmax.xlane.f32.xlu0 %v1300
        %v1302 = vpop.xlane.xlu0 %1301
        %v1303 = vsub.f32 %v1231, %v1293
        %v1304 = vsub.f32 %v1250, %v1296
        %v1305 = vsub.f32 %v1269, %v1299
        %v1306 = vsub.f32 %v1288, %v1302
        %v1307 = vmul.f32 %v1303, 1.442695
        %v1308 = vpow.pop %v1307
        %v1309 = vmul.f32 %v1304, 1.442695
        %v1310 = vpow.pop %v1309
        %v1311 = vmul.f32 %v1305, 1.442695
        %v1312 = vpow.pop %v1311
        %v1313 = vmul.f32 %v1306, 1.442695
        %v1314 = vpow.pop %v1313
        %v1315 = vsel %vm1213, %v1308, 0.0
        %1316 = vadd.xlane.f32.xlu0 %v1315
        %v1317 = vpop.xlane.xlu0 %1316
        %v1318 = vsel %vm1213, %v1310, 0.0
        %1319 = vadd.xlane.f32.xlu0 %v1318
        %v1320 = vpop.xlane.xlu0 %1319
        %v1321 = vsel %vm1213, %v1312, 0.0
        %1322 = vadd.xlane.f32.xlu0 %v1321
        %v1323 = vpop.xlane.xlu0 %1322
        %v1324 = vsel %vm1213, %v1314, 0.0
        %1325 = vadd.xlane.f32.xlu0 %v1324
        %v1326 = vpop.xlane.xlu0 %1325
        %v1327 = vpack.c.bf16 %v1308, %v1308
        %v1328 = vpack.c.bf16 %v1310, %v1310
        %v1329 = vpack.c.bf16 %v1312, %v1312
        %v1330 = vpack.c.bf16 %v1314, %v1314
        %v1331 = vld [vmem:[#allocation3] sm:$0xf]
        %v1332 = vld [vmem:[#allocation3 + $0x4] sm:$0xf]
        %v1333 = vld [vmem:[#allocation3 + $0x8] sm:$0xf]
        %v1334 = vld [vmem:[#allocation3 + $0xc] sm:$0xf]
        %v1336 = vsel %vm1213, %v1327, 0
        %v1339 = vsel %vm1217, %v1331, 0
        %1341 = vmatpush.bf16.msra.mxu0 0
        %1342 = vmatpush.bf16.msra.mxu0 0
        %1343 = vmatpush.bf16.msra.mxu0 0
        %1344 = vmatpush.bf16.msra.mxu0 0
        %1345 = vmatpush.bf16.msra.mxu0 0
        %1346 = vmatpush.bf16.msra.mxu0 0
        %1347 = vmatpush.bf16.msra.mxu0 0
        %1348 = vmatpush.bf16.msra.mxu0 %v1339
        %1349 = vmatmul.bf16.gmra.mxu0 %v1336
        %v1350 = vpop.f32.mrf.mxu0
        %v1351 = vadd.f32 0.0, %v1350
        %v1352 = vpop.f32.mrf.mxu0
        %1353 = vdwg.mxu0
        %v1355 = vsel %vm1213, %v1328, 0
        %v1358 = vsel %vm1217, %v1332, 0
        %1360 = vmatpush.bf16.msra.mxu0 0
        %1361 = vmatpush.bf16.msra.mxu0 0
        %1362 = vmatpush.bf16.msra.mxu0 0
        %1363 = vmatpush.bf16.msra.mxu0 0
        %1364 = vmatpush.bf16.msra.mxu0 0
        %1365 = vmatpush.bf16.msra.mxu0 0
        %1366 = vmatpush.bf16.msra.mxu0 0
        %1367 = vmatpush.bf16.msra.mxu0 %v1358
        %1368 = vmatmul.bf16.gmra.mxu0 %v1355
        %v1369 = vpop.f32.mrf.mxu0
        %v1370 = vadd.f32 0.0, %v1369
        %v1371 = vpop.f32.mrf.mxu0
        %1372 = vdwg.mxu0
        %v1374 = vsel %vm1213, %v1329, 0
        %v1377 = vsel %vm1217, %v1333, 0
        %1379 = vmatpush.bf16.msra.mxu0 0
        %1380 = vmatpush.bf16.msra.mxu0 0
        %1381 = vmatpush.bf16.msra.mxu0 0
        %1382 = vmatpush.bf16.msra.mxu0 0
        %1383 = vmatpush.bf16.msra.mxu0 0
        %1384 = vmatpush.bf16.msra.mxu0 0
        %1385 = vmatpush.bf16.msra.mxu0 0
        %1386 = vmatpush.bf16.msra.mxu0 %v1377
        %1387 = vmatmul.bf16.gmra.mxu0 %v1374
        %v1388 = vpop.f32.mrf.mxu0
        %v1389 = vadd.f32 0.0, %v1388
        %v1390 = vpop.f32.mrf.mxu0
        %1391 = vdwg.mxu0
        %v1393 = vsel %vm1213, %v1330, 0
        %v1396 = vsel %vm1217, %v1334, 0
        %1398 = vmatpush.bf16.msra.mxu0 0
        %1399 = vmatpush.bf16.msra.mxu0 0
        %1400 = vmatpush.bf16.msra.mxu0 0
        %1401 = vmatpush.bf16.msra.mxu0 0
        %1402 = vmatpush.bf16.msra.mxu0 0
        %1403 = vmatpush.bf16.msra.mxu0 0
        %1404 = vmatpush.bf16.msra.mxu0 0
        %1405 = vmatpush.bf16.msra.mxu0 %v1396
        %1406 = vmatmul.bf16.gmra.mxu0 %v1393
        %v1407 = vpop.f32.mrf.mxu0
        %v1408 = vadd.f32 0.0, %v1407
        %v1409 = vpop.f32.mrf.mxu0
        %1410 = vdwg.mxu0
        %v1411 = vrcp.pop %v1317
        %v1412 = vrcp.pop %v1320
        %v1413 = vrcp.pop %v1323
        %v1414 = vrcp.pop %v1326
        %v1415 = vmul.f32 %v1351, %v1411
        %v1416 = vmul.f32 %v1370, %v1412
        %v1417 = vmul.f32 %v1389, %v1413
        %v1418 = vmul.f32 %v1408, %v1414
        %v1419 = vrot.slane %v1417, 4
        %v1420 = vsel %vm1095, %v1419, %v1415
        %v1421 = vrot.slane %v1415, 4
        %v1422 = vsel %vm1095, %v1417, %v1421
        %v1424 = vunpack.c.l.s4 1983009808
        %v1425 = vunpack.c.0.s8 %v1424
        %v1426 = vperm.slane %v1420, %v1425
        %v1428 = vunpack.c.l.s4 1983009808
        %v1429 = vunpack.c.0.s8 %v1428
        %v1430 = vperm.slane %v1422, %v1429
        %v1431 = vrot.slane %v1418, 4
        %v1432 = vsel %vm1095, %v1431, %v1416
        %v1433 = vrot.slane %v1416, 4
        %v1434 = vsel %vm1095, %v1418, %v1433
        %v1436 = vunpack.c.l.s4 1983009808
        %v1437 = vunpack.c.0.s8 %v1436
        %v1438 = vperm.slane %v1432, %v1437
        %v1440 = vunpack.c.l.s4 1983009808
        %v1441 = vunpack.c.0.s8 %v1440
        %v1442 = vperm.slane %v1434, %v1441
        %v1443 = vrot.slane %v1438, 4
        %v1444 = vsel %vm1095, %v1443, %v1426
        %v1445 = vrot.slane %v1426, 4
        %v1446 = vsel %vm1095, %v1438, %v1445
        %v1448 = vunpack.c.l.s4 1934713408
        %v1449 = vunpack.c.0.s8 %v1448
        %v1450 = vperm.slane %v1444, %v1449
        %v1452 = vunpack.c.l.s4 1934713408
        %v1453 = vunpack.c.0.s8 %v1452
        %v1454 = vperm.slane %v1446, %v1453
        %v1455 = vrot.slane %v1442, 4
        %v1456 = vsel %vm1095, %v1455, %v1430
        %v1457 = vrot.slane %v1430, 4
        %v1458 = vsel %vm1095, %v1442, %v1457
        %v1460 = vunpack.c.l.s4 1934713408
        %v1461 = vunpack.c.0.s8 %v1460
        %v1462 = vperm.slane %v1456, %v1461
        %v1464 = vunpack.c.l.s4 1934713408
        %v1465 = vunpack.c.0.s8 %v1464
        %v1466 = vperm.slane %v1458, %v1465
        %v1467 = vrot.slane %v1450, 4
        %v1468 = vsel %vm1095, 0.0, %v1467
        %v1469 = vrot.slane %v1454, 4
        %v1470 = vsel %vm1095, 0.0, %v1469
        %v1471 = vrot.slane %v1462, 4
        %v1472 = vsel %vm1095, 0.0, %v1471
        %v1473 = vrot.slane %v1466, 4
        %v1474 = vsel %vm1095, 0.0, %v1473
        %v1475 = vsel %vm1095, %v1469, %v1450
        %v1477 = vunpack.c.l.s4 1983009808
        %v1478 = vunpack.c.0.s8 %v1477
        %v1479 = vperm.slane %v1475, %v1478
        %v1480 = vrot.slane %v1470, 4
        %v1481 = vsel %vm1095, %v1480, %v1468
        %v1483 = vunpack.c.l.s4 1983009808
        %v1484 = vunpack.c.0.s8 %v1483
        %v1485 = vperm.slane %v1481, %v1484
        %v1486 = vsel %vm1095, %v1473, %v1462
        %v1488 = vunpack.c.l.s4 1983009808
        %v1489 = vunpack.c.0.s8 %v1488
        %v1490 = vperm.slane %v1486, %v1489
        %v1491 = vrot.slane %v1474, 4
        %v1492 = vsel %vm1095, %v1491, %v1472
        %v1494 = vunpack.c.l.s4 1983009808
        %v1495 = vunpack.c.0.s8 %v1494
        %v1496 = vperm.slane %v1492, %v1495
        %v1497 = vrot.slane %v1485, 4
        %v1498 = vsel %vm1095, %v1497, %v1479
        %v1499 = vrot.slane %v1479, 4
        %v1500 = vsel %vm1095, %v1485, %v1499
        %v1502 = vunpack.c.l.s4 1934713408
        %v1503 = vunpack.c.0.s8 %v1502
        %v1504 = vperm.slane %v1498, %v1503
        %v1506 = vunpack.c.l.s4 1934713408
        %v1507 = vunpack.c.0.s8 %v1506
        %v1508 = vperm.slane %v1500, %v1507
        %v1509 = vrot.slane %v1496, 4
        %v1510 = vsel %vm1095, %v1509, %v1490
        %v1511 = vrot.slane %v1490, 4
        %v1512 = vsel %vm1095, %v1496, %v1511
        %v1514 = vunpack.c.l.s4 1934713408
        %v1515 = vunpack.c.0.s8 %v1514
        %v1516 = vperm.slane %v1510, %v1515
        %v1518 = vunpack.c.l.s4 1934713408
        %v1519 = vunpack.c.0.s8 %v1518
        %v1520 = vperm.slane %v1512, %v1519
        %v1521 = vrot.slane %v1516, 4
        %v1522 = vsel %vm1095, %v1521, %v1504
        %v1523 = vrot.slane %v1504, 4
        %v1524 = vsel %vm1095, %v1516, %v1523
        %v1525 = vrot.slane %v1520, 4
        %v1526 = vsel %vm1095, %v1525, %v1508
        %v1527 = vrot.slane %v1508, 4
        %v1528 = vsel %vm1095, %v1520, %v1527
        %1530 = vrot.lane.b32.xlu0 %v1524, 8
        %v1531 = vpop.permute.xlu0 %1530
        %1534 = vrot.lane.b32.xlu0 %v1526, 16
        %v1535 = vpop.permute.xlu0 %1534
        %1538 = vrot.lane.b32.xlu0 %v1528, 24
        %v1539 = vpop.permute.xlu0 %1538
        %v1541 = vsel %vm1213, %v1522, %v1531
        %vm1542 = vcmask 130048
        %v1543 = vsel %vm1542, %v1541, %v1535
        %vm1544 = vcmask 195584
        %v1545 = vsel %vm1544, %v1543, %v1539
        %v1546 = vpack.c.bf16 %v1545, %v1545
        %v1547 = vld [vmem:[#allocation7] sm:$0xf]
        %v1548 = vld [vmem:[#allocation7 + $0x4] sm:$0xf]
        %v1549 = vld [vmem:[#allocation7 + $0x8] sm:$0xf]
        %v1550 = vld [vmem:[#allocation7 + $0xc] sm:$0xf]
        %v1551 = vld [vmem:[%s7] sm:$0x1]
        %v1553 = vperm.slane %v1551, 0
        %v1559 = vunpack.c.l.b16 %v1547
        %v1560 = vunpack.c.l.b16 %v1548
        %v1561 = vunpack.c.l.b16 %v1549
        %v1562 = vunpack.c.l.b16 %v1550
        %v1563 = vpack.c.b16 %v1560, %v1559
        %v1564 = vpack.c.b16 %v1562, %v1561
        %v1568 = vsel %vm1067, %v1546, 0
        %1570 = vmatpush.bf16.msra.mxu0 0
        %1571 = vmatpush.bf16.msra.mxu0 0
        %1572 = vmatpush.bf16.msra.mxu0 0
        %1573 = vmatpush.bf16.msra.mxu0 0
        %1574 = vmatpush.bf16.msra.mxu0 0
        %1575 = vmatpush.bf16.msra.mxu0 0
        %1576 = vmatpush.bf16.msra.mxu0 %v1564
        %1577 = vmatpush.bf16.msra.mxu0 %v1563
        %1578 = vmatmul.bf16.gmra.mxu0 %v1568
        %v1579 = vpop.f32.mrf.mxu0
        %v1580 = vadd.f32 %v1553, %v1579
        %v1581 = vpop.f32.mrf.mxu0
        %1582 = vdwg.mxu0
        %v1583 = vadd.f32 %v1580, %v1045
        %v1584 = vsel %vm1067, %v1583, 0.0
        %1585 = vadd.xlane.f32.xlu0 %v1584
        %v1586 = vpop.xlane.xlu0 %1585
        %v1587 = vrcp.pop 32.0
        %v1588 = vmul.f32 32.0, %v1587
        %v1589 = vsub.f32 1.0, %v1588
        %v1590 = vmul.f32 %v1587, %v1589
        %v1591 = vadd.f32 %v1587, %v1590
        %vm1592 = vweird.f32 %v1587
        %v1593 = vsel %vm1592, %v1587, %v1591
        %v1594 = vmul.f32 %v1586, %v1593
        %v1595 = vsub.f32 %v1583, %v1594
        %v1596 = vmul.f32 %v1595, %v1595
        %v1597 = vsel %vm1067, %v1596, 0.0
        %1598 = vadd.xlane.f32.xlu0 %v1597
        %v1599 = vpop.xlane.xlu0 %1598
        %v1600 = vmul.f32 %v1599, %v1593
        %v1601 = vadd.f32 %v1600, 1e-05
        %v1602 = vrsqrt.pop %v1601
        %v1603 = vmul.f32 %v1602, %v1601
        %v1604 = vmul.f32 %v1603, %v1602
        %v1605 = vmul.f32 0.5, %v1604
        %v1606 = vsub.f32 1.5, %v1605
        %v1607 = vmul.f32 %v1602, %v1606
        %vm1608 = vweird.f32 %v1601
        %vm1609 = vweird.f32 %v1602
        %vm1610 = vmor %vm1608, %vm1609
        %v1611 = vsel %vm1610, %v1602, %v1607
        %v1612 = vmul.f32 %v1595, %v1611
        %v1613 = vld [vmem:[%s8] sm:$0x1]
        %v1615 = vperm.slane %v1613, 0
        %v1617 = vmul.f32 %v1612, %v1615
        %v1618 = vld [vmem:[%s9] sm:$0x1]
        %v1620 = vperm.slane %v1618, 0
        %v1622 = vadd.f32 %v1617, %v1620
        %v1623 = vpack.c.bf16 %v1622, %v1622
        %v1624 = vld [vmem:[#allocation9] sm:$0xf]
        %v1625 = vld [vmem:[#allocation9 + $0x4] sm:$0xf]
        %v1626 = vld [vmem:[#allocation9 + $0x8] sm:$0xf]
        %v1627 = vld [vmem:[#allocation9 + $0xc] sm:$0xf]
        %v1628 = vld [vmem:[%s11] sm:$0x1]
        %v1630 = vperm.slane %v1628, 0
        %v1636 = vunpack.c.l.b16 %v1624
        %v1637 = vunpack.c.l.b16 %v1625
        %v1638 = vunpack.c.l.b16 %v1626
        %v1639 = vunpack.c.l.b16 %v1627
        %v1640 = vpack.c.b16 %v1637, %v1636
        %v1641 = vpack.c.b16 %v1639, %v1638
        %v1645 = vsel %vm1067, %v1623, 0
        %1647 = vmatpush.bf16.msra.mxu0 0
        %1648 = vmatpush.bf16.msra.mxu0 0
        %1649 = vmatpush.bf16.msra.mxu0 0
        %1650 = vmatpush.bf16.msra.mxu0 0
        %1651 = vmatpush.bf16.msra.mxu0 0
        %1652 = vmatpush.bf16.msra.mxu0 0
        %1653 = vmatpush.bf16.msra.mxu0 %v1641
        %1654 = vmatpush.bf16.msra.mxu0 %v1640
        %1655 = vmatmul.bf16.gmra.mxu0 %v1645
        %v1656 = vpop.f32.mrf.mxu0
        %v1657 = vadd.f32 %v1630, %v1656
        %v1658 = vpop.f32.mrf.mxu0
        %1659 = vdwg.mxu0
        %v1660 = vmax.f32 %v1657, 0.0
        %v1661 = vpack.c.bf16 %v1660, %v1660
        %v1662 = vld [vmem:[%s12] sm:$0xf]
        %v1663 = vld [vmem:[%s12 + $0x4] sm:$0xf]
        %v1664 = vld [vmem:[%s12 + $0x8] sm:$0xf]
        %v1665 = vld [vmem:[%s12 + $0xc] sm:$0xf]
        %v1666 = vld [vmem:[%s12 + $0x10] sm:$0xf]
        %v1667 = vld [vmem:[%s12 + $0x14] sm:$0xf]
        %v1668 = vld [vmem:[%s12 + $0x18] sm:$0xf]
        %v1669 = vld [vmem:[%s12 + $0x1c] sm:$0xf]
        %v1670 = vld [vmem:[%s13] sm:$0x1]
        %v1672 = vperm.slane %v1670, 0
        %v1682 = vunpack.c.l.b16 %v1662
        %v1683 = vunpack.c.l.b16 %v1663
        %v1684 = vunpack.c.l.b16 %v1664
        %v1685 = vunpack.c.l.b16 %v1665
        %v1686 = vunpack.c.l.b16 %v1666
        %v1687 = vunpack.c.l.b16 %v1667
        %v1688 = vunpack.c.l.b16 %v1668
        %v1689 = vunpack.c.l.b16 %v1669
        %v1690 = vpack.c.b16 %v1683, %v1682
        %v1691 = vpack.c.b16 %v1685, %v1684
        %v1692 = vpack.c.b16 %v1687, %v1686
        %v1693 = vpack.c.b16 %v1689, %v1688
        %vm1698 = vcmask 523264
        %v1700 = vsel %vm1698, %v1661, 0
        %1702 = vmatpush.bf16.msra.mxu0 0
        %1703 = vmatpush.bf16.msra.mxu0 0
        %1704 = vmatpush.bf16.msra.mxu0 0
        %1705 = vmatpush.bf16.msra.mxu0 0
        %1706 = vmatpush.bf16.msra.mxu0 %v1693
        %1707 = vmatpush.bf16.msra.mxu0 %v1692
        %1708 = vmatpush.bf16.msra.mxu0 %v1691
        %1709 = vmatpush.bf16.msra.mxu0 %v1690
        %1710 = vmatmul.bf16.gmra.mxu0 %v1700
        %v1711 = vpop.f32.mrf.mxu0
        %v1712 = vadd.f32 %v1672, %v1711
        %v1713 = vpop.f32.mrf.mxu0
        %1714 = vdwg.mxu0
        %v1715 = vadd.f32 %v1712, %v1622
        %v1716 = vsel %vm1067, %v1715, 0.0
        %1717 = vadd.xlane.f32.xlu0 %v1716
        %v1718 = vpop.xlane.xlu0 %1717
        %v1719 = vmul.f32 %v1718, %v1593
        %v1720 = vsub.f32 %v1715, %v1719
        %v1721 = vmul.f32 %v1720, %v1720
        %v1722 = vsel %vm1067, %v1721, 0.0
        %1723 = vadd.xlane.f32.xlu0 %v1722
        %v1724 = vpop.xlane.xlu0 %1723
        %v1725 = vmul.f32 %v1724, %v1593
        %v1726 = vadd.f32 %v1725, 1e-05
        %v1727 = vrsqrt.pop %v1726
        %v1728 = vmul.f32 %v1727, %v1726
        %v1729 = vmul.f32 %v1728, %v1727
        %v1730 = vmul.f32 0.5, %v1729
        %v1731 = vsub.f32 1.5, %v1730
        %v1732 = vmul.f32 %v1727, %v1731
        %vm1733 = vweird.f32 %v1726
        %vm1734 = vweird.f32 %v1727
        %vm1735 = vmor %vm1733, %vm1734
        %v1736 = vsel %vm1735, %v1727, %v1732
        %v1737 = vmul.f32 %v1720, %v1736
        %v1738 = vld [vmem:[%s14] sm:$0x1]
        %v1740 = vperm.slane %v1738, 0
        %v1742 = vmul.f32 %v1737, %v1740
        %v1743 = vld [vmem:[%s15] sm:$0x1]
        %v1745 = vperm.slane %v1743, 0
        %v1747 = vadd.f32 %v1742, %v1745
        %1748 = vst.msk [vmem:[%s606] sm:$0xff] %vm1067, %v1747
        %s1749 = sand.u32 %s404, 1
        %s1750 = scalar_lea.sflag [#allocation6], %s1749
        %s1751 = sand.u32 %s404, 1
        %s1752 = smul.addr %s1751, 8
        %s1753 = scalar_lea.vmem [#allocation10], %s1752
        // Predicated region
        $region101: #{tpu_custom_call.1} parent=83 // pred_check
          %p1754 = pneg %p414
        $region102: #{tpu_custom_call.1} parent=83 // pred_check_branch
          %1756 = sbr.rel (%p1754) target = $region104
        $region103: #{tpu_custom_call.1} parent=83 // pred_region
          %1758 = vsyncadd %s1750, 0
          %s1759 = sadd.s32 %s39, %s38
          %s1760 = smul.addr %s1759, 8
          %s1761 = scalar_lea.hbm %s16, %s1760
          %s1763 = sshll.u32 %s1753, 4
          %s1764 = int_to_ptr.vmem [resolvable:$true] %s1763
          %s1765 = sshll.u32 %s1761, 4
          %s1766 = int_to_ptr.hbm [resolvable:$true] %s1765
          %1768 = dma.vmem_to_hbm [thread:$0]  %s1764, 128, %s1766, %s1750
        $region104: #{tpu_custom_call.1} parent=83 // pred_fallthru
          _
      $region84: #{tpu_custom_call.1} parent=5 // pred_fallthru
        _
      %p1769 = scmp.le.s32.totalorder 2, %s29
      // Predicated region
      $region105: #{tpu_custom_call.1} parent=5 // pred_check
        %p1770 = pneg %p1769
      $region106: #{tpu_custom_call.1} parent=5 // pred_check_branch
        %1772 = sbr.rel (%p1770) target = $region108
      $region107: #{tpu_custom_call.1} parent=5 // pred_region
        %s1773 = ssub.s32 %s29, 2
        // Predicated region
        $region109: #{tpu_custom_call.1} parent=107 // pred_check
          %p1774 = pneg %p420
        $region110: #{tpu_custom_call.1} parent=107 // pred_check_branch
          %1776 = sbr.rel (%p1774) target = $region112
        $region111: #{tpu_custom_call.1} parent=107 // pred_region
          %s1777 = sand.u32 %s405, 1
          %s1778 = scalar_lea.sflag [#allocation6], %s1777
          %s1779 = sand.u32 %s405, 1
          %s1780 = smul.addr %s1779, 8
          %s1781 = scalar_lea.vmem [#allocation10], %s1780
          %1783 = dma.done %s1778, 128
        $region112: #{tpu_custom_call.1} parent=107 // pred_fallthru
          _
      $region108: #{tpu_custom_call.1} parent=5 // pred_fallthru
        _
    $region6: #{tpu_custom_call.1} parent=1 // loop_footer
      %s33 = sadd.s32 1, %s29
    $region7: #{tpu_custom_call.1} parent=1 // loop_footer_branch
      %28 = sbr.rel target = $region3
    $region8: #{tpu_custom_call.1} parent=1 // loop_exit
      _
    %1784 = vsyncpa [#allocation5], 1
    %s1785 = scalar_lea.sflag [#allocation5], 1
    %1786 = vsyncpa %s1785, 1
    %1787 = vsyncpa [#allocation8], 1
    %1788 = vsyncpa [#allocation6], 1
    %s1789 = scalar_lea.sflag [#allocation6], 1
    %1790 = vsyncpa %s1789, 1

// kernel: tpu_custom_call.1
$region0: #{tpu_custom_call.1}
  #allocation0 [shape = 'u32[]', space=smem, size = 0x4, offset = 0x4, fixed_abs, tag = 'smem constant byte address 0x4 - core index']
  #allocation1 [shape = 'u32[72,128]{1,0:T(1,128)}', space=vmem, size = 0x9000, scoped, tag = 'internal scratch']
  #allocation2 [shape = 'bf16[4,8,8]{2,1,0:T(8,128)(2,1)}', space=vmem, size = 0x2000, scoped, tag = 'scratch operand']
  #allocation3 [shape = 'bf16[4,8,8]{2,1,0:T(8,128)(2,1)}', space=vmem, size = 0x2000, scoped, tag = 'scratch operand']
  %s0 = inlined_call_operand.vmem [shape: f32[2,8,32], index: 0, kind: input, shape index: {}]
  %s1 = inlined_call_operand.hbm [shape: bf16[2,8,32], index: 1, kind: input, shape index: {}]
  %s2 = inlined_call_operand.vmem [shape: bf16[32,32], index: 2, kind: input, shape index: {}]
  %s3 = inlined_call_operand.vmem [shape: f32[1,32], index: 3, kind: input, shape index: {}]
  %s4 = inlined_call_operand.vmem [shape: bf16[32,64], index: 4, kind: input, shape index: {}]
  %s5 = inlined_call_operand.vmem [shape: f32[1,64], index: 5, kind: input, shape index: {}]
  %s6 = inlined_call_operand.hbm [shape: bf16[32,32], index: 6, kind: input, shape index: {}]
  %s7 = inlined_call_operand.vmem [shape: f32[1,32], index: 7, kind: input, shape index: {}]
  %s8 = inlined_call_operand.vmem [shape: f32[1,32], index: 8, kind: input, shape index: {}]
  %s9 = inlined_call_operand.vmem [shape: f32[1,32], index: 9, kind: input, shape index: {}]
  %s10 = inlined_call_operand.hbm [shape: bf16[32,64], index: 10, kind: input, shape index: {}]
  %s11 = inlined_call_operand.vmem [shape: f32[1,64], index: 11, kind: input, shape index: {}]
  %s12 = inlined_call_operand.vmem [shape: bf16[64,32], index: 12, kind: input, shape index: {}]
  %s13 = inlined_call_operand.vmem [shape: f32[1,32], index: 13, kind: input, shape index: {}]
  %s14 = inlined_call_operand.vmem [shape: f32[1,32], index: 14, kind: input, shape index: {}]
  %s15 = inlined_call_operand.vmem [shape: f32[1,32], index: 15, kind: input, shape index: {}]
  %s16 = inlined_call_operand.hbm [shape: f32[2,8,32], index: 16, kind: output, shape index: {}]
  %s17 = sld [smem:[#allocation0]]
  $region113: #{tpu_custom_call.1} parent=0
    _
  %s19 = ssub.s32 1, %s17
  %s20 = scalar_select 0, %s19, %s17
  $region1: #{tpu_custom_call.1} parent=0
    #allocation4 [shape = 'u8[4096]{0}', space=vmem, size = 0x1000, scoped, tag = 'input window, operand 1']
    #allocation5 [shape = 's32[2]{0}', space=sflag, size = 0x8, scoped, tag = 'scoped memory for tpu_custom_call.1']
    #allocation6 [shape = 's32[2]{0}', space=sflag, size = 0x8, scoped, tag = 'scoped memory for tpu_custom_call.1']
    #allocation7 [shape = 'u8[8192]{0}', space=vmem, size = 0x2000, scoped, tag = 'input window, operand 6, single buffered']
    #allocation8 [shape = 's32[1]{0}', space=sflag, size = 0x4, scoped, tag = 'scoped memory for tpu_custom_call.1']
    #allocation9 [shape = 'u8[8192]{0}', space=vmem, size = 0x2000, scoped, tag = 'input window, operand 10, single buffered']
    #allocation10 [shape = 'u8[8192]{0}', space=vmem, size = 0x2000, scoped, tag = 'output window, operand 0']
    %21 = vsyncpa [#allocation5], 0
    %s22 = scalar_lea.sflag [#allocation5], 1
    %23 = vsyncpa %s22, 0
    %24 = vsyncpa [#allocation8], 0
    %25 = vsyncpa [#allocation6], 0
    %s26 = scalar_lea.sflag [#allocation6], 1
    %27 = vsyncpa %s26, 0
    loop: start=0, step=1, limit=4
    $region2: #{tpu_custom_call.1} parent=1 // loop_pre_header
      _
    $region3: #{tpu_custom_call.1} parent=1 // loop_header
      %s29 = sphi 0, %s33
      %p30 = scmp.ge.s32.totalorder %s29, 4
      %s36 = sphi 0, %s48
      %s37 = sphi 0, %s44
      %s38 = sphi 0, %s36
      %s39 = sphi 0, %s37
      %s40 = sphi 0, %s38
      %s41 = sphi 0, %s39
      %s53 = sphi 0, %s55
      %s56 = sphi 0, %s53
      %s57 = sphi 0, %s56
      %s73 = sphi 0, %s57
      %s79 = sphi 0, %s81
      %s82 = sphi 0, %s79
      %s83 = sphi 0, %s82
      %s99 = sphi 0, %s83
      %s103 = sphi 0, %s103
      %s105 = sphi 0, %s103
      %s106 = sphi 0, %s105
      %s120 = sphi 0, %s106
      %s124 = sphi 0, %s124
      %s126 = sphi 0, %s124
      %s127 = sphi 0, %s126
      %s141 = sphi 0, %s127
      %s145 = sphi 0, %s145
      %s147 = sphi 0, %s145
      %s148 = sphi 0, %s147
      %s162 = sphi 0, %s148
      %s166 = sphi 0, %s166
      %s168 = sphi 0, %s166
      %s169 = sphi 0, %s168
      %s183 = sphi 0, %s169
      %s187 = sphi 0, %s187
      %s189 = sphi 0, %s187
      %s190 = sphi 0, %s189
      %s204 = sphi 0, %s190
      %s208 = sphi 0, %s208
      %s210 = sphi 0, %s208
      %s211 = sphi 0, %s210
      %s225 = sphi 0, %s211
      %s229 = sphi 0, %s229
      %s231 = sphi 0, %s229
      %s232 = sphi 0, %s231
      %s246 = sphi 0, %s232
      %s250 = sphi 0, %s250
      %s252 = sphi 0, %s250
      %s253 = sphi 0, %s252
      %s267 = sphi 0, %s253
      %s271 = sphi 0, %s271
      %s273 = sphi 0, %s271
      %s274 = sphi 0, %s273
      %s288 = sphi 0, %s274
      %s292 = sphi 0, %s292
      %s294 = sphi 0, %s292
      %s295 = sphi 0, %s294
      %s309 = sphi 0, %s295
      %s313 = sphi 0, %s313
      %s315 = sphi 0, %s313
      %s316 = sphi 0, %s315
      %s330 = sphi 0, %s316
      %s334 = sphi 0, %s334
      %s336 = sphi 0, %s334
      %s337 = sphi 0, %s336
      %s351 = sphi 0, %s337
      %s355 = sphi 0, %s355
      %s357 = sphi 0, %s355
      %s358 = sphi 0, %s357
      %s372 = sphi 0, %s358
      %s376 = sphi 0, %s376
      %s378 = sphi 0, %s376
      %s379 = sphi 0, %s378
      %s393 = sphi 0, %s379
      %s401 = sphi 0, %s403
      %s404 = sphi 0, %s401
      %s405 = sphi 0, %s404
      %s421 = sphi 0, %s405
    $region4: #{tpu_custom_call.1} parent=1 // loop_header_branch
      %32 = sbr.rel (%p30) target = $region8
    $region5: #{tpu_custom_call.1} parent=1 // loop_body
      %s34 = ssub.s32 %s29, 1
      %s35 = ssub.s32 %s29, 2
      %s42 = sadd.s32 1, %s37
      %p43 = scmp.ge.s32.totalorder %s42, 1
      %s44 = scalar_select %p43, 0, %s42
      %s45 = sadd.s32 1, %s36
      %s46 = scalar_select %p43, %s45, %s36
      %p47 = scmp.ge.s32.totalorder %s46, 2
      %s48 = scalar_select %p47, 0, %s46
      %s49 = ssub.s32 %s36, %s48
      %s50 = ssub.s32 %s37, %s44
      %s51 = sor.u32 %s49, %s50
      %p52 = scmp.eq.s32.totalorder %s51, 0
      %s54 = sadd.s32 %s53, 1
      %s55 = scalar_select %p52, %s53, %s54
      %p58 = pneg %p52
      %p59 = scmp.eq.s32.totalorder %s29, 1
      %p60 = por %p58, %p59
      %p61 = scmp.ne.s32.totalorder %s53, %s56
      %p62 = scmp.eq.s32.totalorder %s29, 0
      %p63 = por %p61, %p62
      %p64 = scmp.ne.s32.totalorder %s53, %s56
      %p65 = scmp.eq.s32.totalorder %s34, 1
      %p66 = por %p64, %p65
      %p67 = scmp.ne.s32.totalorder %s56, %s57
      %p68 = scmp.eq.s32.totalorder %s34, 0
      %p69 = por %p67, %p68
      %p70 = scmp.ne.s32.totalorder %s56, %s57
      %p71 = scmp.eq.s32.totalorder %s35, 1
      %p72 = por %p70, %p71
      %p74 = scmp.ne.s32.totalorder %s57, %s73
      %p75 = scmp.eq.s32.totalorder %s35, 0
      %p76 = por %p74, %p75
      %s77 = ssub.s32 %s36, %s48
      %p78 = scmp.eq.s32.totalorder %s77, 0
      %s80 = sadd.s32 %s79, 1
      %s81 = scalar_select %p78, %s79, %s80
      %p84 = pneg %p78
      %p85 = scmp.eq.s32.totalorder %s29, 1
      %p86 = por %p84, %p85
      %p87 = scmp.ne.s32.totalorder %s79, %s82
      %p88 = scmp.eq.s32.totalorder %s29, 0
      %p89 = por %p87, %p88
      %p90 = scmp.ne.s32.totalorder %s79, %s82
      %p91 = scmp.eq.s32.totalorder %s34, 1
      %p92 = por %p90, %p91
      %p93 = scmp.ne.s32.totalorder %s82, %s83
      %p94 = scmp.eq.s32.totalorder %s34, 0
      %p95 = por %p93, %p94
      %p96 = scmp.ne.s32.totalorder %s82, %s83
      %p97 = scmp.eq.s32.totalorder %s35, 1
      %p98 = por %p96, %p97
      %p100 = scmp.ne.s32.totalorder %s83, %s99
      %p101 = scmp.eq.s32.totalorder %s35, 0
      %p102 = por %p100, %p101
      %s104 = sadd.s32 %s103, 1
      %p107 = scmp.eq.s32.totalorder %s29, 1
      %p108 = scmp.ne.s32.totalorder %s103, %s105
      %p109 = scmp.eq.s32.totalorder %s29, 0
      %p110 = por %p108, %p109
      %p111 = scmp.ne.s32.totalorder %s103, %s105
      %p112 = scmp.eq.s32.totalorder %s34, 1
      %p113 = por %p111, %p112
      %p114 = scmp.ne.s32.totalorder %s105, %s106
      %p115 = scmp.eq.s32.totalorder %s34, 0
      %p116 = por %p114, %p115
      %p117 = scmp.ne.s32.totalorder %s105, %s106
      %p118 = scmp.eq.s32.totalorder %s35, 1
      %p119 = por %p117, %p118
      %p121 = scmp.ne.s32.totalorder %s106, %s120
      %p122 = scmp.eq.s32.totalorder %s35, 0
      %p123 = por %p121, %p122
      %s125 = sadd.s32 %s124, 1
      %p128 = scmp.eq.s32.totalorder %s29, 1
      %p129 = scmp.ne.s32.totalorder %s124, %s126
      %p130 = scmp.eq.s32.totalorder %s29, 0
      %p131 = por %p129, %p130
      %p132 = scmp.ne.s32.totalorder %s124, %s126
      %p133 = scmp.eq.s32.totalorder %s34, 1
      %p134 = por %p132, %p133
      %p135 = scmp.ne.s32.totalorder %s126, %s127
      %p136 = scmp.eq.s32.totalorder %s34, 0
      %p137 = por %p135, %p136
      %p138 = scmp.ne.s32.totalorder %s126, %s127
      %p139 = scmp.eq.s32.totalorder %s35, 1
      %p140 = por %p138, %p139
      %p142 = scmp.ne.s32.totalorder %s127, %s141
      %p143 = scmp.eq.s32.totalorder %s35, 0
      %p144 = por %p142, %p143
      %s146 = sadd.s32 %s145, 1
      %p149 = scmp.eq.s32.totalorder %s29, 1
      %p150 = scmp.ne.s32.totalorder %s145, %s147
      %p151 = scmp.eq.s32.totalorder %s29, 0
      %p152 = por %p150, %p151
      %p153 = scmp.ne.s32.totalorder %s145, %s147
      %p154 = scmp.eq.s32.totalorder %s34, 1
      %p155 = por %p153, %p154
      %p156 = scmp.ne.s32.totalorder %s147, %s148
      %p157 = scmp.eq.s32.totalorder %s34, 0
      %p158 = por %p156, %p157
      %p159 = scmp.ne.s32.totalorder %s147, %s148
      %p160 = scmp.eq.s32.totalorder %s35, 1
      %p161 = por %p159, %p160
      %p163 = scmp.ne.s32.totalorder %s148, %s162
      %p164 = scmp.eq.s32.totalorder %s35, 0
      %p165 = por %p163, %p164
      %s167 = sadd.s32 %s166, 1
      %p170 = scmp.eq.s32.totalorder %s29, 1
      %p171 = scmp.ne.s32.totalorder %s166, %s168
      %p172 = scmp.eq.s32.totalorder %s29, 0
      %p173 = por %p171, %p172
      %p174 = scmp.ne.s32.totalorder %s166, %s168
      %p175 = scmp.eq.s32.totalorder %s34, 1
      %p176 = por %p174, %p175
      %p177 = scmp.ne.s32.totalorder %s168, %s169
      %p178 = scmp.eq.s32.totalorder %s34, 0
      %p179 = por %p177, %p178
      %p180 = scmp.ne.s32.totalorder %s168, %s169
      %p181 = scmp.eq.s32.totalorder %s35, 1
      %p182 = por %p180, %p181
      %p184 = scmp.ne.s32.totalorder %s169, %s183
      %p185 = scmp.eq.s32.totalorder %s35, 0
      %p186 = por %p184, %p185
      %s188 = sadd.s32 %s187, 1
      %p191 = scmp.eq.s32.totalorder %s29, 1
      %p192 = scmp.ne.s32.totalorder %s187, %s189
      %p193 = scmp.eq.s32.totalorder %s29, 0
      %p194 = por %p192, %p193
      %p195 = scmp.ne.s32.totalorder %s187, %s189
      %p196 = scmp.eq.s32.totalorder %s34, 1
      %p197 = por %p195, %p196
      %p198 = scmp.ne.s32.totalorder %s189, %s190
      %p199 = scmp.eq.s32.totalorder %s34, 0
      %p200 = por %p198, %p199
      %p201 = scmp.ne.s32.totalorder %s189, %s190
      %p202 = scmp.eq.s32.totalorder %s35, 1
      %p203 = por %p201, %p202
      %p205 = scmp.ne.s32.totalorder %s190, %s204
      %p206 = scmp.eq.s32.totalorder %s35, 0
      %p207 = por %p205, %p206
      %s209 = sadd.s32 %s208, 1
      %p212 = scmp.eq.s32.totalorder %s29, 1
      %p213 = scmp.ne.s32.totalorder %s208, %s210
      %p214 = scmp.eq.s32.totalorder %s29, 0
      %p215 = por %p213, %p214
      %p216 = scmp.ne.s32.totalorder %s208, %s210
      %p217 = scmp.eq.s32.totalorder %s34, 1
      %p218 = por %p216, %p217
      %p219 = scmp.ne.s32.totalorder %s210, %s211
      %p220 = scmp.eq.s32.totalorder %s34, 0
      %p221 = por %p219, %p220
      %p222 = scmp.ne.s32.totalorder %s210, %s211
      %p223 = scmp.eq.s32.totalorder %s35, 1
      %p224 = por %p222, %p223
      %p226 = scmp.ne.s32.totalorder %s211, %s225
      %p227 = scmp.eq.s32.totalorder %s35, 0
      %p228 = por %p226, %p227
      %s230 = sadd.s32 %s229, 1
      %p233 = scmp.eq.s32.totalorder %s29, 1
      %p234 = scmp.ne.s32.totalorder %s229, %s231
      %p235 = scmp.eq.s32.totalorder %s29, 0
      %p236 = por %p234, %p235
      %p237 = scmp.ne.s32.totalorder %s229, %s231
      %p238 = scmp.eq.s32.totalorder %s34, 1
      %p239 = por %p237, %p238
      %p240 = scmp.ne.s32.totalorder %s231, %s232
      %p241 = scmp.eq.s32.totalorder %s34, 0
      %p242 = por %p240, %p241
      %p243 = scmp.ne.s32.totalorder %s231, %s232
      %p244 = scmp.eq.s32.totalorder %s35, 1
      %p245 = por %p243, %p244
      %p247 = scmp.ne.s32.totalorder %s232, %s246
      %p248 = scmp.eq.s32.totalorder %s35, 0
      %p249 = por %p247, %p248
      %s251 = sadd.s32 %s250, 1
      %p254 = scmp.eq.s32.totalorder %s29, 1
      %p255 = scmp.ne.s32.totalorder %s250, %s252
      %p256 = scmp.eq.s32.totalorder %s29, 0
      %p257 = por %p255, %p256
      %p258 = scmp.ne.s32.totalorder %s250, %s252
      %p259 = scmp.eq.s32.totalorder %s34, 1
      %p260 = por %p258, %p259
      %p261 = scmp.ne.s32.totalorder %s252, %s253
      %p262 = scmp.eq.s32.totalorder %s34, 0
      %p263 = por %p261, %p262
      %p264 = scmp.ne.s32.totalorder %s252, %s253
      %p265 = scmp.eq.s32.totalorder %s35, 1
      %p266 = por %p264, %p265
      %p268 = scmp.ne.s32.totalorder %s253, %s267
      %p269 = scmp.eq.s32.totalorder %s35, 0
      %p270 = por %p268, %p269
      %s272 = sadd.s32 %s271, 1
      %p275 = scmp.eq.s32.totalorder %s29, 1
      %p276 = scmp.ne.s32.totalorder %s271, %s273
      %p277 = scmp.eq.s32.totalorder %s29, 0
      %p278 = por %p276, %p277
      %p279 = scmp.ne.s32.totalorder %s271, %s273
      %p280 = scmp.eq.s32.totalorder %s34, 1
      %p281 = por %p279, %p280
      %p282 = scmp.ne.s32.totalorder %s273, %s274
      %p283 = scmp.eq.s32.totalorder %s34, 0
      %p284 = por %p282, %p283
      %p285 = scmp.ne.s32.totalorder %s273, %s274
      %p286 = scmp.eq.s32.totalorder %s35, 1
      %p287 = por %p285, %p286
      %p289 = scmp.ne.s32.totalorder %s274, %s288
      %p290 = scmp.eq.s32.totalorder %s35, 0
      %p291 = por %p289, %p290
      %s293 = sadd.s32 %s292, 1
      %p296 = scmp.eq.s32.totalorder %s29, 1
      %p297 = scmp.ne.s32.totalorder %s292, %s294
      %p298 = scmp.eq.s32.totalorder %s29, 0
      %p299 = por %p297, %p298
      %p300 = scmp.ne.s32.totalorder %s292, %s294
      %p301 = scmp.eq.s32.totalorder %s34, 1
      %p302 = por %p300, %p301
      %p303 = scmp.ne.s32.totalorder %s294, %s295
      %p304 = scmp.eq.s32.totalorder %s34, 0
      %p305 = por %p303, %p304
      %p306 = scmp.ne.s32.totalorder %s294, %s295
      %p307 = scmp.eq.s32.totalorder %s35, 1
      %p308 = por %p306, %p307
      %p310 = scmp.ne.s32.totalorder %s295, %s309
      %p311 = scmp.eq.s32.totalorder %s35, 0
      %p312 = por %p310, %p311
      %s314 = sadd.s32 %s313, 1
      %p317 = scmp.eq.s32.totalorder %s29, 1
      %p318 = scmp.ne.s32.totalorder %s313, %s315
      %p319 = scmp.eq.s32.totalorder %s29, 0
      %p320 = por %p318, %p319
      %p321 = scmp.ne.s32.totalorder %s313, %s315
      %p322 = scmp.eq.s32.totalorder %s34, 1
      %p323 = por %p321, %p322
      %p324 = scmp.ne.s32.totalorder %s315, %s316
      %p325 = scmp.eq.s32.totalorder %s34, 0
      %p326 = por %p324, %p325
      %p327 = scmp.ne.s32.totalorder %s315, %s316
      %p328 = scmp.eq.s32.totalorder %s35, 1
      %p329 = por %p327, %p328
      %p331 = scmp.ne.s32.totalorder %s316, %s330
      %p332 = scmp.eq.s32.totalorder %s35, 0
      %p333 = por %p331, %p332
      %s335 = sadd.s32 %s334, 1
      %p338 = scmp.eq.s32.totalorder %s29, 1
      %p339 = scmp.ne.s32.totalorder %s334, %s336
      %p340 = scmp.eq.s32.totalorder %s29, 0
      %p341 = por %p339, %p340
      %p342 = scmp.ne.s32.totalorder %s334, %s336
      %p343 = scmp.eq.s32.totalorder %s34, 1
      %p344 = por %p342, %p343
      %p345 = scmp.ne.s32.totalorder %s336, %s337
      %p346 = scmp.eq.s32.totalorder %s34, 0
      %p347 = por %p345, %p346
      %p348 = scmp.ne.s32.totalorder %s336, %s337
      %p349 = scmp.eq.s32.totalorder %s35, 1
      %p350 = por %p348, %p349
      %p352 = scmp.ne.s32.totalorder %s337, %s351
      %p353 = scmp.eq.s32.totalorder %s35, 0
      %p354 = por %p352, %p353
      %s356 = sadd.s32 %s355, 1
      %p359 = scmp.eq.s32.totalorder %s29, 1
      %p360 = scmp.ne.s32.totalorder %s355, %s357
      %p361 = scmp.eq.s32.totalorder %s29, 0
      %p362 = por %p360, %p361
      %p363 = scmp.ne.s32.totalorder %s355, %s357
      %p364 = scmp.eq.s32.totalorder %s34, 1
      %p365 = por %p363, %p364
      %p366 = scmp.ne.s32.totalorder %s357, %s358
      %p367 = scmp.eq.s32.totalorder %s34, 0
      %p368 = por %p366, %p367
      %p369 = scmp.ne.s32.totalorder %s357, %s358
      %p370 = scmp.eq.s32.totalorder %s35, 1
      %p371 = por %p369, %p370
      %p373 = scmp.ne.s32.totalorder %s358, %s372
      %p374 = scmp.eq.s32.totalorder %s35, 0
      %p375 = por %p373, %p374
      %s377 = sadd.s32 %s376, 1
      %p380 = scmp.eq.s32.totalorder %s29, 1
      %p381 = scmp.ne.s32.totalorder %s376, %s378
      %p382 = scmp.eq.s32.totalorder %s29, 0
      %p383 = por %p381, %p382
      %p384 = scmp.ne.s32.totalorder %s376, %s378
      %p385 = scmp.eq.s32.totalorder %s34, 1
      %p386 = por %p384, %p385
      %p387 = scmp.ne.s32.totalorder %s378, %s379
      %p388 = scmp.eq.s32.totalorder %s34, 0
      %p389 = por %p387, %p388
      %p390 = scmp.ne.s32.totalorder %s378, %s379
      %p391 = scmp.eq.s32.totalorder %s35, 1
      %p392 = por %p390, %p391
      %p394 = scmp.ne.s32.totalorder %s379, %s393
      %p395 = scmp.eq.s32.totalorder %s35, 0
      %p396 = por %p394, %p395
      %s397 = ssub.s32 %s36, %s48
      %s398 = ssub.s32 %s37, %s44
      %s399 = sor.u32 %s397, %s398
      %p400 = scmp.eq.s32.totalorder %s399, 0
      %s402 = sadd.s32 %s401, 1
      %s403 = scalar_select %p400, %s401, %s402
      %p406 = pneg %p400
      %p407 = scmp.eq.s32.totalorder %s29, 1
      %p408 = por %p406, %p407
      %p409 = scmp.ne.s32.totalorder %s401, %s404
      %p410 = scmp.eq.s32.totalorder %s29, 0
      %p411 = por %p409, %p410
      %p412 = scmp.ne.s32.totalorder %s401, %s404
      %p413 = scmp.eq.s32.totalorder %s34, 1
      %p414 = por %p412, %p413
      %p415 = scmp.ne.s32.totalorder %s404, %s405
      %p416 = scmp.eq.s32.totalorder %s34, 0
      %p417 = por %p415, %p416
      %p418 = scmp.ne.s32.totalorder %s404, %s405
      %p419 = scmp.eq.s32.totalorder %s35, 1
      %p420 = por %p418, %p419
      %p422 = scmp.ne.s32.totalorder %s405, %s421
      %p423 = scmp.eq.s32.totalorder %s35, 0
      %p424 = por %p422, %p423
      %p425 = scmp.le.s32.totalorder 1, %s29
      %p426 = scmp.lt.s32.totalorder %s29, 3
      %p427 = pnand %p425, %p426
      %p428 = pneg %p427
      // Predicated region
      $region9: #{tpu_custom_call.1} parent=5 // pred_check
        _
      $region10: #{tpu_custom_call.1} parent=5 // pred_check_branch
        %430 = sbr.rel (%p427) target = $region12
      $region11: #{tpu_custom_call.1} parent=5 // pred_region
        %s431 = ssub.s32 %s29, 1
        // Predicated region
        $region13: #{tpu_custom_call.1} parent=11 // pred_check
          %p432 = pneg %p116
        $region14: #{tpu_custom_call.1} parent=11 // pred_check_branch
          %434 = sbr.rel (%p432) target = $region16
        $region15: #{tpu_custom_call.1} parent=11 // pred_region
          _
        $region16: #{tpu_custom_call.1} parent=11 // pred_fallthru
          _
        // Predicated region
        $region17: #{tpu_custom_call.1} parent=11 // pred_check
          %p435 = pneg %p137
        $region18: #{tpu_custom_call.1} parent=11 // pred_check_branch
          %437 = sbr.rel (%p435) target = $region20
        $region19: #{tpu_custom_call.1} parent=11 // pred_region
          _
        $region20: #{tpu_custom_call.1} parent=11 // pred_fallthru
          _
        // Predicated region
        $region21: #{tpu_custom_call.1} parent=11 // pred_check
          %p438 = pneg %p158
        $region22: #{tpu_custom_call.1} parent=11 // pred_check_branch
          %440 = sbr.rel (%p438) target = $region24
        $region23: #{tpu_custom_call.1} parent=11 // pred_region
          _
        $region24: #{tpu_custom_call.1} parent=11 // pred_fallthru
          _
        // Predicated region
        $region25: #{tpu_custom_call.1} parent=11 // pred_check
          %p441 = pneg %p179
        $region26: #{tpu_custom_call.1} parent=11 // pred_check_branch
          %443 = sbr.rel (%p441) target = $region28
        $region27: #{tpu_custom_call.1} parent=11 // pred_region
          _
        $region28: #{tpu_custom_call.1} parent=11 // pred_fallthru
          _
        // Predicated region
        $region29: #{tpu_custom_call.1} parent=11 // pred_check
          %p444 = pneg %p200
        $region30: #{tpu_custom_call.1} parent=11 // pred_check_branch
          %446 = sbr.rel (%p444) target = $region32
        $region31: #{tpu_custom_call.1} parent=11 // pred_region
          %448 = vsyncadd [#allocation8], 0
          %s449 = sshll.u32 %s6, 4
          %s450 = int_to_ptr.hbm [resolvable:$true] %s449
          %s451 = sshll.u32 [#allocation7], 4
          %s452 = int_to_ptr.vmem [resolvable:$true] %s451
          %457 = dma.hbm_to_vmem [thread:$0]  %s450, 256, %s452, [#allocation8], 64, 64, 4
        $region32: #{tpu_custom_call.1} parent=11 // pred_fallthru
          _
        // Predicated region
        $region33: #{tpu_custom_call.1} parent=11 // pred_check
          %p458 = pneg %p221
        $region34: #{tpu_custom_call.1} parent=11 // pred_check_branch
          %460 = sbr.rel (%p458) target = $region36
        $region35: #{tpu_custom_call.1} parent=11 // pred_region
          _
        $region36: #{tpu_custom_call.1} parent=11 // pred_fallthru
          _
        // Predicated region
        $region37: #{tpu_custom_call.1} parent=11 // pred_check
          %p461 = pneg %p242
        $region38: #{tpu_custom_call.1} parent=11 // pred_check_branch
          %463 = sbr.rel (%p461) target = $region40
        $region39: #{tpu_custom_call.1} parent=11 // pred_region
          _
        $region40: #{tpu_custom_call.1} parent=11 // pred_fallthru
          _
        // Predicated region
        $region41: #{tpu_custom_call.1} parent=11 // pred_check
          %p464 = pneg %p263
        $region42: #{tpu_custom_call.1} parent=11 // pred_check_branch
          %466 = sbr.rel (%p464) target = $region44
        $region43: #{tpu_custom_call.1} parent=11 // pred_region
          _
        $region44: #{tpu_custom_call.1} parent=11 // pred_fallthru
          _
        // Predicated region
        $region45: #{tpu_custom_call.1} parent=11 // pred_check
          %p467 = pneg %p284
        $region46: #{tpu_custom_call.1} parent=11 // pred_check_branch
          %469 = sbr.rel (%p467) target = $region48
        $region47: #{tpu_custom_call.1} parent=11 // pred_region
          %471 = vsyncadd [#allocation8], 0
          %s472 = sshll.u32 %s10, 4
          %s473 = int_to_ptr.hbm [resolvable:$true] %s472
          %s474 = sshll.u32 [#allocation9], 4
          %s475 = int_to_ptr.vmem [resolvable:$true] %s474
          %480 = dma.hbm_to_vmem [thread:$0]  %s473, 256, %s475, [#allocation8], 64, 64, 4
        $region48: #{tpu_custom_call.1} parent=11 // pred_fallthru
          _
        // Predicated region
        $region49: #{tpu_custom_call.1} parent=11 // pred_check
          %p481 = pneg %p305
        $region50: #{tpu_custom_call.1} parent=11 // pred_check_branch
          %483 = sbr.rel (%p481) target = $region52
        $region51: #{tpu_custom_call.1} parent=11 // pred_region
          _
        $region52: #{tpu_custom_call.1} parent=11 // pred_fallthru
          _
        // Predicated region
        $region53: #{tpu_custom_call.1} parent=11 // pred_check
          %p484 = pneg %p326
        $region54: #{tpu_custom_call.1} parent=11 // pred_check_branch
          %486 = sbr.rel (%p484) target = $region56
        $region55: #{tpu_custom_call.1} parent=11 // pred_region
          _
        $region56: #{tpu_custom_call.1} parent=11 // pred_fallthru
          _
        // Predicated region
        $region57: #{tpu_custom_call.1} parent=11 // pred_check
          %p487 = pneg %p347
        $region58: #{tpu_custom_call.1} parent=11 // pred_check_branch
          %489 = sbr.rel (%p487) target = $region60
        $region59: #{tpu_custom_call.1} parent=11 // pred_region
          _
        $region60: #{tpu_custom_call.1} parent=11 // pred_fallthru
          _
        // Predicated region
        $region61: #{tpu_custom_call.1} parent=11 // pred_check
          %p490 = pneg %p368
        $region62: #{tpu_custom_call.1} parent=11 // pred_check_branch
          %492 = sbr.rel (%p490) target = $region64
        $region63: #{tpu_custom_call.1} parent=11 // pred_region
          _
        $region64: #{tpu_custom_call.1} parent=11 // pred_fallthru
          _
        // Predicated region
        $region65: #{tpu_custom_call.1} parent=11 // pred_check
          %p493 = pneg %p389
        $region66: #{tpu_custom_call.1} parent=11 // pred_check_branch
          %495 = sbr.rel (%p493) target = $region68
        $region67: #{tpu_custom_call.1} parent=11 // pred_region
          _
        $region68: #{tpu_custom_call.1} parent=11 // pred_fallthru
          _
      $region12: #{tpu_custom_call.1} parent=5 // pred_fallthru
        _
      %p496 = scmp.lt.s32.totalorder %s29, 2
      // Predicated region
      $region69: #{tpu_custom_call.1} parent=5 // pred_check
        %p497 = pneg %p496
      $region70: #{tpu_custom_call.1} parent=5 // pred_check_branch
        %499 = sbr.rel (%p497) target = $region72
      $region71: #{tpu_custom_call.1} parent=5 // pred_region
        // Predicated region
        $region73: #{tpu_custom_call.1} parent=71 // pred_check
          %p500 = pneg %p63
        $region74: #{tpu_custom_call.1} parent=71 // pred_check_branch
          %502 = sbr.rel (%p500) target = $region76
        $region75: #{tpu_custom_call.1} parent=71 // pred_region
          %p503 = scmp.lt.s32.totalorder %s36, 1
          %s504 = scalar_select %p503, %s36, 1
          %p505 = scmp.lt.s32.totalorder %s37, 0
          %s506 = scalar_select %p505, %s37, 0
          %s507 = sadd.s32 %s506, %s504
          %s508 = smul.addr %s507, 8
          %s509 = scalar_lea.vmem %s0, %s508
        $region76: #{tpu_custom_call.1} parent=71 // pred_fallthru
          _
        // Predicated region
        $region77: #{tpu_custom_call.1} parent=71 // pred_check
          %p510 = pneg %p89
        $region78: #{tpu_custom_call.1} parent=71 // pred_check_branch
          %512 = sbr.rel (%p510) target = $region80
        $region79: #{tpu_custom_call.1} parent=71 // pred_region
          %s513 = sand.u32 %s79, 1
          %s514 = scalar_lea.sflag [#allocation5], %s513
          %s515 = sand.u32 %s79, 1
          %s516 = smul.addr %s515, 4
          %s517 = scalar_lea.vmem [#allocation4], %s516
          %519 = vsyncadd %s514, 0
          %s520 = smul.addr %s36, 4
          %s521 = scalar_lea.hbm %s1, %s520
          %s523 = sshll.u32 %s521, 4
          %s524 = int_to_ptr.hbm [resolvable:$true] %s523
          %s525 = sshll.u32 %s517, 4
          %s526 = int_to_ptr.vmem [resolvable:$true] %s525
          %528 = dma.hbm_to_vmem [thread:$0]  %s524, 64, %s526, %s514
        $region80: #{tpu_custom_call.1} parent=71 // pred_fallthru
          _
      $region72: #{tpu_custom_call.1} parent=5 // pred_fallthru
        _
      %p529 = scmp.le.s32.totalorder 1, %s29
      %p530 = scmp.lt.s32.totalorder %s29, 3
      %p531 = pnand %p529, %p530
      %p532 = pneg %p531
      // Predicated region
      $region81: #{tpu_custom_call.1} parent=5 // pred_check
        _
      $region82: #{tpu_custom_call.1} parent=5 // pred_check_branch
        %534 = sbr.rel (%p531) target = $region84
      $region83: #{tpu_custom_call.1} parent=5 // pred_region
        %s535 = ssub.s32 %s29, 1
        %s536 = sand.u32 %s82, 1
        %s537 = scalar_lea.sflag [#allocation5], %s536
        %s538 = sand.u32 %s82, 1
        %s539 = smul.addr %s538, 4
        %s540 = scalar_lea.vmem [#allocation4], %s539
        // Predicated region
        $region85: #{tpu_custom_call.1} parent=83 // pred_check
          %p541 = pneg %p95
        $region86: #{tpu_custom_call.1} parent=83 // pred_check_branch
          %543 = sbr.rel (%p541) target = $region88
        $region87: #{tpu_custom_call.1} parent=83 // pred_region
          %545 = dma.done %s537, 64
        $region88: #{tpu_custom_call.1} parent=83 // pred_fallthru
          _
        // Predicated region
        $region89: #{tpu_custom_call.1} parent=83 // pred_check
          %p546 = pneg %p200
        $region90: #{tpu_custom_call.1} parent=83 // pred_check_branch
          %548 = sbr.rel (%p546) target = $region92
        $region91: #{tpu_custom_call.1} parent=83 // pred_region
          %550 = dma.done [#allocation8], 256
        $region92: #{tpu_custom_call.1} parent=83 // pred_fallthru
          _
        // Predicated region
        $region93: #{tpu_custom_call.1} parent=83 // pred_check
          %p551 = pneg %p284
        $region94: #{tpu_custom_call.1} parent=83 // pred_check_branch
          %553 = sbr.rel (%p551) target = $region96
        $region95: #{tpu_custom_call.1} parent=83 // pred_region
          %555 = dma.done [#allocation8], 256
        $region96: #{tpu_custom_call.1} parent=83 // pred_fallthru
          _
        %p556 = scmp.lt.s32.totalorder %s38, 1
        %s557 = scalar_select %p556, %s38, 1
        %p558 = scmp.lt.s32.totalorder %s39, 0
        %s559 = scalar_select %p558, %s39, 0
        %s560 = sadd.s32 %s559, %s557
        %s561 = smul.addr %s560, 8
        %s562 = scalar_lea.vmem %s0, %s561
        %p563 = pneg %p69
        %p564 = pneg %p66
        %s565 = sand.u32 %s82, 1
        %s566 = scalar_lea.sflag [#allocation5], %s565
        %s567 = sand.u32 %s82, 1
        %s568 = smul.addr %s567, 4
        %s569 = scalar_lea.vmem [#allocation4], %s568
        %p570 = pneg %p95
        %p571 = pneg %p92
        %p572 = pneg %p116
        %p573 = pneg %p113
        %p574 = pneg %p137
        %p575 = pneg %p134
        %p576 = pneg %p158
        %p577 = pneg %p155
        %p578 = pneg %p179
        %p579 = pneg %p176
        %p580 = pneg %p200
        %p581 = pneg %p197
        %p582 = pneg %p221
        %p583 = pneg %p218
        %p584 = pneg %p242
        %p585 = pneg %p239
        %p586 = pneg %p263
        %p587 = pneg %p260
        %p588 = pneg %p284
        %p589 = pneg %p281
        %p590 = pneg %p305
        %p591 = pneg %p302
        %p592 = pneg %p326
        %p593 = pneg %p323
        %p594 = pneg %p347
        %p595 = pneg %p344
        %p596 = pneg %p368
        %p597 = pneg %p365
        %p598 = pneg %p389
        %p599 = pneg %p386
        %p600 = pneg %p417
        %p601 = pneg %p414
        %s602 = sand.u32 %s404, 1
        %s603 = scalar_lea.sflag [#allocation6], %s602
        %s604 = sand.u32 %s404, 1
        %s605 = smul.addr %s604, 8
        %s606 = scalar_lea.vmem [#allocation10], %s605
        %p607 = scmp.lt.s32.totalorder %s38, 1
        %s608 = scalar_select %p607, %s38, 1
        %p609 = scmp.lt.s32.totalorder %s39, 0
        %s610 = scalar_select %p609, %s39, 0
        %s611 = sadd.s32 %s610, %s608
        %s612 = smul.addr %s611, 8
        %s613 = scalar_lea.vmem %s0, %s612
        %p615 = scmp.eq.s32.totalorder %s39, 0
        // Predicated region
        $region97: #{tpu_custom_call.1} parent=83 // pred_check
          %p616 = pneg %p615
        $region98: #{tpu_custom_call.1} parent=83 // pred_check_branch
          %618 = sbr.rel (%p616) target = $region100
        $region99: #{tpu_custom_call.1} parent=83 // pred_region
          %v619 = vld [vmem:[%s540] sm:$0xf]
          %v620 = vld [vmem:[%s4] sm:$0xf]
          %v621 = vld [vmem:[%s4 + $0x4] sm:$0xf]
          %v622 = vld [vmem:[%s4 + $0x8] sm:$0xf]
          %v623 = vld [vmem:[%s4 + $0xc] sm:$0xf]
          %v624 = vld [vmem:[%s5] sm:$0x1]
          %v626 = vperm.slane %v624, 0
          %v632 = vunpack.c.l.b16 %v620
          %v633 = vunpack.c.l.b16 %v621
          %v634 = vunpack.c.l.b16 %v622
          %v635 = vunpack.c.l.b16 %v623
          %v636 = vpack.c.b16 %v633, %v632
          %v637 = vpack.c.b16 %v635, %v634
          %vm640 = vcmask 261120
          %v642 = vsel %vm640, %v619, 0
          %644 = vmatpush.bf16.msra.mxu0 0
          %645 = vmatpush.bf16.msra.mxu0 0
          %646 = vmatpush.bf16.msra.mxu0 0
          %647 = vmatpush.bf16.msra.mxu0 0
          %648 = vmatpush.bf16.msra.mxu0 0
          %649 = vmatpush.bf16.msra.mxu0 0
          %650 = vmatpush.bf16.msra.mxu0 %v637
          %651 = vmatpush.bf16.msra.mxu0 %v636
          %652 = vmatmul.bf16.gmra.mxu0 %v642
          %v653 = vpop.f32.mrf.mxu0
          %v654 = vadd.f32 %v626, %v653
          %v655 = vpop.f32.mrf.mxu0
          %656 = vdwg.mxu0
          %658 = vrot.lane.b32.xlu0 %v654, 120
          %v659 = vpop.permute.xlu0 %658
          %661 = vrot.lane.b32.xlu0 %v654, 112
          %v662 = vpop.permute.xlu0 %661
          %664 = vrot.lane.b32.xlu0 %v654, 104
          %v665 = vpop.permute.xlu0 %664
          %v667 = vrot.slane %v662, 4
          %vm668 = vcmask 1047556
          %v669 = vsel %vm668, %v667, %v654
          %v670 = vrot.slane %v654, 4
          %v671 = vsel %vm668, %v662, %v670
          %v673 = vunpack.c.l.s4 1983009808
          %v674 = vunpack.c.0.s8 %v673
          %v675 = vperm.slane %v669, %v674
          %v677 = vunpack.c.l.s4 1983009808
          %v678 = vunpack.c.0.s8 %v677
          %v679 = vperm.slane %v671, %v678
          %v680 = vrot.slane %v665, 4
          %v681 = vsel %vm668, %v680, %v659
          %v682 = vrot.slane %v659, 4
          %v683 = vsel %vm668, %v665, %v682
          %v685 = vunpack.c.l.s4 1983009808
          %v686 = vunpack.c.0.s8 %v685
          %v687 = vperm.slane %v681, %v686
          %v689 = vunpack.c.l.s4 1983009808
          %v690 = vunpack.c.0.s8 %v689
          %v691 = vperm.slane %v683, %v690
          %v692 = vrot.slane %v687, 4
          %v693 = vsel %vm668, %v692, %v675
          %v694 = vrot.slane %v675, 4
          %v695 = vsel %vm668, %v687, %v694
          %v697 = vunpack.c.l.s4 1934713408
          %v698 = vunpack.c.0.s8 %v697
          %v699 = vperm.slane %v693, %v698
          %v701 = vunpack.c.l.s4 1934713408
          %v702 = vunpack.c.0.s8 %v701
          %v703 = vperm.slane %v695, %v702
          %v704 = vrot.slane %v691, 4
          %v705 = vsel %vm668, %v704, %v679
          %v706 = vrot.slane %v679, 4
          %v707 = vsel %vm668, %v691, %v706
          %v709 = vunpack.c.l.s4 1934713408
          %v710 = vunpack.c.0.s8 %v709
          %v711 = vperm.slane %v705, %v710
          %v713 = vunpack.c.l.s4 1934713408
          %v714 = vunpack.c.0.s8 %v713
          %v715 = vperm.slane %v707, %v714
          %v716 = vrot.slane %v699, 4
          %v717 = vsel %vm668, 0.0, %v716
          %v718 = vrot.slane %v703, 4
          %v719 = vsel %vm668, 0.0, %v718
          %v720 = vrot.slane %v711, 4
          %v721 = vsel %vm668, 0.0, %v720
          %v722 = vrot.slane %v715, 4
          %v723 = vsel %vm668, 0.0, %v722
          %724 = vrot.lane.b32.xlu0 %v654, 96
          %v725 = vpop.permute.xlu0 %724
          %726 = vrot.lane.b32.xlu0 %v659, 96
          %v727 = vpop.permute.xlu0 %726
          %728 = vrot.lane.b32.xlu0 %v662, 96
          %v729 = vpop.permute.xlu0 %728
          %730 = vrot.lane.b32.xlu0 %v665, 96
          %v731 = vpop.permute.xlu0 %730
          %v736 = vrot.slane %v729, 4
          %v737 = vsel %vm668, %v736, %v725
          %v738 = vrot.slane %v725, 4
          %v739 = vsel %vm668, %v729, %v738
          %v741 = vunpack.c.l.s4 1983009808
          %v742 = vunpack.c.0.s8 %v741
          %v743 = vperm.slane %v737, %v742
          %v745 = vunpack.c.l.s4 1983009808
          %v746 = vunpack.c.0.s8 %v745
          %v747 = vperm.slane %v739, %v746
          %v748 = vrot.slane %v731, 4
          %v749 = vsel %vm668, %v748, %v727
          %v750 = vrot.slane %v727, 4
          %v751 = vsel %vm668, %v731, %v750
          %v753 = vunpack.c.l.s4 1983009808
          %v754 = vunpack.c.0.s8 %v753
          %v755 = vperm.slane %v749, %v754
          %v757 = vunpack.c.l.s4 1983009808
          %v758 = vunpack.c.0.s8 %v757
          %v759 = vperm.slane %v751, %v758
          %v760 = vrot.slane %v755, 4
          %v761 = vsel %vm668, %v760, %v743
          %v762 = vrot.slane %v743, 4
          %v763 = vsel %vm668, %v755, %v762
          %v765 = vunpack.c.l.s4 1934713408
          %v766 = vunpack.c.0.s8 %v765
          %v767 = vperm.slane %v761, %v766
          %v769 = vunpack.c.l.s4 1934713408
          %v770 = vunpack.c.0.s8 %v769
          %v771 = vperm.slane %v763, %v770
          %v772 = vrot.slane %v759, 4
          %v773 = vsel %vm668, %v772, %v747
          %v774 = vrot.slane %v747, 4
          %v775 = vsel %vm668, %v759, %v774
          %v777 = vunpack.c.l.s4 1934713408
          %v778 = vunpack.c.0.s8 %v777
          %v779 = vperm.slane %v773, %v778
          %v781 = vunpack.c.l.s4 1934713408
          %v782 = vunpack.c.0.s8 %v781
          %v783 = vperm.slane %v775, %v782
          %v784 = vrot.slane %v767, 4
          %v785 = vsel %vm668, 0.0, %v784
          %v786 = vrot.slane %v771, 4
          %v787 = vsel %vm668, 0.0, %v786
          %v788 = vrot.slane %v779, 4
          %v789 = vsel %vm668, 0.0, %v788
          %v790 = vrot.slane %v783, 4
          %v791 = vsel %vm668, 0.0, %v790
          %v792 = vsel %vm668, %v718, %v699
          %v794 = vunpack.c.l.s4 1983009808
          %v795 = vunpack.c.0.s8 %v794
          %v796 = vperm.slane %v792, %v795
          %v797 = vrot.slane %v719, 4
          %v798 = vsel %vm668, %v797, %v717
          %v800 = vunpack.c.l.s4 1983009808
          %v801 = vunpack.c.0.s8 %v800
          %v802 = vperm.slane %v798, %v801
          %v803 = vsel %vm668, %v722, %v711
          %v805 = vunpack.c.l.s4 1983009808
          %v806 = vunpack.c.0.s8 %v805
          %v807 = vperm.slane %v803, %v806
          %v808 = vrot.slane %v723, 4
          %v809 = vsel %vm668, %v808, %v721
          %v811 = vunpack.c.l.s4 1983009808
          %v812 = vunpack.c.0.s8 %v811
          %v813 = vperm.slane %v809, %v812
          %v814 = vrot.slane %v802, 4
          %v815 = vsel %vm668, %v814, %v796
          %v816 = vrot.slane %v796, 4
          %v817 = vsel %vm668, %v802, %v816
          %v819 = vunpack.c.l.s4 1934713408
          %v820 = vunpack.c.0.s8 %v819
          %v821 = vperm.slane %v815, %v820
          %v823 = vunpack.c.l.s4 1934713408
          %v824 = vunpack.c.0.s8 %v823
          %v825 = vperm.slane %v817, %v824
          %v826 = vrot.slane %v813, 4
          %v827 = vsel %vm668, %v826, %v807
          %v828 = vrot.slane %v807, 4
          %v829 = vsel %vm668, %v813, %v828
          %v831 = vunpack.c.l.s4 1934713408
          %v832 = vunpack.c.0.s8 %v831
          %v833 = vperm.slane %v827, %v832
          %v835 = vunpack.c.l.s4 1934713408
          %v836 = vunpack.c.0.s8 %v835
          %v837 = vperm.slane %v829, %v836
          %v838 = vrot.slane %v833, 4
          %v839 = vsel %vm668, %v838, %v821
          %v840 = vrot.slane %v821, 4
          %v841 = vsel %vm668, %v833, %v840
          %v842 = vrot.slane %v837, 4
          %v843 = vsel %vm668, %v842, %v825
          %v844 = vrot.slane %v825, 4
          %v845 = vsel %vm668, %v837, %v844
          %846 = vxpose.xlu0.b32.start [1/16] %v839, 128
          %847 = vxpose.xlu0.b32.cont [2/16] 0.0, 128
          %848 = vxpose.xlu0.b32.cont [3/16] 0.0, 128
          %849 = vxpose.xlu0.b32.cont [4/16] 0.0, 128
          %850 = vxpose.xlu0.b32.cont [5/16] 0.0, 128
          %851 = vxpose.xlu0.b32.cont [6/16] 0.0, 128
          %852 = vxpose.xlu0.b32.cont [7/16] 0.0, 128
          %853 = vxpose.xlu0.b32.cont [8/16] 0.0, 128
          %854 = vxpose.xlu0.b32.cont [9/16] 0.0, 128
          %855 = vxpose.xlu0.b32.cont [10/16] 0.0, 128
          %856 = vxpose.xlu0.b32.cont [11/16] 0.0, 128
          %857 = vxpose.xlu0.b32.cont [12/16] 0.0, 128
          %858 = vxpose.xlu0.b32.cont [13/16] 0.0, 128
          %859 = vxpose.xlu0.b32.cont [14/16] 0.0, 128
          %860 = vxpose.xlu0.b32.cont [15/16] 0.0, 128
          %861 = vxpose.xlu0.b32.end [16/16] 0.0, 128
          %v862 = vpop.trf.xlu0
          %v863 = vpop.trf.xlu0
          %v864 = vpop.trf.xlu0
          %v865 = vpop.trf.xlu0
          %v866 = vpop.trf.xlu0
          %v867 = vpop.trf.xlu0
          %v868 = vpop.trf.xlu0
          %v869 = vpop.trf.xlu0
          %v870 = vpop.trf.xlu0
          %v871 = vpop.trf.xlu0
          %v872 = vpop.trf.xlu0
          %v873 = vpop.trf.xlu0
          %v874 = vpop.trf.xlu0
          %v875 = vpop.trf.xlu0
          %v876 = vpop.trf.xlu0
          %v877 = vpop.trf.xlu0
          %878 = vxpose.xlu0.b32.start [1/16] %v841, 128
          %879 = vxpose.xlu0.b32.cont [2/16] 0.0, 128
          %880 = vxpose.xlu0.b32.cont [3/16] 0.0, 128
          %881 = vxpose.xlu0.b32.cont [4/16] 0.0, 128
          %882 = vxpose.xlu0.b32.cont [5/16] 0.0, 128
          %883 = vxpose.xlu0.b32.cont [6/16] 0.0, 128
          %884 = vxpose.xlu0.b32.cont [7/16] 0.0, 128
          %885 = vxpose.xlu0.b32.cont [8/16] 0.0, 128
          %886 = vxpose.xlu0.b32.cont [9/16] 0.0, 128
          %887 = vxpose.xlu0.b32.cont [10/16] 0.0, 128
          %888 = vxpose.xlu0.b32.cont [11/16] 0.0, 128
          %889 = vxpose.xlu0.b32.cont [12/16] 0.0, 128
          %890 = vxpose.xlu0.b32.cont [13/16] 0.0, 128
          %891 = vxpose.xlu0.b32.cont [14/16] 0.0, 128
          %892 = vxpose.xlu0.b32.cont [15/16] 0.0, 128
          %893 = vxpose.xlu0.b32.end [16/16] 0.0, 128
          %v894 = vpop.trf.xlu0
          %v895 = vpop.trf.xlu0
          %v896 = vpop.trf.xlu0
          %v897 = vpop.trf.xlu0
          %v898 = vpop.trf.xlu0
          %v899 = vpop.trf.xlu0
          %v900 = vpop.trf.xlu0
          %v901 = vpop.trf.xlu0
          %v902 = vpop.trf.xlu0
          %v903 = vpop.trf.xlu0
          %v904 = vpop.trf.xlu0
          %v905 = vpop.trf.xlu0
          %v906 = vpop.trf.xlu0
          %v907 = vpop.trf.xlu0
          %v908 = vpop.trf.xlu0
          %v909 = vpop.trf.xlu0
          %910 = vxpose.xlu0.b32.start [1/16] %v843, 128
          %911 = vxpose.xlu0.b32.cont [2/16] 0.0, 128
          %912 = vxpose.xlu0.b32.cont [3/16] 0.0, 128
          %913 = vxpose.xlu0.b32.cont [4/16] 0.0, 128
          %914 = vxpose.xlu0.b32.cont [5/16] 0.0, 128
          %915 = vxpose.xlu0.b32.cont [6/16] 0.0, 128
          %916 = vxpose.xlu0.b32.cont [7/16] 0.0, 128
          %917 = vxpose.xlu0.b32.cont [8/16] 0.0, 128
          %918 = vxpose.xlu0.b32.cont [9/16] 0.0, 128
          %919 = vxpose.xlu0.b32.cont [10/16] 0.0, 128
          %920 = vxpose.xlu0.b32.cont [11/16] 0.0, 128
          %921 = vxpose.xlu0.b32.cont [12/16] 0.0, 128
          %922 = vxpose.xlu0.b32.cont [13/16] 0.0, 128
          %923 = vxpose.xlu0.b32.cont [14/16] 0.0, 128
          %924 = vxpose.xlu0.b32.cont [15/16] 0.0, 128
          %925 = vxpose.xlu0.b32.end [16/16] 0.0, 128
          %v926 = vpop.trf.xlu0
          %v927 = vpop.trf.xlu0
          %v928 = vpop.trf.xlu0
          %v929 = vpop.trf.xlu0
          %v930 = vpop.trf.xlu0
          %v931 = vpop.trf.xlu0
          %v932 = vpop.trf.xlu0
          %v933 = vpop.trf.xlu0
          %v934 = vpop.trf.xlu0
          %v935 = vpop.trf.xlu0
          %v936 = vpop.trf.xlu0
          %v937 = vpop.trf.xlu0
          %v938 = vpop.trf.xlu0
          %v939 = vpop.trf.xlu0
          %v940 = vpop.trf.xlu0
          %v941 = vpop.trf.xlu0
          %942 = vxpose.xlu0.b32.start [1/16] %v845, 128
          %943 = vxpose.xlu0.b32.cont [2/16] 0.0, 128
          %944 = vxpose.xlu0.b32.cont [3/16] 0.0, 128
          %945 = vxpose.xlu0.b32.cont [4/16] 0.0, 128
          %946 = vxpose.xlu0.b32.cont [5/16] 0.0, 128
          %947 = vxpose.xlu0.b32.cont [6/16] 0.0, 128
          %948 = vxpose.xlu0.b32.cont [7/16] 0.0, 128
          %949 = vxpose.xlu0.b32.cont [8/16] 0.0, 128
          %950 = vxpose.xlu0.b32.cont [9/16] 0.0, 128
          %951 = vxpose.xlu0.b32.cont [10/16] 0.0, 128
          %952 = vxpose.xlu0.b32.cont [11/16] 0.0, 128
          %953 = vxpose.xlu0.b32.cont [12/16] 0.0, 128
          %954 = vxpose.xlu0.b32.cont [13/16] 0.0, 128
          %955 = vxpose.xlu0.b32.cont [14/16] 0.0, 128
          %956 = vxpose.xlu0.b32.cont [15/16] 0.0, 128
          %957 = vxpose.xlu0.b32.end [16/16] 0.0, 128
          %v958 = vpop.trf.xlu0
          %v959 = vpop.trf.xlu0
          %v960 = vpop.trf.xlu0
          %v961 = vpop.trf.xlu0
          %v962 = vpop.trf.xlu0
          %v963 = vpop.trf.xlu0
          %v964 = vpop.trf.xlu0
          %v965 = vpop.trf.xlu0
          %v966 = vpop.trf.xlu0
          %v967 = vpop.trf.xlu0
          %v968 = vpop.trf.xlu0
          %v969 = vpop.trf.xlu0
          %v970 = vpop.trf.xlu0
          %v971 = vpop.trf.xlu0
          %v972 = vpop.trf.xlu0
          %v973 = vpop.trf.xlu0
          %v974 = vpack.c.bf16 %v862, %v862
          %v975 = vpack.c.bf16 %v894, %v894
          %v976 = vpack.c.bf16 %v926, %v926
          %v977 = vpack.c.bf16 %v958, %v958
          %vm978 = vcmask 60416
          %979 = vst.msk [vmem:[#allocation2] sm:$0xf] %vm978, %v974
          %980 = vst.msk [vmem:[#allocation2 + $0x4] sm:$0xf] %vm978, %v975
          %981 = vst.msk [vmem:[#allocation2 + $0x8] sm:$0xf] %vm978, %v976
          %982 = vst.msk [vmem:[#allocation2 + $0xc] sm:$0xf] %vm978, %v977
          %v983 = vsel %vm668, %v786, %v767
          %v985 = vunpack.c.l.s4 1983009808
          %v986 = vunpack.c.0.s8 %v985
          %v987 = vperm.slane %v983, %v986
          %v988 = vrot.slane %v787, 4
          %v989 = vsel %vm668, %v988, %v785
          %v991 = vunpack.c.l.s4 1983009808
          %v992 = vunpack.c.0.s8 %v991
          %v993 = vperm.slane %v989, %v992
          %v994 = vsel %vm668, %v790, %v779
          %v996 = vunpack.c.l.s4 1983009808
          %v997 = vunpack.c.0.s8 %v996
          %v998 = vperm.slane %v994, %v997
          %v999 = vrot.slane %v791, 4
          %v1000 = vsel %vm668, %v999, %v789
          %v1002 = vunpack.c.l.s4 1983009808
          %v1003 = vunpack.c.0.s8 %v1002
          %v1004 = vperm.slane %v1000, %v1003
          %v1005 = vrot.slane %v993, 4
          %v1006 = vsel %vm668, %v1005, %v987
          %v1007 = vrot.slane %v987, 4
          %v1008 = vsel %vm668, %v993, %v1007
          %v1010 = vunpack.c.l.s4 1934713408
          %v1011 = vunpack.c.0.s8 %v1010
          %v1012 = vperm.slane %v1006, %v1011
          %v1014 = vunpack.c.l.s4 1934713408
          %v1015 = vunpack.c.0.s8 %v1014
          %v1016 = vperm.slane %v1008, %v1015
          %v1017 = vrot.slane %v1004, 4
          %v1018 = vsel %vm668, %v1017, %v998
          %v1019 = vrot.slane %v998, 4
          %v1020 = vsel %vm668, %v1004, %v1019
          %v1022 = vunpack.c.l.s4 1934713408
          %v1023 = vunpack.c.0.s8 %v1022
          %v1024 = vperm.slane %v1018, %v1023
          %v1026 = vunpack.c.l.s4 1934713408
          %v1027 = vunpack.c.0.s8 %v1026
          %v1028 = vperm.slane %v1020, %v1027
          %v1029 = vrot.slane %v1024, 4
          %v1030 = vsel %vm668, %v1029, %v1012
          %v1031 = vrot.slane %v1012, 4
          %v1032 = vsel %vm668, %v1024, %v1031
          %v1033 = vrot.slane %v1028, 4
          %v1034 = vsel %vm668, %v1033, %v1016
          %v1035 = vrot.slane %v1016, 4
          %v1036 = vsel %vm668, %v1028, %v1035
          %v1037 = vpack.c.bf16 %v1030, %v1030
          %v1038 = vpack.c.bf16 %v1032, %v1032
          %v1039 = vpack.c.bf16 %v1034, %v1034
          %v1040 = vpack.c.bf16 %v1036, %v1036
          %1041 = vst.msk [vmem:[#allocation3] sm:$0xf] %vm978, %v1037
          %1042 = vst.msk [vmem:[#allocation3 + $0x4] sm:$0xf] %vm978, %v1038
          %1043 = vst.msk [vmem:[#allocation3 + $0x8] sm:$0xf] %vm978, %v1039
          %1044 = vst.msk [vmem:[#allocation3 + $0xc] sm:$0xf] %vm978, %v1040
        $region100: #{tpu_custom_call.1} parent=83 // pred_fallthru
          _
        %v1045 = vld [vmem:[%s613] sm:$0xff]
        %v1046 = vpack.c.bf16 %v1045, %v1045
        %v1047 = vld [vmem:[%s2] sm:$0xf]
        %v1048 = vld [vmem:[%s2 + $0x4] sm:$0xf]
        %v1049 = vld [vmem:[%s2 + $0x8] sm:$0xf]
        %v1050 = vld [vmem:[%s2 + $0xc] sm:$0xf]
        %v1051 = vld [vmem:[%s3] sm:$0x1]
        %v1053 = vperm.slane %v1051, 0
        %v1059 = vunpack.c.l.b16 %v1047
        %v1060 = vunpack.c.l.b16 %v1048
        %v1061 = vunpack.c.l.b16 %v1049
        %v1062 = vunpack.c.l.b16 %v1050
        %v1063 = vpack.c.b16 %v1060, %v1059
        %v1064 = vpack.c.b16 %v1062, %v1061
        %vm1067 = vcmask 261120
        %v1069 = vsel %vm1067, %v1046, 0
        %1071 = vmatpush.bf16.msra.mxu0 0
        %1072 = vmatpush.bf16.msra.mxu0 0
        %1073 = vmatpush.bf16.msra.mxu0 0
        %1074 = vmatpush.bf16.msra.mxu0 0
        %1075 = vmatpush.bf16.msra.mxu0 0
        %1076 = vmatpush.bf16.msra.mxu0 0
        %1077 = vmatpush.bf16.msra.mxu0 %v1064
        %1078 = vmatpush.bf16.msra.mxu0 %v1063
        %1079 = vmatmul.bf16.gmra.mxu0 %v1069
        %v1080 = vpop.f32.mrf.mxu0
        %v1081 = vadd.f32 %v1053, %v1080
        %v1082 = vpop.f32.mrf.mxu0
        %1083 = vdwg.mxu0
        %1085 = vrot.lane.b32.xlu0 %v1081, 120
        %v1086 = vpop.permute.xlu0 %1085
        %1088 = vrot.lane.b32.xlu0 %v1081, 112
        %v1089 = vpop.permute.xlu0 %1088
        %1091 = vrot.lane.b32.xlu0 %v1081, 104
        %v1092 = vpop.permute.xlu0 %1091
        %v1094 = vrot.slane %v1089, 4
        %vm1095 = vcmask 1047556
        %v1096 = vsel %vm1095, %v1094, %v1081
        %v1097 = vrot.slane %v1081, 4
        %v1098 = vsel %vm1095, %v1089, %v1097
        %v1100 = vunpack.c.l.s4 1983009808
        %v1101 = vunpack.c.0.s8 %v1100
        %v1102 = vperm.slane %v1096, %v1101
        %v1104 = vunpack.c.l.s4 1983009808
        %v1105 = vunpack.c.0.s8 %v1104
        %v1106 = vperm.slane %v1098, %v1105
        %v1107 = vrot.slane %v1092, 4
        %v1108 = vsel %vm1095, %v1107, %v1086
        %v1109 = vrot.slane %v1086, 4
        %v1110 = vsel %vm1095, %v1092, %v1109
        %v1112 = vunpack.c.l.s4 1983009808
        %v1113 = vunpack.c.0.s8 %v1112
        %v1114 = vperm.slane %v1108, %v1113
        %v1116 = vunpack.c.l.s4 1983009808
        %v1117 = vunpack.c.0.s8 %v1116
        %v1118 = vperm.slane %v1110, %v1117
        %v1119 = vrot.slane %v1114, 4
        %v1120 = vsel %vm1095, %v1119, %v1102
        %v1121 = vrot.slane %v1102, 4
        %v1122 = vsel %vm1095, %v1114, %v1121
        %v1124 = vunpack.c.l.s4 1934713408
        %v1125 = vunpack.c.0.s8 %v1124
        %v1126 = vperm.slane %v1120, %v1125
        %v1128 = vunpack.c.l.s4 1934713408
        %v1129 = vunpack.c.0.s8 %v1128
        %v1130 = vperm.slane %v1122, %v1129
        %v1131 = vrot.slane %v1118, 4
        %v1132 = vsel %vm1095, %v1131, %v1106
        %v1133 = vrot.slane %v1106, 4
        %v1134 = vsel %vm1095, %v1118, %v1133
        %v1136 = vunpack.c.l.s4 1934713408
        %v1137 = vunpack.c.0.s8 %v1136
        %v1138 = vperm.slane %v1132, %v1137
        %v1140 = vunpack.c.l.s4 1934713408
        %v1141 = vunpack.c.0.s8 %v1140
        %v1142 = vperm.slane %v1134, %v1141
        %v1143 = vrot.slane %v1126, 4
        %v1144 = vsel %vm1095, 0.0, %v1143
        %v1145 = vrot.slane %v1130, 4
        %v1146 = vsel %vm1095, 0.0, %v1145
        %v1147 = vrot.slane %v1138, 4
        %v1148 = vsel %vm1095, 0.0, %v1147
        %v1149 = vrot.slane %v1142, 4
        %v1150 = vsel %vm1095, 0.0, %v1149
        %v1151 = vsel %vm1095, %v1145, %v1126
        %v1153 = vunpack.c.l.s4 1983009808
        %v1154 = vunpack.c.0.s8 %v1153
        %v1155 = vperm.slane %v1151, %v1154
        %v1156 = vrot.slane %v1146, 4
        %v1157 = vsel %vm1095, %v1156, %v1144
        %v1159 = vunpack.c.l.s4 1983009808
        %v1160 = vunpack.c.0.s8 %v1159
        %v1161 = vperm.slane %v1157, %v1160
        %v1162 = vsel %vm1095, %v1149, %v1138
        %v1164 = vunpack.c.l.s4 1983009808
        %v1165 = vunpack.c.0.s8 %v1164
        %v1166 = vperm.slane %v1162, %v1165
        %v1167 = vrot.slane %v1150, 4
        %v1168 = vsel %vm1095, %v1167, %v1148
        %v1170 = vunpack.c.l.s4 1983009808
        %v1171 = vunpack.c.0.s8 %v1170
        %v1172 = vperm.slane %v1168, %v1171
        %v1173 = vrot.slane %v1161, 4
        %v1174 = vsel %vm1095, %v1173, %v1155
        %v1175 = vrot.slane %v1155, 4
        %v1176 = vsel %vm1095, %v1161, %v1175
        %v1178 = vunpack.c.l.s4 1934713408
        %v1179 = vunpack.c.0.s8 %v1178
        %v1180 = vperm.slane %v1174, %v1179
        %v1182 = vunpack.c.l.s4 1934713408
        %v1183 = vunpack.c.0.s8 %v1182
        %v1184 = vperm.slane %v1176, %v1183
        %v1185 = vrot.slane %v1172, 4
        %v1186 = vsel %vm1095, %v1185, %v1166
        %v1187 = vrot.slane %v1166, 4
        %v1188 = vsel %vm1095, %v1172, %v1187
        %v1190 = vunpack.c.l.s4 1934713408
        %v1191 = vunpack.c.0.s8 %v1190
        %v1192 = vperm.slane %v1186, %v1191
        %v1194 = vunpack.c.l.s4 1934713408
        %v1195 = vunpack.c.0.s8 %v1194
        %v1196 = vperm.slane %v1188, %v1195
        %v1197 = vrot.slane %v1192, 4
        %v1198 = vsel %vm1095, %v1197, %v1180
        %v1199 = vrot.slane %v1180, 4
        %v1200 = vsel %vm1095, %v1192, %v1199
        %v1201 = vrot.slane %v1196, 4
        %v1202 = vsel %vm1095, %v1201, %v1184
        %v1203 = vrot.slane %v1184, 4
        %v1204 = vsel %vm1095, %v1196, %v1203
        %v1205 = vpack.c.bf16 %v1198, %v1198
        %v1206 = vpack.c.bf16 %v1200, %v1200
        %v1207 = vpack.c.bf16 %v1202, %v1202
        %v1208 = vpack.c.bf16 %v1204, %v1204
        %v1209 = vld [vmem:[#allocation2] sm:$0xf]
        %v1210 = vld [vmem:[#allocation2 + $0x4] sm:$0xf]
        %v1211 = vld [vmem:[#allocation2 + $0x8] sm:$0xf]
        %v1212 = vld [vmem:[#allocation2 + $0xc] sm:$0xf]
        %vm1213 = vcmask 64512
        %v1215 = vsel %vm1213, %v1205, 0
        %vm1217 = vcmask 1043456
        %v1219 = vsel %vm1217, %v1209, 0
        %1221 = vmatpush.bf16.msra.mxu0 0
        %1222 = vmatpush.bf16.msra.mxu0 0
        %1223 = vmatpush.bf16.msra.mxu0 0
        %1224 = vmatpush.bf16.msra.mxu0 0
        %1225 = vmatpush.bf16.msra.mxu0 0
        %1226 = vmatpush.bf16.msra.mxu0 0
        %1227 = vmatpush.bf16.msra.mxu0 0
        %1228 = vmatpush.bf16.msra.mxu0 %v1219
        %1229 = vmatmul.bf16.gmra.mxu0 %v1215
        %v1230 = vpop.f32.mrf.mxu0
        %v1231 = vadd.f32 0.0, %v1230
        %v1232 = vpop.f32.mrf.mxu0
        %1233 = vdwg.mxu0
        %v1235 = vsel %vm1213, %v1206, 0
        %v1238 = vsel %vm1217, %v1210, 0
        %1240 = vmatpush.bf16.msra.mxu0 0
        %1241 = vmatpush.bf16.msra.mxu0 0
        %1242 = vmatpush.bf16.msra.mxu0 0
        %1243 = vmatpush.bf16.msra.mxu0 0
        %1244 = vmatpush.bf16.msra.mxu0 0
        %1245 = vmatpush.bf16.msra.mxu0 0
        %1246 = vmatpush.bf16.msra.mxu0 0
        %1247 = vmatpush.bf16.msra.mxu0 %v1238
        %1248 = vmatmul.bf16.gmra.mxu0 %v1235
        %v1249 = vpop.f32.mrf.mxu0
        %v1250 = vadd.f32 0.0, %v1249
        %v1251 = vpop.f32.mrf.mxu0
        %1252 = vdwg.mxu0
        %v1254 = vsel %vm1213, %v1207, 0
        %v1257 = vsel %vm1217, %v1211, 0
        %1259 = vmatpush.bf16.msra.mxu0 0
        %1260 = vmatpush.bf16.msra.mxu0 0
        %1261 = vmatpush.bf16.msra.mxu0 0
        %1262 = vmatpush.bf16.msra.mxu0 0
        %1263 = vmatpush.bf16.msra.mxu0 0
        %1264 = vmatpush.bf16.msra.mxu0 0
        %1265 = vmatpush.bf16.msra.mxu0 0
        %1266 = vmatpush.bf16.msra.mxu0 %v1257
        %1267 = vmatmul.bf16.gmra.mxu0 %v1254
        %v1268 = vpop.f32.mrf.mxu0
        %v1269 = vadd.f32 0.0, %v1268
        %v1270 = vpop.f32.mrf.mxu0
        %1271 = vdwg.mxu0
        %v1273 = vsel %vm1213, %v1208, 0
        %v1276 = vsel %vm1217, %v1212, 0
        %1278 = vmatpush.bf16.msra.mxu0 0
        %1279 = vmatpush.bf16.msra.mxu0 0
        %1280 = vmatpush.bf16.msra.mxu0 0
        %1281 = vmatpush.bf16.msra.mxu0 0
        %1282 = vmatpush.bf16.msra.mxu0 0
        %1283 = vmatpush.bf16.msra.mxu0 0
        %1284 = vmatpush.bf16.msra.mxu0 0
        %1285 = vmatpush.bf16.msra.mxu0 %v1276
        %1286 = vmatmul.bf16.gmra.mxu0 %v1273
        %v1287 = vpop.f32.mrf.mxu0
        %v1288 = vadd.f32 0.0, %v1287
        %v1289 = vpop.f32.mrf.mxu0
        %1290 = vdwg.mxu0
        %v1291 = vsel %vm1213, %v1231, -inf
        %1292 = vmax.xlane.f32.xlu0 %v1291
        %v1293 = vpop.xlane.xlu0 %1292
        %v1294 = vsel %vm1213, %v1250, -inf
        %1295 = vmax.xlane.f32.xlu0 %v1294
        %v1296 = vpop.xlane.xlu0 %1295
        %v1297 = vsel %vm1213, %v1269, -inf
        %1298 = vmax.xlane.f32.xlu0 %v1297
        %v1299 = vpop.xlane.xlu0 %1298
        %v1300 = vsel %vm1213, %v1288, -inf
        %1301 = vmax.xlane.f32.xlu0 %v1300
        %v1302 = vpop.xlane.xlu0 %1301
        %v1303 = vsub.f32 %v1231, %v1293
        %v1304 = vsub.f32 %v1250, %v1296
        %v1305 = vsub.f32 %v1269, %v1299
        %v1306 = vsub.f32 %v1288, %v1302
        %v1307 = vmul.f32 %v1303, 1.442695
        %v1308 = vpow.pop %v1307
        %v1309 = vmul.f32 %v1304, 1.442695
        %v1310 = vpow.pop %v1309
        %v1311 = vmul.f32 %v1305, 1.442695
        %v1312 = vpow.pop %v1311
        %v1313 = vmul.f32 %v1306, 1.442695
        %v1314 = vpow.pop %v1313
        %v1315 = vsel %vm1213, %v1308, 0.0
        %1316 = vadd.xlane.f32.xlu0 %v1315
        %v1317 = vpop.xlane.xlu0 %1316
        %v1318 = vsel %vm1213, %v1310, 0.0
        %1319 = vadd.xlane.f32.xlu0 %v1318
        %v1320 = vpop.xlane.xlu0 %1319
        %v1321 = vsel %vm1213, %v1312, 0.0
        %1322 = vadd.xlane.f32.xlu0 %v1321
        %v1323 = vpop.xlane.xlu0 %1322
        %v1324 = vsel %vm1213, %v1314, 0.0
        %1325 = vadd.xlane.f32.xlu0 %v1324
        %v1326 = vpop.xlane.xlu0 %1325
        %v1327 = vpack.c.bf16 %v1308, %v1308
        %v1328 = vpack.c.bf16 %v1310, %v1310
        %v1329 = vpack.c.bf16 %v1312, %v1312
        %v1330 = vpack.c.bf16 %v1314, %v1314
        %v1331 = vld [vmem:[#allocation3] sm:$0xf]
        %v1332 = vld [vmem:[#allocation3 + $0x4] sm:$0xf]
        %v1333 = vld [vmem:[#allocation3 + $0x8] sm:$0xf]
        %v1334 = vld [vmem:[#allocation3 + $0xc] sm:$0xf]
        %v1336 = vsel %vm1213, %v1327, 0
        %v1339 = vsel %vm1217, %v1331, 0
        %1341 = vmatpush.bf16.msra.mxu0 0
        %1342 = vmatpush.bf16.msra.mxu0 0
        %1343 = vmatpush.bf16.msra.mxu0 0
        %1344 = vmatpush.bf16.msra.mxu0 0
        %1345 = vmatpush.bf16.msra.mxu0 0
        %1346 = vmatpush.bf16.msra.mxu0 0
        %1347 = vmatpush.bf16.msra.mxu0 0
        %1348 = vmatpush.bf16.msra.mxu0 %v1339
        %1349 = vmatmul.bf16.gmra.mxu0 %v1336
        %v1350 = vpop.f32.mrf.mxu0
        %v1351 = vadd.f32 0.0, %v1350
        %v1352 = vpop.f32.mrf.mxu0
        %1353 = vdwg.mxu0
        %v1355 = vsel %vm1213, %v1328, 0
        %v1358 = vsel %vm1217, %v1332, 0
        %1360 = vmatpush.bf16.msra.mxu0 0
        %1361 = vmatpush.bf16.msra.mxu0 0
        %1362 = vmatpush.bf16.msra.mxu0 0
        %1363 = vmatpush.bf16.msra.mxu0 0
        %1364 = vmatpush.bf16.msra.mxu0 0
        %1365 = vmatpush.bf16.msra.mxu0 0
        %1366 = vmatpush.bf16.msra.mxu0 0
        %1367 = vmatpush.bf16.msra.mxu0 %v1358
        %1368 = vmatmul.bf16.gmra.mxu0 %v1355
        %v1369 = vpop.f32.mrf.mxu0
        %v1370 = vadd.f32 0.0, %v1369
        %v1371 = vpop.f32.mrf.mxu0
        %1372 = vdwg.mxu0
        %v1374 = vsel %vm1213, %v1329, 0
        %v1377 = vsel %vm1217, %v1333, 0
        %1379 = vmatpush.bf16.msra.mxu0 0
        %1380 = vmatpush.bf16.msra.mxu0 0
        %1381 = vmatpush.bf16.msra.mxu0 0
        %1382 = vmatpush.bf16.msra.mxu0 0
        %1383 = vmatpush.bf16.msra.mxu0 0
        %1384 = vmatpush.bf16.msra.mxu0 0
        %1385 = vmatpush.bf16.msra.mxu0 0
        %1386 = vmatpush.bf16.msra.mxu0 %v1377
        %1387 = vmatmul.bf16.gmra.mxu0 %v1374
        %v1388 = vpop.f32.mrf.mxu0
        %v1389 = vadd.f32 0.0, %v1388
        %v1390 = vpop.f32.mrf.mxu0
        %1391 = vdwg.mxu0
        %v1393 = vsel %vm1213, %v1330, 0
        %v1396 = vsel %vm1217, %v1334, 0
        %1398 = vmatpush.bf16.msra.mxu0 0
        %1399 = vmatpush.bf16.msra.mxu0 0
        %1400 = vmatpush.bf16.msra.mxu0 0
        %1401 = vmatpush.bf16.msra.mxu0 0
        %1402 = vmatpush.bf16.msra.mxu0 0
        %1403 = vmatpush.bf16.msra.mxu0 0
        %1404 = vmatpush.bf16.msra.mxu0 0
        %1405 = vmatpush.bf16.msra.mxu0 %v1396
        %1406 = vmatmul.bf16.gmra.mxu0 %v1393
        %v1407 = vpop.f32.mrf.mxu0
        %v1408 = vadd.f32 0.0, %v1407
        %v1409 = vpop.f32.mrf.mxu0
        %1410 = vdwg.mxu0
        %v1411 = vrcp.pop %v1317
        %v1412 = vrcp.pop %v1320
        %v1413 = vrcp.pop %v1323
        %v1414 = vrcp.pop %v1326
        %v1415 = vmul.f32 %v1351, %v1411
        %v1416 = vmul.f32 %v1370, %v1412
        %v1417 = vmul.f32 %v1389, %v1413
        %v1418 = vmul.f32 %v1408, %v1414
        %v1419 = vrot.slane %v1417, 4
        %v1420 = vsel %vm1095, %v1419, %v1415
        %v1421 = vrot.slane %v1415, 4
        %v1422 = vsel %vm1095, %v1417, %v1421
        %v1424 = vunpack.c.l.s4 1983009808
        %v1425 = vunpack.c.0.s8 %v1424
        %v1426 = vperm.slane %v1420, %v1425
        %v1428 = vunpack.c.l.s4 1983009808
        %v1429 = vunpack.c.0.s8 %v1428
        %v1430 = vperm.slane %v1422, %v1429
        %v1431 = vrot.slane %v1418, 4
        %v1432 = vsel %vm1095, %v1431, %v1416
        %v1433 = vrot.slane %v1416, 4
        %v1434 = vsel %vm1095, %v1418, %v1433
        %v1436 = vunpack.c.l.s4 1983009808
        %v1437 = vunpack.c.0.s8 %v1436
        %v1438 = vperm.slane %v1432, %v1437
        %v1440 = vunpack.c.l.s4 1983009808
        %v1441 = vunpack.c.0.s8 %v1440
        %v1442 = vperm.slane %v1434, %v1441
        %v1443 = vrot.slane %v1438, 4
        %v1444 = vsel %vm1095, %v1443, %v1426
        %v1445 = vrot.slane %v1426, 4
        %v1446 = vsel %vm1095, %v1438, %v1445
        %v1448 = vunpack.c.l.s4 1934713408
        %v1449 = vunpack.c.0.s8 %v1448
        %v1450 = vperm.slane %v1444, %v1449
        %v1452 = vunpack.c.l.s4 1934713408
        %v1453 = vunpack.c.0.s8 %v1452
        %v1454 = vperm.slane %v1446, %v1453
        %v1455 = vrot.slane %v1442, 4
        %v1456 = vsel %vm1095, %v1455, %v1430
        %v1457 = vrot.slane %v1430, 4
        %v1458 = vsel %vm1095, %v1442, %v1457
        %v1460 = vunpack.c.l.s4 1934713408
        %v1461 = vunpack.c.0.s8 %v1460
        %v1462 = vperm.slane %v1456, %v1461
        %v1464 = vunpack.c.l.s4 1934713408
        %v1465 = vunpack.c.0.s8 %v1464
        %v1466 = vperm.slane %v1458, %v1465
        %v1467 = vrot.slane %v1450, 4
        %v1468 = vsel %vm1095, 0.0, %v1467
        %v1469 = vrot.slane %v1454, 4
        %v1470 = vsel %vm1095, 0.0, %v1469
        %v1471 = vrot.slane %v1462, 4
        %v1472 = vsel %vm1095, 0.0, %v1471
        %v1473 = vrot.slane %v1466, 4
        %v1474 = vsel %vm1095, 0.0, %v1473
        %v1475 = vsel %vm1095, %v1469, %v1450
        %v1477 = vunpack.c.l.s4 1983009808
        %v1478 = vunpack.c.0.s8 %v1477
        %v1479 = vperm.slane %v1475, %v1478
        %v1480 = vrot.slane %v1470, 4
        %v1481 = vsel %vm1095, %v1480, %v1468
        %v1483 = vunpack.c.l.s4 1983009808
        %v1484 = vunpack.c.0.s8 %v1483
        %v1485 = vperm.slane %v1481, %v1484
        %v1486 = vsel %vm1095, %v1473, %v1462
        %v1488 = vunpack.c.l.s4 1983009808
        %v1489 = vunpack.c.0.s8 %v1488
        %v1490 = vperm.slane %v1486, %v1489
        %v1491 = vrot.slane %v1474, 4
        %v1492 = vsel %vm1095, %v1491, %v1472
        %v1494 = vunpack.c.l.s4 1983009808
        %v1495 = vunpack.c.0.s8 %v1494
        %v1496 = vperm.slane %v1492, %v1495
        %v1497 = vrot.slane %v1485, 4
        %v1498 = vsel %vm1095, %v1497, %v1479
        %v1499 = vrot.slane %v1479, 4
        %v1500 = vsel %vm1095, %v1485, %v1499
        %v1502 = vunpack.c.l.s4 1934713408
        %v1503 = vunpack.c.0.s8 %v1502
        %v1504 = vperm.slane %v1498, %v1503
        %v1506 = vunpack.c.l.s4 1934713408
        %v1507 = vunpack.c.0.s8 %v1506
        %v1508 = vperm.slane %v1500, %v1507
        %v1509 = vrot.slane %v1496, 4
        %v1510 = vsel %vm1095, %v1509, %v1490
        %v1511 = vrot.slane %v1490, 4
        %v1512 = vsel %vm1095, %v1496, %v1511
        %v1514 = vunpack.c.l.s4 1934713408
        %v1515 = vunpack.c.0.s8 %v1514
        %v1516 = vperm.slane %v1510, %v1515
        %v1518 = vunpack.c.l.s4 1934713408
        %v1519 = vunpack.c.0.s8 %v1518
        %v1520 = vperm.slane %v1512, %v1519
        %v1521 = vrot.slane %v1516, 4
        %v1522 = vsel %vm1095, %v1521, %v1504
        %v1523 = vrot.slane %v1504, 4
        %v1524 = vsel %vm1095, %v1516, %v1523
        %v1525 = vrot.slane %v1520, 4
        %v1526 = vsel %vm1095, %v1525, %v1508
        %v1527 = vrot.slane %v1508, 4
        %v1528 = vsel %vm1095, %v1520, %v1527
        %1530 = vrot.lane.b32.xlu0 %v1524, 8
        %v1531 = vpop.permute.xlu0 %1530
        %1534 = vrot.lane.b32.xlu0 %v1526, 16
        %v1535 = vpop.permute.xlu0 %1534
        %1538 = vrot.lane.b32.xlu0 %v1528, 24
        %v1539 = vpop.permute.xlu0 %1538
        %v1541 = vsel %vm1213, %v1522, %v1531
        %vm1542 = vcmask 130048
        %v1543 = vsel %vm1542, %v1541, %v1535
        %vm1544 = vcmask 195584
        %v1545 = vsel %vm1544, %v1543, %v1539
        %v1546 = vpack.c.bf16 %v1545, %v1545
        %v1547 = vld [vmem:[#allocation7] sm:$0xf]
        %v1548 = vld [vmem:[#allocation7 + $0x4] sm:$0xf]
        %v1549 = vld [vmem:[#allocation7 + $0x8] sm:$0xf]
        %v1550 = vld [vmem:[#allocation7 + $0xc] sm:$0xf]
        %v1551 = vld [vmem:[%s7] sm:$0x1]
        %v1553 = vperm.slane %v1551, 0
        %v1559 = vunpack.c.l.b16 %v1547
        %v1560 = vunpack.c.l.b16 %v1548
        %v1561 = vunpack.c.l.b16 %v1549
        %v1562 = vunpack.c.l.b16 %v1550
        %v1563 = vpack.c.b16 %v1560, %v1559
        %v1564 = vpack.c.b16 %v1562, %v1561
        %v1568 = vsel %vm1067, %v1546, 0
        %1570 = vmatpush.bf16.msra.mxu0 0
        %1571 = vmatpush.bf16.msra.mxu0 0
        %1572 = vmatpush.bf16.msra.mxu0 0
        %1573 = vmatpush.bf16.msra.mxu0 0
        %1574 = vmatpush.bf16.msra.mxu0 0
        %1575 = vmatpush.bf16.msra.mxu0 0
        %1576 = vmatpush.bf16.msra.mxu0 %v1564
        %1577 = vmatpush.bf16.msra.mxu0 %v1563
        %1578 = vmatmul.bf16.gmra.mxu0 %v1568
        %v1579 = vpop.f32.mrf.mxu0
        %v1580 = vadd.f32 %v1553, %v1579
        %v1581 = vpop.f32.mrf.mxu0
        %1582 = vdwg.mxu0
        %v1583 = vadd.f32 %v1580, %v1045
        %v1584 = vsel %vm1067, %v1583, 0.0
        %1585 = vadd.xlane.f32.xlu0 %v1584
        %v1586 = vpop.xlane.xlu0 %1585
        %v1587 = vrcp.pop 32.0
        %v1588 = vmul.f32 32.0, %v1587
        %v1589 = vsub.f32 1.0, %v1588
        %v1590 = vmul.f32 %v1587, %v1589
        %v1591 = vadd.f32 %v1587, %v1590
        %vm1592 = vweird.f32 %v1587
        %v1593 = vsel %vm1592, %v1587, %v1591
        %v1594 = vmul.f32 %v1586, %v1593
        %v1595 = vsub.f32 %v1583, %v1594
        %v1596 = vmul.f32 %v1595, %v1595
        %v1597 = vsel %vm1067, %v1596, 0.0
        %1598 = vadd.xlane.f32.xlu0 %v1597
        %v1599 = vpop.xlane.xlu0 %1598
        %v1600 = vmul.f32 %v1599, %v1593
        %v1601 = vadd.f32 %v1600, 1e-05
        %v1602 = vrsqrt.pop %v1601
        %v1603 = vmul.f32 %v1602, %v1601
        %v1604 = vmul.f32 %v1603, %v1602
        %v1605 = vmul.f32 0.5, %v1604
        %v1606 = vsub.f32 1.5, %v1605
        %v1607 = vmul.f32 %v1602, %v1606
        %vm1608 = vweird.f32 %v1601
        %vm1609 = vweird.f32 %v1602
        %vm1610 = vmor %vm1608, %vm1609
        %v1611 = vsel %vm1610, %v1602, %v1607
        %v1612 = vmul.f32 %v1595, %v1611
        %v1613 = vld [vmem:[%s8] sm:$0x1]
        %v1615 = vperm.slane %v1613, 0
        %v1617 = vmul.f32 %v1612, %v1615
        %v1618 = vld [vmem:[%s9] sm:$0x1]
        %v1620 = vperm.slane %v1618, 0
        %v1622 = vadd.f32 %v1617, %v1620
        %v1623 = vpack.c.bf16 %v1622, %v1622
        %v1624 = vld [vmem:[#allocation9] sm:$0xf]
        %v1625 = vld [vmem:[#allocation9 + $0x4] sm:$0xf]
        %v1626 = vld [vmem:[#allocation9 + $0x8] sm:$0xf]
        %v1627 = vld [vmem:[#allocation9 + $0xc] sm:$0xf]
        %v1628 = vld [vmem:[%s11] sm:$0x1]
        %v1630 = vperm.slane %v1628, 0
        %v1636 = vunpack.c.l.b16 %v1624
        %v1637 = vunpack.c.l.b16 %v1625
        %v1638 = vunpack.c.l.b16 %v1626
        %v1639 = vunpack.c.l.b16 %v1627
        %v1640 = vpack.c.b16 %v1637, %v1636
        %v1641 = vpack.c.b16 %v1639, %v1638
        %v1645 = vsel %vm1067, %v1623, 0
        %1647 = vmatpush.bf16.msra.mxu0 0
        %1648 = vmatpush.bf16.msra.mxu0 0
        %1649 = vmatpush.bf16.msra.mxu0 0
        %1650 = vmatpush.bf16.msra.mxu0 0
        %1651 = vmatpush.bf16.msra.mxu0 0
        %1652 = vmatpush.bf16.msra.mxu0 0
        %1653 = vmatpush.bf16.msra.mxu0 %v1641
        %1654 = vmatpush.bf16.msra.mxu0 %v1640
        %1655 = vmatmul.bf16.gmra.mxu0 %v1645
        %v1656 = vpop.f32.mrf.mxu0
        %v1657 = vadd.f32 %v1630, %v1656
        %v1658 = vpop.f32.mrf.mxu0
        %1659 = vdwg.mxu0
        %v1660 = vmax.f32 %v1657, 0.0
        %v1661 = vpack.c.bf16 %v1660, %v1660
        %v1662 = vld [vmem:[%s12] sm:$0xf]
        %v1663 = vld [vmem:[%s12 + $0x4] sm:$0xf]
        %v1664 = vld [vmem:[%s12 + $0x8] sm:$0xf]
        %v1665 = vld [vmem:[%s12 + $0xc] sm:$0xf]
        %v1666 = vld [vmem:[%s12 + $0x10] sm:$0xf]
        %v1667 = vld [vmem:[%s12 + $0x14] sm:$0xf]
        %v1668 = vld [vmem:[%s12 + $0x18] sm:$0xf]
        %v1669 = vld [vmem:[%s12 + $0x1c] sm:$0xf]
        %v1670 = vld [vmem:[%s13] sm:$0x1]
        %v1672 = vperm.slane %v1670, 0
        %v1682 = vunpack.c.l.b16 %v1662
        %v1683 = vunpack.c.l.b16 %v1663
        %v1684 = vunpack.c.l.b16 %v1664
        %v1685 = vunpack.c.l.b16 %v1665
        %v1686 = vunpack.c.l.b16 %v1666
        %v1687 = vunpack.c.l.b16 %v1667
        %v1688 = vunpack.c.l.b16 %v1668
        %v1689 = vunpack.c.l.b16 %v1669
        %v1690 = vpack.c.b16 %v1683, %v1682
        %v1691 = vpack.c.b16 %v1685, %v1684
        %v1692 = vpack.c.b16 %v1687, %v1686
        %v1693 = vpack.c.b16 %v1689, %v1688
        %vm1698 = vcmask 523264
        %v1700 = vsel %vm1698, %v1661, 0
        %1702 = vmatpush.bf16.msra.mxu0 0
        %1703 = vmatpush.bf16.msra.mxu0 0
        %1704 = vmatpush.bf16.msra.mxu0 0
        %1705 = vmatpush.bf16.msra.mxu0 0
        %1706 = vmatpush.bf16.msra.mxu0 %v1693
        %1707 = vmatpush.bf16.msra.mxu0 %v1692
        %1708 = vmatpush.bf16.msra.mxu0 %v1691
        %1709 = vmatpush.bf16.msra.mxu0 %v1690
        %1710 = vmatmul.bf16.gmra.mxu0 %v1700
        %v1711 = vpop.f32.mrf.mxu0
        %v1712 = vadd.f32 %v1672, %v1711
        %v1713 = vpop.f32.mrf.mxu0
        %1714 = vdwg.mxu0
        %v1715 = vadd.f32 %v1712, %v1622
        %v1716 = vsel %vm1067, %v1715, 0.0
        %1717 = vadd.xlane.f32.xlu0 %v1716
        %v1718 = vpop.xlane.xlu0 %1717
        %v1719 = vmul.f32 %v1718, %v1593
        %v1720 = vsub.f32 %v1715, %v1719
        %v1721 = vmul.f32 %v1720, %v1720
        %v1722 = vsel %vm1067, %v1721, 0.0
        %1723 = vadd.xlane.f32.xlu0 %v1722
        %v1724 = vpop.xlane.xlu0 %1723
        %v1725 = vmul.f32 %v1724, %v1593
        %v1726 = vadd.f32 %v1725, 1e-05
        %v1727 = vrsqrt.pop %v1726
        %v1728 = vmul.f32 %v1727, %v1726
        %v1729 = vmul.f32 %v1728, %v1727
        %v1730 = vmul.f32 0.5, %v1729
        %v1731 = vsub.f32 1.5, %v1730
        %v1732 = vmul.f32 %v1727, %v1731
        %vm1733 = vweird.f32 %v1726
        %vm1734 = vweird.f32 %v1727
        %vm1735 = vmor %vm1733, %vm1734
        %v1736 = vsel %vm1735, %v1727, %v1732
        %v1737 = vmul.f32 %v1720, %v1736
        %v1738 = vld [vmem:[%s14] sm:$0x1]
        %v1740 = vperm.slane %v1738, 0
        %v1742 = vmul.f32 %v1737, %v1740
        %v1743 = vld [vmem:[%s15] sm:$0x1]
        %v1745 = vperm.slane %v1743, 0
        %v1747 = vadd.f32 %v1742, %v1745
        %1748 = vst.msk [vmem:[%s606] sm:$0xff] %vm1067, %v1747
        %s1749 = sand.u32 %s404, 1
        %s1750 = scalar_lea.sflag [#allocation6], %s1749
        %s1751 = sand.u32 %s404, 1
        %s1752 = smul.addr %s1751, 8
        %s1753 = scalar_lea.vmem [#allocation10], %s1752
        // Predicated region
        $region101: #{tpu_custom_call.1} parent=83 // pred_check
          %p1754 = pneg %p414
        $region102: #{tpu_custom_call.1} parent=83 // pred_check_branch
          %1756 = sbr.rel (%p1754) target = $region104
        $region103: #{tpu_custom_call.1} parent=83 // pred_region
          %1758 = vsyncadd %s1750, 0
          %s1759 = sadd.s32 %s39, %s38
          %s1760 = smul.addr %s1759, 8
          %s1761 = scalar_lea.hbm %s16, %s1760
          %s1763 = sshll.u32 %s1753, 4
          %s1764 = int_to_ptr.vmem [resolvable:$true] %s1763
          %s1765 = sshll.u32 %s1761, 4
          %s1766 = int_to_ptr.hbm [resolvable:$true] %s1765
          %1768 = dma.vmem_to_hbm [thread:$0]  %s1764, 128, %s1766, %s1750
        $region104: #{tpu_custom_call.1} parent=83 // pred_fallthru
          _
      $region84: #{tpu_custom_call.1} parent=5 // pred_fallthru
        _
      %p1769 = scmp.le.s32.totalorder 2, %s29
      // Predicated region
      $region105: #{tpu_custom_call.1} parent=5 // pred_check
        %p1770 = pneg %p1769
      $region106: #{tpu_custom_call.1} parent=5 // pred_check_branch
        %1772 = sbr.rel (%p1770) target = $region108
      $region107: #{tpu_custom_call.1} parent=5 // pred_region
        %s1773 = ssub.s32 %s29, 2
        // Predicated region
        $region109: #{tpu_custom_call.1} parent=107 // pred_check
          %p1774 = pneg %p420
        $region110: #{tpu_custom_call.1} parent=107 // pred_check_branch
          %1776 = sbr.rel (%p1774) target = $region112
        $region111: #{tpu_custom_call.1} parent=107 // pred_region
          %s1777 = sand.u32 %s405, 1
          %s1778 = scalar_lea.sflag [#allocation6], %s1777
          %s1779 = sand.u32 %s405, 1
          %s1780 = smul.addr %s1779, 8
          %s1781 = scalar_lea.vmem [#allocation10], %s1780
          %1783 = dma.done %s1778, 128
        $region112: #{tpu_custom_call.1} parent=107 // pred_fallthru
          _
      $region108: #{tpu_custom_call.1} parent=5 // pred_fallthru
        _
    $region6: #{tpu_custom_call.1} parent=1 // loop_footer
      %s33 = sadd.s32 1, %s29
    $region7: #{tpu_custom_call.1} parent=1 // loop_footer_branch
      %28 = sbr.rel target = $region3
    $region8: #{tpu_custom_call.1} parent=1 // loop_exit
      _
    %1784 = vsyncpa [#allocation5], 1
    %s1785 = scalar_lea.sflag [#allocation5], 1
    %1786 = vsyncpa %s1785, 1
    %1787 = vsyncpa [#allocation8], 1
    %1788 = vsyncpa [#allocation6], 1
    %s1789 = scalar_lea.sflag [#allocation6], 1
    %1790 = vsyncpa %s1789, 1

</llo_original>
